<compile_context>
chip_gen: v6e
topology: v6e:2x2x1
jax: 0.10.0
libtpu: 0.0.40
codegen_flags: <defaults>
</compile_context>

<pallas_src>
import functools

import jax
import jax.numpy as jnp
import numpy as np
from jax.experimental import pallas as pl
from jax.experimental.pallas import tpu as pltpu

# Set to jnp.bfloat16 on v6e/v7x to halve HBM traffic and VMEM footprint of the
# matmul operands and stored intermediates (f32 accumulation is kept).  Left at
# f32 here so the numeric check against the f32 reference is tight.
MM_DTYPE = jnp.float32


# ------------------------------ tiling helpers --------------------------------

def _round_up(x, m):
    return ((x + m - 1) // m) * m


def _pick_tile(M, row_bytes, cap=1024, budget=4 << 20):
    """Pick a row tile: as large as possible up to `cap` rows / `budget` bytes,
    multiple of 8, never falling back to a single full-M block."""
    cap = min(cap, max(8, (budget // max(row_bytes, 1)) // 8 * 8))
    if M <= cap:
        return _round_up(M, 8)
    nblk = -(-M // cap)                       # ceil
    return _round_up(-(-M // nblk), 8)


def _pad_rows(x, Mp):
    M = x.shape[0]
    if Mp == M:
        return x
    pad = [(0, Mp - M)] + [(0, 0)] * (x.ndim - 1)
    return jnp.pad(x, pad)


# ------------------------------- Pallas kernels --------------------------------

def _pw_kernel(x_ref, w_ref, b_ref, o_ref, *, act):
    # pointwise (1x1) conv + folded BN (+ optional ReLU) on a tile of rows
    y = jnp.dot(x_ref[...], w_ref[...], preferred_element_type=jnp.float32)
    y = y + b_ref[...]
    if act == "relu":
        y = jnp.maximum(y, 0.0)
    o_ref[...] = y.astype(o_ref.dtype)


def _relpos_mlp_kernel(xyz_ref, nxyz_ref, w_ref, b_ref, o_ref):
    # Fused relative_pos_encoding + Building_Block.mlp1 (conv1x1 + BN + ReLU).
    # xyz_ref: (tm, 1, 3); nxyz_ref: (tm, K, 3); w_ref: (10, dh); b_ref: (1, dh)
    tm, K, _ = nxyz_ref.shape
    nb = nxyz_ref[...]
    tile = jnp.broadcast_to(xyz_ref[...], (tm, K, 3))
    rel = tile - nb
    dist = jnp.sqrt(jnp.sum(rel * rel, axis=-1, keepdims=True))     # (tm, K, 1)
    feat = jnp.concatenate([dist, rel, tile, nb], axis=-1)          # (tm, K, 10)
    y = jnp.dot(feat.reshape(tm * K, 10).astype(w_ref.dtype), w_ref[...],
                preferred_element_type=jnp.float32) + b_ref[...]
    y = jnp.maximum(y, 0.0)                                         # (tm*K, dh)
    o_ref[...] = y.reshape(tm, K, -1).astype(o_ref.dtype)


def _att_pool_kernel(*refs, has_pre):
    # Fused Att_Pooling over a tile of points:
    #   [optional pre-mlp on xyz branch] -> channel concat (in VMEM only) ->
    #   attention fc (one big matmul) -> softmax over K -> weighted sum over K ->
    #   output mlp (conv1x1 + BN + ReLU).
    if has_pre:
        (fnb_ref, fxyz_ref, wpre_ref, bpre_ref,
         wfc_ref, wmlp_ref, b_ref, o_ref) = refs
    else:
        (fnb_ref, fxyz_ref,
         wfc_ref, wmlp_ref, b_ref, o_ref) = refs
    tm, K, dh = fnb_ref.shape

    fnb = fnb_ref[...]                                              # (tm, K, dh)
    fxyz = fxyz_ref[...]                                            # (tm, K, dh)
    if has_pre:
        # fused Building_Block.mlp2 on the xyz branch (conv1x1 + BN + ReLU)
        t = jnp.dot(fxyz.reshape(tm * K, dh), wpre_ref[...],
                    preferred_element_type=jnp.float32) + bpre_ref[...]
        fxyz = jnp.maximum(t, 0.0).astype(fnb.dtype).reshape(tm, K, dh)

    # channel concat, matching torch.cat([f_neighbours, f_xyz], dim=1)
    f = jnp.concatenate([fnb, fxyz], axis=-1)                       # (tm, K, 2*dh)
    C = f.shape[-1]

    # attention logits for all K neighbours in one MXU push
    att = jnp.dot(f.reshape(tm * K, C).astype(wfc_ref.dtype), wfc_ref[...],
                  preferred_element_type=jnp.float32).reshape(tm, K, C)

    # per-channel softmax over the K neighbours (stable, approx reciprocal on EUP)
    m = jnp.max(att, axis=1, keepdims=True)
    e = jnp.exp(att - m)
    s = jnp.sum(e, axis=1, keepdims=True)
    scores = e * pl.reciprocal(s, approx=True)                      # (tm, K, C)

    agg = jnp.sum(f.astype(jnp.float32) * scores, axis=1)           # (tm, C)

    y = jnp.dot(agg.astype(wmlp_ref.dtype), wmlp_ref[...],
                preferred_element_type=jnp.float32) + b_ref[...]
    o_ref[...] = jnp.maximum(y, 0.0).astype(o_ref.dtype)


def _out_kernel(x_ref, w_ref, b_ref, f_ref, ws_ref, bs_ref, o_ref):
    # Fused: mlp2 (no act) + shortcut (no act) + add + LeakyReLU(0.2)
    y = (jnp.dot(x_ref[...], w_ref[...], preferred_element_type=jnp.float32)
         + b_ref[...]
         + jnp.dot(f_ref[...], ws_ref[...], preferred_element_type=jnp.float32)
         + bs_ref[...])
    o_ref[...] = jnp.where(y > 0, y, 0.2 * y).astype(o_ref.dtype)


# ------------------------------ kernel wrappers --------------------------------

def pointwise_conv(x2d, w, b, act=None, out_dtype=None):
    """y = act(x2d @ w + b);  x2d: (M, Cin), w: (Cin, Cout)."""
    M, Cin = x2d.shape
    Cout = w.shape[1]
    out_dtype = out_dtype or MM_DTYPE
    tm = _pick_tile(M, 4 * (Cin + Cout), cap=1024)
    Mp = _round_up(M, tm)
    x2d = _pad_rows(x2d, Mp)
    out = pl.pallas_call(
        functools.partial(_pw_kernel, act=act),
        out_shape=jax.ShapeDtypeStruct((Mp, Cout), out_dtype),
        grid=(Mp // tm,),
        in_specs=[pl.BlockSpec((tm, Cin), lambda i: (i, 0)),
                  pl.BlockSpec((Cin, Cout), lambda i: (0, 0)),
                  pl.BlockSpec((1, Cout), lambda i: (0, 0))],
        out_specs=pl.BlockSpec((tm, Cout), lambda i: (i, 0)),
        compiler_params=pltpu.CompilerParams(dimension_semantics=("parallel",)),
    )(x2d.astype(MM_DTYPE), w.astype(MM_DTYPE), b.reshape(1, Cout))
    return out[:M] if Mp != M else out


def relpos_mlp(xyz, neigh_idx, w, b):
    """Fused relative_pos_encoding + mlp(10 -> dh): returns f_xyz (B*N, K, dh)."""
    B, N, _ = xyz.shape
    K = neigh_idx.shape[-1]
    dh = w.shape[1]
    M = B * N
    nxyz = gather_neighbour(xyz, neigh_idx).reshape(M, K, 3)        # (M, K, 3)
    xyz3 = xyz.reshape(M, 1, 3)
    tm = _pick_tile(M, 4 * (3 + K * (3 + dh)), cap=512, budget=2 << 20)
    Mp = _round_up(M, tm)
    nxyz, xyz3 = _pad_rows(nxyz, Mp), _pad_rows(xyz3, Mp)
    out = pl.pallas_call(
        _relpos_mlp_kernel,
        out_shape=jax.ShapeDtypeStruct((Mp, K, dh), MM_DTYPE),
        grid=(Mp // tm,),
        in_specs=[pl.BlockSpec((tm, 1, 3), lambda i: (i, 0, 0)),
                  pl.BlockSpec((tm, K, 3), lambda i: (i, 0, 0)),
                  pl.BlockSpec((10, dh), lambda i: (0, 0)),
                  pl.BlockSpec((1, dh), lambda i: (0, 0))],
        out_specs=pl.BlockSpec((tm, K, dh), lambda i: (i, 0, 0)),
        compiler_params=pltpu.CompilerParams(dimension_semantics=("parallel",)),
    )(xyz3, nxyz, w.astype(MM_DTYPE), b.reshape(1, dh))
    return out[:M] if Mp != M else out


def att_pooling(f_nb, f_xyz, wfc, wmlp, bias, pre=None):
    """Fused Att_Pooling: softmax-over-K attention + weighted sum + conv1x1+BN+ReLU.

    f_nb, f_xyz : (M, K, dh)  -- the two halves of the (never HBM-materialized) concat.
    wfc         : (2*dh, 2*dh) attention fc (no bias).
    wmlp, bias  : folded conv+BN of the output mlp.
    pre         : optional (w, b) applied as relu(f_xyz @ w + b) inside the kernel
                  (fuses Building_Block.mlp2 for the second att-pooling).
    """
    M, K, dh = f_nb.shape
    assert wfc.shape[0] == 2 * dh
    Cfc = wfc.shape[1]
    Cout = wmlp.shape[1]
    tm = _pick_tile(M, 2 * K * dh * 4, cap=512, budget=1 << 20)
    Mp = _round_up(M, tm)
    f_nb, f_xyz = _pad_rows(f_nb, Mp), _pad_rows(f_xyz, Mp)

    inputs = [f_nb, f_xyz]
    in_specs = [pl.BlockSpec((tm, K, dh), lambda i: (i, 0, 0)),
                pl.BlockSpec((tm, K, dh), lambda i: (i, 0, 0))]
    if pre is not None:
        wpre, bpre = pre
        inputs += [wpre.astype(MM_DTYPE), bpre.reshape(1, -1)]
        in_specs += [pl.BlockSpec(wpre.shape, lambda i: (0, 0)),
                     pl.BlockSpec((1, bpre.shape[0]), lambda i: (0, 0))]
    inputs += [wfc.astype(MM_DTYPE), wmlp.astype(MM_DTYPE), bias.reshape(1, Cout)]
    in_specs += [pl.BlockSpec((2 * dh, Cfc), lambda i: (0, 0)),
                 pl.BlockSpec((Cfc, Cout), lambda i: (0, 0)),
                 pl.BlockSpec((1, Cout), lambda i: (0, 0))]

    out = pl.pallas_call(
        functools.partial(_att_pool_kernel, has_pre=pre is not None),
        out_shape=jax.ShapeDtypeStruct((Mp, Cout), MM_DTYPE),
        grid=(Mp // tm,),
        in_specs=in_specs,
        out_specs=pl.BlockSpec((tm, Cout), lambda i: (i, 0)),
        compiler_params=pltpu.CompilerParams(dimension_semantics=("parallel",)),
    )(*inputs)
    return out[:M] if Mp != M else out


def final_stage(x, feat, w, b, ws, bs):
    """leaky_relu(x @ w + b + feat @ ws + bs, 0.2) -- mlp2 + shortcut fused."""
    M, Cin = x.shape
    d_in = feat.shape[1]
    Cout = w.shape[1]
    tm = _pick_tile(M, 4 * (Cin + d_in + Cout), cap=1024)
    Mp = _round_up(M, tm)
    x, feat = _pad_rows(x, Mp), _pad_rows(feat, Mp)
    out = pl.pallas_call(
        _out_kernel,
        out_shape=jax.ShapeDtypeStruct((Mp, Cout), jnp.float32),
        grid=(Mp // tm,),
        in_specs=[pl.BlockSpec((tm, Cin), lambda i: (i, 0)),
                  pl.BlockSpec((Cin, Cout), lambda i: (0, 0)),
                  pl.BlockSpec((1, Cout), lambda i: (0, 0)),
                  pl.BlockSpec((tm, d_in), lambda i: (i, 0)),
                  pl.BlockSpec((d_in, Cout), lambda i: (0, 0)),
                  pl.BlockSpec((1, Cout), lambda i: (0, 0))],
        out_specs=pl.BlockSpec((tm, Cout), lambda i: (i, 0)),
        compiler_params=pltpu.CompilerParams(dimension_semantics=("parallel",)),
    )(x.astype(MM_DTYPE), w.astype(MM_DTYPE), b.reshape(1, Cout),
      feat.astype(MM_DTYPE), ws.astype(MM_DTYPE), bs.reshape(1, Cout))
    return out[:M] if Mp != M else out


# --------------------------------- JAX glue ------------------------------------

# TODO(synk): neighbour gather is data-dependent indexing; it stays in plain JAX
# (jnp.take_along_axis).  Moving it in-kernel (scalar-prefetched neigh_idx plus
# DMA / in-VMEM take) would remove the remaining (B,N,K,dh) HBM round trips.
def gather_neighbour(pc, neigh_idx):
    # pc: (B, N, d), neigh_idx: (B, N, K) -> (B, N, K, d)  (== torch.gather pattern)
    B, N, d = pc.shape
    K = neigh_idx.shape[-1]
    idx = neigh_idx.reshape(B, N * K)
    g = jnp.take_along_axis(pc, idx[:, :, None], axis=1)
    return g.reshape(B, N, K, d)


def relative_pos_encoding(xyz, neigh_idx):        # used by the pure-JAX reference
    nb = gather_neighbour(xyz, neigh_idx)
    tile = jnp.broadcast_to(xyz[:, :, None, :], nb.shape)
    rel = tile - nb
    dist = jnp.sqrt(jnp.sum(rel * rel, axis=-1, keepdims=True))
    return jnp.concatenate([dist, rel, tile, nb], axis=-1)          # (B,N,K,10)


# --------------------------- parameter construction ----------------------------

def fold_bn(w, gamma, beta, mean, var, eps=1e-5):
    scale = gamma / jnp.sqrt(var + eps)
    return w * scale[None, :], beta - mean * scale


def make_conv_bn(key, cin, cout):
    k1, k2, k3, k4, k5 = jax.random.split(key, 5)
    w = 0.1 * jax.random.normal(k1, (cin, cout), jnp.float32)
    gamma = 1.0 + 0.1 * jax.random.normal(k2, (cout,), jnp.float32)
    beta = 0.1 * jax.random.normal(k3, (cout,), jnp.float32)
    mean = 0.05 * jax.random.normal(k4, (cout,), jnp.float32)
    var = 1.0 + 0.1 * jax.random.uniform(k5, (cout,), jnp.float32)
    return fold_bn(w, gamma, beta, mean, var)


def init_params(key, d_in, d_out):
    ks = jax.random.split(key, 9)
    return {
        "mlp1":     make_conv_bn(ks[0], d_in, d_out // 2),
        "bb_mlp1":  make_conv_bn(ks[1], 10, d_out // 2),
        "att1_fc":  0.1 * jax.random.normal(ks[2], (d_out, d_out), jnp.float32),
        "att1_mlp": make_conv_bn(ks[3], d_out, d_out // 2),
        "bb_mlp2":  make_conv_bn(ks[4], d_out // 2, d_out // 2),
        "att2_fc":  0.1 * jax.random.normal(ks[5], (d_out, d_out), jnp.float32),
        "att2_mlp": make_conv_bn(ks[6], d_out, d_out),
        "mlp2":     make_conv_bn(ks[7], d_out, 2 * d_out),
        "shortcut": make_conv_bn(ks[8], d_in, 2 * d_out),
    }


# -------------------------------- LFA forward ----------------------------------

def lfa_forward(feature, xyz, neigh_idx, p):
    B, N, d_in = feature.shape
    K = neigh_idx.shape[-1]
    M = B * N
    feat2d = feature.reshape(M, d_in)

    # LFA.mlp1: d_in -> d_out//2 (conv1x1 + BN + ReLU)
    w1, b1 = p["mlp1"]
    dh = w1.shape[1]
    f_pc = pointwise_conv(feat2d, w1, b1, act="relu")                      # (M, dh)

    # ---- Building_Block ----
    # relative_pos_encoding + mlp1(10 -> dh) fused; (B,N,K,10) never hits HBM.
    wbb1, bbb1 = p["bb_mlp1"]
    f_xyz = relpos_mlp(xyz, neigh_idx, wbb1, bbb1)                         # (M, K, dh)

    # att_pooling_1 over concat([gathered f_pc, f_xyz]); concat fused in-kernel.
    f_nb = gather_neighbour(f_pc.reshape(B, N, dh), neigh_idx).reshape(M, K, dh)
    wm1, bm1 = p["att1_mlp"]
    f_agg = att_pooling(f_nb, f_xyz, p["att1_fc"], wm1, bm1)               # (M, dh)

    # att_pooling_2; Building_Block.mlp2 on the xyz branch fused via `pre=`.
    f_nb = gather_neighbour(f_agg.reshape(B, N, dh), neigh_idx).reshape(M, K, dh)
    wm2, bm2 = p["att2_mlp"]
    f_agg = att_pooling(f_nb, f_xyz, p["att2_fc"], wm2, bm2,
                        pre=p["bb_mlp2"])                                  # (M, d_out)

    # LFA.mlp2 (no act) + shortcut (no act) + add + LeakyReLU(0.2), one kernel.
    w2, b2 = p["mlp2"]
    ws, bs = p["shortcut"]
    out = final_stage(f_agg, feat2d, w2, b2, ws, bs)                       # (M, 2*d_out)
    return out.reshape(B, N, -1)


# --------------------------- pure-JAX reference (check) -------------------------

def lfa_reference(feature, xyz, neigh_idx, p):
    def conv(x, wb, act):
        w, b = wb
        y = x @ w + b
        return jnp.maximum(y, 0.0) if act == "relu" else y

    def attpool(f, wfc, wb):
        scores = jax.nn.softmax(f @ wfc, axis=2)          # softmax over K neighbours
        return conv(jnp.sum(f * scores, axis=2), wb, "relu")

    f_pc = conv(feature, p["mlp1"], "relu")
    f_xyz = conv(relative_pos_encoding(xyz, neigh_idx), p["bb_mlp1"], "relu")
    f_concat = jnp.concatenate([gather_neighbour(f_pc, neigh_idx), f_xyz], axis=-1)
    f_agg = attpool(f_concat, p["att1_fc"], p["att1_mlp"])
    f_xyz = conv(f_xyz, p["bb_mlp2"], "relu")
    f_concat = jnp.concatenate([gather_neighbour(f_agg, neigh_idx), f_xyz], axis=-1)
    f_agg = attpool(f_concat, p["att2_fc"], p["att2_mlp"])
    y = conv(f_agg, p["mlp2"], None) + conv(feature, p["shortcut"], None)
    return jnp.where(y > 0, y, 0.2 * y)


# ------------------------------------ main --------------------------------------

if __name__ == "__main__":
    B, N, K = 2, 16, 8
    d_in, d_out = 8, 16

    key = jax.random.PRNGKey(0)
    kf, kx, ki, kp = jax.random.split(key, 4)
    feature = jax.random.normal(kf, (B, N, d_in), jnp.float32)
    xyz = jax.random.normal(kx, (B, N, 3), jnp.float32)
    neigh_idx = jax.random.randint(ki, (B, N, K), 0, N, jnp.int32)
    params = init_params(kp, d_in, d_out)

    fwd = jax.jit(lfa_forward)
    out = jax.block_until_ready(fwd(feature, xyz, neigh_idx, params))
    ref = jax.block_until_ready(lfa_reference(feature, xyz, neigh_idx, params))

    assert out.shape == (B, N, 2 * d_out), out.shape
    np.testing.assert_allclose(np.asarray(out), np.asarray(ref), rtol=1e-2, atol=1e-2)
    print("KERNEL_OK")
</pallas_src>

<mosaic_0001>
module attributes {stable_mosaic.version = 11 : i64} {
  func.func @_pw_kernel(%arg0: i32, %arg1: memref<32x8xf32, #tpu.memory_space<vmem>>, %arg2: memref<8x8xf32, #tpu.memory_space<vmem>>, %arg3: memref<1x8xf32, #tpu.memory_space<vmem>>, %arg4: memref<32x8xf32, #tpu.memory_space<vmem>>) attributes {dimension_semantics = [#tpu.dimension_semantics<parallel>], iteration_bounds = array<i64: 1>, scalar_prefetch = 0 : i64, scratch_operands = 0 : i64, tpu.core_type = #tpu.core_type<tc>, window_params = [{transform_indices = @transform_0, window_bounds = array<i64: 32, 8>}, {pipeline_mode = #tpu.pipeline_mode<synchronous>, transform_indices = @transform_1, window_bounds = array<i64: 8, 8>}, {pipeline_mode = #tpu.pipeline_mode<synchronous>, transform_indices = @transform_2, window_bounds = array<i64: 1, 8>}, {transform_indices = @transform_3, window_bounds = array<i64: 32, 8>}]} {
    %c0 = arith.constant 0 : index
    %c0_0 = arith.constant 0 : index
    %0 = vector.load %arg1[%c0, %c0_0] : memref<32x8xf32, #tpu.memory_space<vmem>>, vector<32x8xf32>
    %c0_1 = arith.constant 0 : index
    %c0_2 = arith.constant 0 : index
    %1 = vector.load %arg2[%c0_1, %c0_2] : memref<8x8xf32, #tpu.memory_space<vmem>>, vector<8x8xf32>
    %cst = arith.constant dense<0.000000e+00> : vector<32x8xf32>
    %2 = tpu.matmul %0, %1, %cst {dimension_numbers = #tpu.dot_dimension_numbers<[1], [0], [0], [1], [0, 0, 1, 1], [], []>} : vector<32x8xf32>, vector<8x8xf32>, vector<32x8xf32> -> vector<32x8xf32>
    %c0_3 = arith.constant 0 : index
    %c0_4 = arith.constant 0 : index
    %3 = vector.load %arg3[%c0_3, %c0_4] : memref<1x8xf32, #tpu.memory_space<vmem>>, vector<1x8xf32>
    %4 = vector.broadcast %3 : vector<1x8xf32> to vector<32x8xf32>
    %5 = arith.addf %2, %4 : vector<32x8xf32>
    %cst_5 = arith.constant 0.000000e+00 : f32
    %6 = vector.broadcast %cst_5 : f32 to vector<32x8xf32>
    %7 = arith.maximumf %5, %6 : vector<32x8xf32>
    %c0_6 = arith.constant 0 : index
    %c0_7 = arith.constant 0 : index
    %8 = vector.load %arg4[%c0_6, %c0_7] : memref<32x8xf32, #tpu.memory_space<vmem>>, vector<32x8xf32>
    tpu.vector_store %arg4[%c0_6, %c0_7], %7 {strides = array<i32>} : memref<32x8xf32, #tpu.memory_space<vmem>>, vector<32x8xf32>,
    return
  }
  func.func @transform_0(%arg0: i32) -> (i32, i32) {
    %c0_i32 = arith.constant 0 : i32
    %c0_i32_0 = arith.constant 0 : i32
    return %arg0, %c0_i32 : i32, i32
  }
  func.func @transform_1(%arg0: i32) -> (i32, i32) {
    %c0_i32 = arith.constant 0 : i32
    %c0_i32_0 = arith.constant 0 : i32
    %c0_i32_1 = arith.constant 0 : i32
    return %c0_i32, %c0_i32_0 : i32, i32
  }
  func.func @transform_2(%arg0: i32) -> (i32, i32) {
    %c0_i32 = arith.constant 0 : i32
    %c0_i32_0 = arith.constant 0 : i32
    %c0_i32_1 = arith.constant 0 : i32
    return %c0_i32, %c0_i32_0 : i32, i32
  }
  func.func @transform_3(%arg0: i32) -> (i32, i32) {
    %c0_i32 = arith.constant 0 : i32
    %c0_i32_0 = arith.constant 0 : i32
    return %arg0, %c0_i32 : i32, i32
  }
}

module attributes {stable_mosaic.version = 11 : i64} {
  func.func @_relpos_mlp_kernel(%arg0: i32, %arg1: memref<32x1x3xf32, #tpu.memory_space<vmem>>, %arg2: memref<32x8x3xf32, #tpu.memory_space<vmem>>, %arg3: memref<10x8xf32, #tpu.memory_space<vmem>>, %arg4: memref<1x8xf32, #tpu.memory_space<vmem>>, %arg5: memref<32x8x8xf32, #tpu.memory_space<vmem>>) attributes {dimension_semantics = [#tpu.dimension_semantics<parallel>], iteration_bounds = array<i64: 1>, scalar_prefetch = 0 : i64, scratch_operands = 0 : i64, tpu.core_type = #tpu.core_type<tc>, window_params = [{transform_indices = @transform_0, window_bounds = array<i64: 32, 1, 3>}, {transform_indices = @transform_1, window_bounds = array<i64: 32, 8, 3>}, {pipeline_mode = #tpu.pipeline_mode<synchronous>, transform_indices = @transform_2, window_bounds = array<i64: 10, 8>}, {pipeline_mode = #tpu.pipeline_mode<synchronous>, transform_indices = @transform_3, window_bounds = array<i64: 1, 8>}, {transform_indices = @transform_4, window_bounds = array<i64: 32, 8, 8>}]} {
    %c0 = arith.constant 0 : index
    %c0_0 = arith.constant 0 : index
    %c0_1 = arith.constant 0 : index
    %0 = vector.load %arg2[%c0, %c0_0, %c0_1] : memref<32x8x3xf32, #tpu.memory_space<vmem>>, vector<32x8x3xf32>
    %c0_2 = arith.constant 0 : index
    %c0_3 = arith.constant 0 : index
    %c0_4 = arith.constant 0 : index
    %1 = vector.load %arg1[%c0_2, %c0_3, %c0_4] : memref<32x1x3xf32, #tpu.memory_space<vmem>>, vector<32x1x3xf32>
    %2 = vector.shape_cast %1 : vector<32x1x3xf32> to vector<32x1x3xf32>
    %3 = vector.broadcast %2 : vector<32x1x3xf32> to vector<32x8x3xf32>
    %4 = arith.subf %3, %0 : vector<32x8x3xf32>
    %5 = arith.mulf %4, %4 : vector<32x8x3xf32>
    %cst = arith.constant dense<0.000000e+00> : vector<32x8xf32>
    %6 = vector.multi_reduction <add>, %5, %cst [2] : vector<32x8x3xf32> to vector<32x8xf32>
    %7 = vector.shape_cast %6 : vector<32x8xf32> to vector<32x8x1xf32>
    %8 = math.sqrt %7 : vector<32x8x1xf32>
    %9 = tpu.concatenate %8, %4, %3, %0 in 2 : vector<32x8x1xf32>, vector<32x8x3xf32>, vector<32x8x3xf32>, vector<32x8x3xf32> -> vector<32x8x10xf32>
    %10 = vector.shape_cast %9 : vector<32x8x10xf32> to vector<256x10xf32>
    %c0_5 = arith.constant 0 : index
    %c0_6 = arith.constant 0 : index
    %11 = vector.load %arg3[%c0_5, %c0_6] : memref<10x8xf32, #tpu.memory_space<vmem>>, vector<10x8xf32>
    %cst_7 = arith.constant dense<0.000000e+00> : vector<256x8xf32>
    %12 = tpu.matmul %10, %11, %cst_7 {dimension_numbers = #tpu.dot_dimension_numbers<[1], [0], [0], [1], [0, 0, 1, 1], [], []>} : vector<256x10xf32>, vector<10x8xf32>, vector<256x8xf32> -> vector<256x8xf32>
    %c0_8 = arith.constant 0 : index
    %c0_9 = arith.constant 0 : index
    %13 = vector.load %arg4[%c0_8, %c0_9] : memref<1x8xf32, #tpu.memory_space<vmem>>, vector<1x8xf32>
    %14 = vector.broadcast %13 : vector<1x8xf32> to vector<256x8xf32>
    %15 = arith.addf %12, %14 : vector<256x8xf32>
    %cst_10 = arith.constant 0.000000e+00 : f32
    %16 = vector.broadcast %cst_10 : f32 to vector<256x8xf32>
    %17 = arith.maximumf %15, %16 : vector<256x8xf32>
    %18 = vector.shape_cast %17 : vector<256x8xf32> to vector<32x8x8xf32>
    %c0_11 = arith.constant 0 : index
    %c0_12 = arith.constant 0 : index
    %c0_13 = arith.constant 0 : index
    %19 = vector.load %arg5[%c0_11, %c0_12, %c0_13] : memref<32x8x8xf32, #tpu.memory_space<vmem>>, vector<32x8x8xf32>
    tpu.vector_store %arg5[%c0_11, %c0_12, %c0_13], %18 {strides = array<i32>} : memref<32x8x8xf32, #tpu.memory_space<vmem>>, vector<32x8x8xf32>,
    return
  }
  func.func @transform_0(%arg0: i32) -> (i32, i32, i32) {
    %c0_i32 = arith.constant 0 : i32
    %c0_i32_0 = arith.constant 0 : i32
    %c0_i32_1 = arith.constant 0 : i32
    return %arg0, %c0_i32, %c0_i32_0 : i32, i32, i32
  }
  func.func @transform_1(%arg0: i32) -> (i32, i32, i32) {
    %c0_i32 = arith.constant 0 : i32
    %c0_i32_0 = arith.constant 0 : i32
    %c0_i32_1 = arith.constant 0 : i32
    return %arg0, %c0_i32, %c0_i32_0 : i32, i32, i32
  }
  func.func @transform_2(%arg0: i32) -> (i32, i32) {
    %c0_i32 = arith.constant 0 : i32
    %c0_i32_0 = arith.constant 0 : i32
    %c0_i32_1 = arith.constant 0 : i32
    return %c0_i32, %c0_i32_0 : i32, i32
  }
  func.func @transform_3(%arg0: i32) -> (i32, i32) {
    %c0_i32 = arith.constant 0 : i32
    %c0_i32_0 = arith.constant 0 : i32
    %c0_i32_1 = arith.constant 0 : i32
    return %c0_i32, %c0_i32_0 : i32, i32
  }
  func.func @transform_4(%arg0: i32) -> (i32, i32, i32) {
    %c0_i32 = arith.constant 0 : i32
    %c0_i32_0 = arith.constant 0 : i32
    %c0_i32_1 = arith.constant 0 : i32
    return %arg0, %c0_i32, %c0_i32_0 : i32, i32, i32
  }
}

module attributes {stable_mosaic.version = 11 : i64} {
  func.func @_att_pool_kernel(%arg0: i32, %arg1: memref<32x8x8xf32, #tpu.memory_space<vmem>>, %arg2: memref<32x8x8xf32, #tpu.memory_space<vmem>>, %arg3: memref<16x16xf32, #tpu.memory_space<vmem>>, %arg4: memref<16x8xf32, #tpu.memory_space<vmem>>, %arg5: memref<1x8xf32, #tpu.memory_space<vmem>>, %arg6: memref<32x8xf32, #tpu.memory_space<vmem>>) attributes {dimension_semantics = [#tpu.dimension_semantics<parallel>], iteration_bounds = array<i64: 1>, scalar_prefetch = 0 : i64, scratch_operands = 0 : i64, tpu.core_type = #tpu.core_type<tc>, window_params = [{transform_indices = @transform_0, window_bounds = array<i64: 32, 8, 8>}, {transform_indices = @transform_1, window_bounds = array<i64: 32, 8, 8>}, {pipeline_mode = #tpu.pipeline_mode<synchronous>, transform_indices = @transform_2, window_bounds = array<i64: 16, 16>}, {pipeline_mode = #tpu.pipeline_mode<synchronous>, transform_indices = @transform_3, window_bounds = array<i64: 16, 8>}, {pipeline_mode = #tpu.pipeline_mode<synchronous>, transform_indices = @transform_4, window_bounds = array<i64: 1, 8>}, {transform_indices = @transform_5, window_bounds = array<i64: 32, 8>}]} {
    %c0 = arith.constant 0 : index
    %c0_0 = arith.constant 0 : index
    %c0_1 = arith.constant 0 : index
    %0 = vector.load %arg1[%c0, %c0_0, %c0_1] : memref<32x8x8xf32, #tpu.memory_space<vmem>>, vector<32x8x8xf32>
    %c0_2 = arith.constant 0 : index
    %c0_3 = arith.constant 0 : index
    %c0_4 = arith.constant 0 : index
    %1 = vector.load %arg2[%c0_2, %c0_3, %c0_4] : memref<32x8x8xf32, #tpu.memory_space<vmem>>, vector<32x8x8xf32>
    %2 = tpu.concatenate %0, %1 in 2 : vector<32x8x8xf32>, vector<32x8x8xf32> -> vector<32x8x16xf32>
    %3 = vector.shape_cast %2 : vector<32x8x16xf32> to vector<256x16xf32>
    %c0_5 = arith.constant 0 : index
    %c0_6 = arith.constant 0 : index
    %4 = vector.load %arg3[%c0_5, %c0_6] : memref<16x16xf32, #tpu.memory_space<vmem>>, vector<16x16xf32>
    %cst = arith.constant dense<0.000000e+00> : vector<256x16xf32>
    %5 = tpu.matmul %3, %4, %cst {dimension_numbers = #tpu.dot_dimension_numbers<[1], [0], [0], [1], [0, 0, 1, 1], [], []>} : vector<256x16xf32>, vector<16x16xf32>, vector<256x16xf32> -> vector<256x16xf32>
    %6 = vector.shape_cast %5 : vector<256x16xf32> to vector<32x8x16xf32>
    %cst_7 = arith.constant dense<0xFF800000> : vector<32x16xf32>
    %7 = vector.multi_reduction <maximumf>, %6, %cst_7 [1] : vector<32x8x16xf32> to vector<32x16xf32>
    %8 = vector.shape_cast %7 : vector<32x16xf32> to vector<32x1x16xf32>
    %9 = vector.broadcast %8 : vector<32x1x16xf32> to vector<32x8x16xf32>
    %10 = arith.subf %6, %9 : vector<32x8x16xf32>
    %11 = math.exp %10 : vector<32x8x16xf32>
    %cst_8 = arith.constant dense<0.000000e+00> : vector<32x16xf32>
    %12 = vector.multi_reduction <add>, %11, %cst_8 [1] : vector<32x8x16xf32> to vector<32x16xf32>
    %13 = vector.shape_cast %12 : vector<32x16xf32> to vector<32x1x16xf32>
    %14 = tpu.reciprocal %13 {approx = true} : vector<32x1x16xf32> -> vector<32x1x16xf32>
    %15 = vector.broadcast %14 : vector<32x1x16xf32> to vector<32x8x16xf32>
    %16 = arith.mulf %11, %15 : vector<32x8x16xf32>
    %17 = arith.mulf %2, %16 : vector<32x8x16xf32>
    %cst_9 = arith.constant dense<0.000000e+00> : vector<32x16xf32>
    %18 = vector.multi_reduction <add>, %17, %cst_9 [1] : vector<32x8x16xf32> to vector<32x16xf32>
    %c0_10 = arith.constant 0 : index
    %c0_11 = arith.constant 0 : index
    %19 = vector.load %arg4[%c0_10, %c0_11] : memref<16x8xf32, #tpu.memory_space<vmem>>, vector<16x8xf32>
    %cst_12 = arith.constant dense<0.000000e+00> : vector<32x8xf32>
    %20 = tpu.matmul %18, %19, %cst_12 {dimension_numbers = #tpu.dot_dimension_numbers<[1], [0], [0], [1], [0, 0, 1, 1], [], []>} : vector<32x16xf32>, vector<16x8xf32>, vector<32x8xf32> -> vector<32x8xf32>
    %c0_13 = arith.constant 0 : index
    %c0_14 = arith.constant 0 : index
    %21 = vector.load %arg5[%c0_13, %c0_14] : memref<1x8xf32, #tpu.memory_space<vmem>>, vector<1x8xf32>
    %22 = vector.broadcast %21 : vector<1x8xf32> to vector<32x8xf32>
    %23 = arith.addf %20, %22 : vector<32x8xf32>
    %cst_15 = arith.constant 0.000000e+00 : f32
    %24 = vector.broadcast %cst_15 : f32 to vector<32x8xf32>
    %25 = arith.maximumf %23, %24 : vector<32x8xf32>
    %c0_16 = arith.constant 0 : index
    %c0_17 = arith.constant 0 : index
    %26 = vector.load %arg6[%c0_16, %c0_17] : memref<32x8xf32, #tpu.memory_space<vmem>>, vector<32x8xf32>
    tpu.vector_store %arg6[%c0_16, %c0_17], %25 {strides = array<i32>} : memref<32x8xf32, #tpu.memory_space<vmem>>, vector<32x8xf32>,
    return
  }
  func.func @transform_0(%arg0: i32) -> (i32, i32, i32) {
    %c0_i32 = arith.constant 0 : i32
    %c0_i32_0 = arith.constant 0 : i32
    %c0_i32_1 = arith.constant 0 : i32
    return %arg0, %c0_i32, %c0_i32_0 : i32, i32, i32
  }
  func.func @transform_1(%arg0: i32) -> (i32, i32, i32) {
    %c0_i32 = arith.constant 0 : i32
    %c0_i32_0 = arith.constant 0 : i32
    %c0_i32_1 = arith.constant 0 : i32
    return %arg0, %c0_i32, %c0_i32_0 : i32, i32, i32
  }
  func.func @transform_2(%arg0: i32) -> (i32, i32) {
    %c0_i32 = arith.constant 0 : i32
    %c0_i32_0 = arith.constant 0 : i32
    %c0_i32_1 = arith.constant 0 : i32
    return %c0_i32, %c0_i32_0 : i32, i32
  }
  func.func @transform_3(%arg0: i32) -> (i32, i32) {
    %c0_i32 = arith.constant 0 : i32
    %c0_i32_0 = arith.constant 0 : i32
    %c0_i32_1 = arith.constant 0 : i32
    return %c0_i32, %c0_i32_0 : i32, i32
  }
  func.func @transform_4(%arg0: i32) -> (i32, i32) {
    %c0_i32 = arith.constant 0 : i32
    %c0_i32_0 = arith.constant 0 : i32
    %c0_i32_1 = arith.constant 0 : i32
    return %c0_i32, %c0_i32_0 : i32, i32
  }
  func.func @transform_5(%arg0: i32) -> (i32, i32) {
    %c0_i32 = arith.constant 0 : i32
    %c0_i32_0 = arith.constant 0 : i32
    return %arg0, %c0_i32 : i32, i32
  }
}

module attributes {stable_mosaic.version = 11 : i64} {
  func.func @_att_pool_kernel(%arg0: i32, %arg1: memref<32x8x8xf32, #tpu.memory_space<vmem>>, %arg2: memref<32x8x8xf32, #tpu.memory_space<vmem>>, %arg3: memref<8x8xf32, #tpu.memory_space<vmem>>, %arg4: memref<1x8xf32, #tpu.memory_space<vmem>>, %arg5: memref<16x16xf32, #tpu.memory_space<vmem>>, %arg6: memref<16x16xf32, #tpu.memory_space<vmem>>, %arg7: memref<1x16xf32, #tpu.memory_space<vmem>>, %arg8: memref<32x16xf32, #tpu.memory_space<vmem>>) attributes {dimension_semantics = [#tpu.dimension_semantics<parallel>], iteration_bounds = array<i64: 1>, scalar_prefetch = 0 : i64, scratch_operands = 0 : i64, tpu.core_type = #tpu.core_type<tc>, window_params = [{transform_indices = @transform_0, window_bounds = array<i64: 32, 8, 8>}, {transform_indices = @transform_1, window_bounds = array<i64: 32, 8, 8>}, {pipeline_mode = #tpu.pipeline_mode<synchronous>, transform_indices = @transform_2, window_bounds = array<i64: 8, 8>}, {pipeline_mode = #tpu.pipeline_mode<synchronous>, transform_indices = @transform_3, window_bounds = array<i64: 1, 8>}, {pipeline_mode = #tpu.pipeline_mode<synchronous>, transform_indices = @transform_4, window_bounds = array<i64: 16, 16>}, {pipeline_mode = #tpu.pipeline_mode<synchronous>, transform_indices = @transform_5, window_bounds = array<i64: 16, 16>}, {pipeline_mode = #tpu.pipeline_mode<synchronous>, transform_indices = @transform_6, window_bounds = array<i64: 1, 16>}, {transform_indices = @transform_7, window_bounds = array<i64: 32, 16>}]} {
    %c0 = arith.constant 0 : index
    %c0_0 = arith.constant 0 : index
    %c0_1 = arith.constant 0 : index
    %0 = vector.load %arg1[%c0, %c0_0, %c0_1] : memref<32x8x8xf32, #tpu.memory_space<vmem>>, vector<32x8x8xf32>
    %c0_2 = arith.constant 0 : index
    %c0_3 = arith.constant 0 : index
    %c0_4 = arith.constant 0 : index
    %1 = vector.load %arg2[%c0_2, %c0_3, %c0_4] : memref<32x8x8xf32, #tpu.memory_space<vmem>>, vector<32x8x8xf32>
    %2 = vector.shape_cast %1 : vector<32x8x8xf32> to vector<256x8xf32>
    %c0_5 = arith.constant 0 : index
    %c0_6 = arith.constant 0 : index
    %3 = vector.load %arg3[%c0_5, %c0_6] : memref<8x8xf32, #tpu.memory_space<vmem>>, vector<8x8xf32>
    %cst = arith.constant dense<0.000000e+00> : vector<256x8xf32>
    %4 = tpu.matmul %2, %3, %cst {dimension_numbers = #tpu.dot_dimension_numbers<[1], [0], [0], [1], [0, 0, 1, 1], [], []>} : vector<256x8xf32>, vector<8x8xf32>, vector<256x8xf32> -> vector<256x8xf32>
    %c0_7 = arith.constant 0 : index
    %c0_8 = arith.constant 0 : index
    %5 = vector.load %arg4[%c0_7, %c0_8] : memref<1x8xf32, #tpu.memory_space<vmem>>, vector<1x8xf32>
    %6 = vector.broadcast %5 : vector<1x8xf32> to vector<256x8xf32>
    %7 = arith.addf %4, %6 : vector<256x8xf32>
    %cst_9 = arith.constant 0.000000e+00 : f32
    %8 = vector.broadcast %cst_9 : f32 to vector<256x8xf32>
    %9 = arith.maximumf %7, %8 : vector<256x8xf32>
    %10 = vector.shape_cast %9 : vector<256x8xf32> to vector<32x8x8xf32>
    %11 = tpu.concatenate %0, %10 in 2 : vector<32x8x8xf32>, vector<32x8x8xf32> -> vector<32x8x16xf32>
    %12 = vector.shape_cast %11 : vector<32x8x16xf32> to vector<256x16xf32>
    %c0_10 = arith.constant 0 : index
    %c0_11 = arith.constant 0 : index
    %13 = vector.load %arg5[%c0_10, %c0_11] : memref<16x16xf32, #tpu.memory_space<vmem>>, vector<16x16xf32>
    %cst_12 = arith.constant dense<0.000000e+00> : vector<256x16xf32>
    %14 = tpu.matmul %12, %13, %cst_12 {dimension_numbers = #tpu.dot_dimension_numbers<[1], [0], [0], [1], [0, 0, 1, 1], [], []>} : vector<256x16xf32>, vector<16x16xf32>, vector<256x16xf32> -> vector<256x16xf32>
    %15 = vector.shape_cast %14 : vector<256x16xf32> to vector<32x8x16xf32>
    %cst_13 = arith.constant dense<0xFF800000> : vector<32x16xf32>
    %16 = vector.multi_reduction <maximumf>, %15, %cst_13 [1] : vector<32x8x16xf32> to vector<32x16xf32>
    %17 = vector.shape_cast %16 : vector<32x16xf32> to vector<32x1x16xf32>
    %18 = vector.broadcast %17 : vector<32x1x16xf32> to vector<32x8x16xf32>
    %19 = arith.subf %15, %18 : vector<32x8x16xf32>
    %20 = math.exp %19 : vector<32x8x16xf32>
    %cst_14 = arith.constant dense<0.000000e+00> : vector<32x16xf32>
    %21 = vector.multi_reduction <add>, %20, %cst_14 [1] : vector<32x8x16xf32> to vector<32x16xf32>
    %22 = vector.shape_cast %21 : vector<32x16xf32> to vector<32x1x16xf32>
    %23 = tpu.reciprocal %22 {approx = true} : vector<32x1x16xf32> -> vector<32x1x16xf32>
    %24 = vector.broadcast %23 : vector<32x1x16xf32> to vector<32x8x16xf32>
    %25 = arith.mulf %20, %24 : vector<32x8x16xf32>
    %26 = arith.mulf %11, %25 : vector<32x8x16xf32>
    %cst_15 = arith.constant dense<0.000000e+00> : vector<32x16xf32>
    %27 = vector.multi_reduction <add>, %26, %cst_15 [1] : vector<32x8x16xf32> to vector<32x16xf32>
    %c0_16 = arith.constant 0 : index
    %c0_17 = arith.constant 0 : index
    %28 = vector.load %arg6[%c0_16, %c0_17] : memref<16x16xf32, #tpu.memory_space<vmem>>, vector<16x16xf32>
    %cst_18 = arith.constant dense<0.000000e+00> : vector<32x16xf32>
    %29 = tpu.matmul %27, %28, %cst_18 {dimension_numbers = #tpu.dot_dimension_numbers<[1], [0], [0], [1], [0, 0, 1, 1], [], []>} : vector<32x16xf32>, vector<16x16xf32>, vector<32x16xf32> -> vector<32x16xf32>
    %c0_19 = arith.constant 0 : index
    %c0_20 = arith.constant 0 : index
    %30 = vector.load %arg7[%c0_19, %c0_20] : memref<1x16xf32, #tpu.memory_space<vmem>>, vector<1x16xf32>
    %31 = vector.broadcast %30 : vector<1x16xf32> to vector<32x16xf32>
    %32 = arith.addf %29, %31 : vector<32x16xf32>
    %cst_21 = arith.constant 0.000000e+00 : f32
    %33 = vector.broadcast %cst_21 : f32 to vector<32x16xf32>
    %34 = arith.maximumf %32, %33 : vector<32x16xf32>
    %c0_22 = arith.constant 0 : index
    %c0_23 = arith.constant 0 : index
    %35 = vector.load %arg8[%c0_22, %c0_23] : memref<32x16xf32, #tpu.memory_space<vmem>>, vector<32x16xf32>
    tpu.vector_store %arg8[%c0_22, %c0_23], %34 {strides = array<i32>} : memref<32x16xf32, #tpu.memory_space<vmem>>, vector<32x16xf32>,
    return
  }
  func.func @transform_0(%arg0: i32) -> (i32, i32, i32) {
    %c0_i32 = arith.constant 0 : i32
    %c0_i32_0 = arith.constant 0 : i32
    %c0_i32_1 = arith.constant 0 : i32
    return %arg0, %c0_i32, %c0_i32_0 : i32, i32, i32
  }
  func.func @transform_1(%arg0: i32) -> (i32, i32, i32) {
    %c0_i32 = arith.constant 0 : i32
    %c0_i32_0 = arith.constant 0 : i32
    %c0_i32_1 = arith.constant 0 : i32
    return %arg0, %c0_i32, %c0_i32_0 : i32, i32, i32
  }
  func.func @transform_2(%arg0: i32) -> (i32, i32) {
    %c0_i32 = arith.constant 0 : i32
    %c0_i32_0 = arith.constant 0 : i32
    %c0_i32_1 = arith.constant 0 : i32
    return %c0_i32, %c0_i32_0 : i32, i32
  }
  func.func @transform_3(%arg0: i32) -> (i32, i32) {
    %c0_i32 = arith.constant 0 : i32
    %c0_i32_0 = arith.constant 0 : i32
    %c0_i32_1 = arith.constant 0 : i32
    return %c0_i32, %c0_i32_0 : i32, i32
  }
  func.func @transform_4(%arg0: i32) -> (i32, i32) {
    %c0_i32 = arith.constant 0 : i32
    %c0_i32_0 = arith.constant 0 : i32
    %c0_i32_1 = arith.constant 0 : i32
    return %c0_i32, %c0_i32_0 : i32, i32
  }
  func.func @transform_5(%arg0: i32) -> (i32, i32) {
    %c0_i32 = arith.constant 0 : i32
    %c0_i32_0 = arith.constant 0 : i32
    %c0_i32_1 = arith.constant 0 : i32
    return %c0_i32, %c0_i32_0 : i32, i32
  }
  func.func @transform_6(%arg0: i32) -> (i32, i32) {
    %c0_i32 = arith.constant 0 : i32
    %c0_i32_0 = arith.constant 0 : i32
    %c0_i32_1 = arith.constant 0 : i32
    return %c0_i32, %c0_i32_0 : i32, i32
  }
  func.func @transform_7(%arg0: i32) -> (i32, i32) {
    %c0_i32 = arith.constant 0 : i32
    %c0_i32_0 = arith.constant 0 : i32
    return %arg0, %c0_i32 : i32, i32
  }
}

module attributes {stable_mosaic.version = 11 : i64} {
  func.func @_out_kernel(%arg0: i32, %arg1: memref<32x16xf32, #tpu.memory_space<vmem>>, %arg2: memref<16x32xf32, #tpu.memory_space<vmem>>, %arg3: memref<1x32xf32, #tpu.memory_space<vmem>>, %arg4: memref<32x8xf32, #tpu.memory_space<vmem>>, %arg5: memref<8x32xf32, #tpu.memory_space<vmem>>, %arg6: memref<1x32xf32, #tpu.memory_space<vmem>>, %arg7: memref<32x32xf32, #tpu.memory_space<vmem>>) attributes {dimension_semantics = [#tpu.dimension_semantics<parallel>], iteration_bounds = array<i64: 1>, scalar_prefetch = 0 : i64, scratch_operands = 0 : i64, tpu.core_type = #tpu.core_type<tc>, window_params = [{transform_indices = @transform_0, window_bounds = array<i64: 32, 16>}, {pipeline_mode = #tpu.pipeline_mode<synchronous>, transform_indices = @transform_1, window_bounds = array<i64: 16, 32>}, {pipeline_mode = #tpu.pipeline_mode<synchronous>, transform_indices = @transform_2, window_bounds = array<i64: 1, 32>}, {transform_indices = @transform_3, window_bounds = array<i64: 32, 8>}, {pipeline_mode = #tpu.pipeline_mode<synchronous>, transform_indices = @transform_4, window_bounds = array<i64: 8, 32>}, {pipeline_mode = #tpu.pipeline_mode<synchronous>, transform_indices = @transform_5, window_bounds = array<i64: 1, 32>}, {transform_indices = @transform_6, window_bounds = array<i64: 32, 32>}]} {
    %c0 = arith.constant 0 : index
    %c0_0 = arith.constant 0 : index
    %0 = vector.load %arg1[%c0, %c0_0] : memref<32x16xf32, #tpu.memory_space<vmem>>, vector<32x16xf32>
    %c0_1 = arith.constant 0 : index
    %c0_2 = arith.constant 0 : index
    %1 = vector.load %arg2[%c0_1, %c0_2] : memref<16x32xf32, #tpu.memory_space<vmem>>, vector<16x32xf32>
    %cst = arith.constant dense<0.000000e+00> : vector<32x32xf32>
    %2 = tpu.matmul %0, %1, %cst {dimension_numbers = #tpu.dot_dimension_numbers<[1], [0], [0], [1], [0, 0, 1, 1], [], []>} : vector<32x16xf32>, vector<16x32xf32>, vector<32x32xf32> -> vector<32x32xf32>
    %c0_3 = arith.constant 0 : index
    %c0_4 = arith.constant 0 : index
    %3 = vector.load %arg3[%c0_3, %c0_4] : memref<1x32xf32, #tpu.memory_space<vmem>>, vector<1x32xf32>
    %4 = vector.broadcast %3 : vector<1x32xf32> to vector<32x32xf32>
    %5 = arith.addf %2, %4 : vector<32x32xf32>
    %c0_5 = arith.constant 0 : index
    %c0_6 = arith.constant 0 : index
    %6 = vector.load %arg4[%c0_5, %c0_6] : memref<32x8xf32, #tpu.memory_space<vmem>>, vector<32x8xf32>
    %c0_7 = arith.constant 0 : index
    %c0_8 = arith.constant 0 : index
    %7 = vector.load %arg5[%c0_7, %c0_8] : memref<8x32xf32, #tpu.memory_space<vmem>>, vector<8x32xf32>
    %cst_9 = arith.constant dense<0.000000e+00> : vector<32x32xf32>
    %8 = tpu.matmul %6, %7, %cst_9 {dimension_numbers = #tpu.dot_dimension_numbers<[1], [0], [0], [1], [0, 0, 1, 1], [], []>} : vector<32x8xf32>, vector<8x32xf32>, vector<32x32xf32> -> vector<32x32xf32>
    %9 = arith.addf %5, %8 : vector<32x32xf32>
    %c0_10 = arith.constant 0 : index
    %c0_11 = arith.constant 0 : index
    %10 = vector.load %arg6[%c0_10, %c0_11] : memref<1x32xf32, #tpu.memory_space<vmem>>, vector<1x32xf32>
    %11 = vector.broadcast %10 : vector<1x32xf32> to vector<32x32xf32>
    %12 = arith.addf %9, %11 : vector<32x32xf32>
    %cst_12 = arith.constant 0.000000e+00 : f32
    %13 = vector.broadcast %cst_12 : f32 to vector<32x32xf32>
    %14 = arith.cmpf ogt, %12, %13 : vector<32x32xf32>
    %cst_13 = arith.constant 2.000000e-01 : f32
    %15 = vector.broadcast %cst_13 : f32 to vector<32x32xf32>
    %16 = arith.mulf %15, %12 : vector<32x32xf32>
    %17 = arith.select %14, %12, %16 : vector<32x32xi1>, vector<32x32xf32>
    %c0_14 = arith.constant 0 : index
    %c0_15 = arith.constant 0 : index
    %18 = vector.load %arg7[%c0_14, %c0_15] : memref<32x32xf32, #tpu.memory_space<vmem>>, vector<32x32xf32>
    tpu.vector_store %arg7[%c0_14, %c0_15], %17 {strides = array<i32>} : memref<32x32xf32, #tpu.memory_space<vmem>>, vector<32x32xf32>,
    return
  }
  func.func @transform_0(%arg0: i32) -> (i32, i32) {
    %c0_i32 = arith.constant 0 : i32
    %c0_i32_0 = arith.constant 0 : i32
    return %arg0, %c0_i32 : i32, i32
  }
  func.func @transform_1(%arg0: i32) -> (i32, i32) {
    %c0_i32 = arith.constant 0 : i32
    %c0_i32_0 = arith.constant 0 : i32
    %c0_i32_1 = arith.constant 0 : i32
    return %c0_i32, %c0_i32_0 : i32, i32
  }
  func.func @transform_2(%arg0: i32) -> (i32, i32) {
    %c0_i32 = arith.constant 0 : i32
    %c0_i32_0 = arith.constant 0 : i32
    %c0_i32_1 = arith.constant 0 : i32
    return %c0_i32, %c0_i32_0 : i32, i32
  }
  func.func @transform_3(%arg0: i32) -> (i32, i32) {
    %c0_i32 = arith.constant 0 : i32
    %c0_i32_0 = arith.constant 0 : i32
    return %arg0, %c0_i32 : i32, i32
  }
  func.func @transform_4(%arg0: i32) -> (i32, i32) {
    %c0_i32 = arith.constant 0 : i32
    %c0_i32_0 = arith.constant 0 : i32
    %c0_i32_1 = arith.constant 0 : i32
    return %c0_i32, %c0_i32_0 : i32, i32
  }
  func.func @transform_5(%arg0: i32) -> (i32, i32) {
    %c0_i32 = arith.constant 0 : i32
    %c0_i32_0 = arith.constant 0 : i32
    %c0_i32_1 = arith.constant 0 : i32
    return %c0_i32, %c0_i32_0 : i32, i32
  }
  func.func @transform_6(%arg0: i32) -> (i32, i32) {
    %c0_i32 = arith.constant 0 : i32
    %c0_i32_0 = arith.constant 0 : i32
    return %arg0, %c0_i32 : i32, i32
  }
}

</mosaic_0001>

<llo_original>
// kernel: lfa_forward.5
$region0: #{lfa_forward.5}
  #allocation0 [shape = 'u32[]', space=smem, size = 0x4, offset = 0x4, fixed_abs, tag = 'smem constant byte address 0x4 - core index']
  #allocation1 [shape = 'u32[144,128]{1,0:T(1,128)}', space=vmem, size = 0x12000, scoped, tag = 'internal scratch']
  %s0 = inlined_call_operand.vmem [shape: f32[32,8], index: 0, kind: input, shape index: {}]
  %s1 = inlined_call_operand.vmem [shape: f32[8,8], index: 1, kind: input, shape index: {}]
  %s2 = inlined_call_operand.vmem [shape: f32[1,8], index: 2, kind: input, shape index: {}]
  %s3 = inlined_call_operand.vmem [shape: f32[32,8], index: 3, kind: output, shape index: {}]
  %s4 = sld [smem:[#allocation0]]
  $region22: #{lfa_forward.5} parent=0
    _
  %s6 = ssub.s32 1, %s4
  %s7 = scalar_select 0, %s6, %s4
  // Predicated region
  $region2: #{lfa_forward.5} parent=0 // pred_check
    _
  $region3: #{lfa_forward.5} parent=0 // pred_check_branch
    %9 = sbr.rel (0) target = $region5
  $region4: #{lfa_forward.5} parent=0 // pred_region
    _
  $region5: #{lfa_forward.5} parent=0 // pred_fallthru
    _
  // Predicated region
  $region6: #{lfa_forward.5} parent=0 // pred_check
    _
  $region7: #{lfa_forward.5} parent=0 // pred_check_branch
    %11 = sbr.rel (0) target = $region9
  $region8: #{lfa_forward.5} parent=0 // pred_region
    _
  $region9: #{lfa_forward.5} parent=0 // pred_fallthru
    _
  // Predicated region
  $region10: #{lfa_forward.5} parent=0 // pred_check
    _
  $region11: #{lfa_forward.5} parent=0 // pred_check_branch
    %13 = sbr.rel (0) target = $region13
  $region12: #{lfa_forward.5} parent=0 // pred_region
    _
  $region13: #{lfa_forward.5} parent=0 // pred_fallthru
    _
  %v14 = vld [vmem:[%s0] sm:$0xff]
  %v15 = vld [vmem:[%s0 + $0x8] sm:$0xff]
  %v16 = vld [vmem:[%s0 + $0x10] sm:$0xff]
  %v17 = vld [vmem:[%s0 + $0x18] sm:$0xff]
  %v18 = vld [vmem:[%s1] sm:$0xff]
  %v19 = vld [vmem:[%s2] sm:$0x1]
  %v21 = vlaneseq
  %v22 = vshrl.u32 %v21, 7
  %v23 = vsub.s32 0, %v22
  %v24 = vrot.slane %v19, %v23
  %vm26 = vcmask 64512
  %v28 = vsel %vm26, %v14, 0
  %v31 = vsel %vm26, %v15, 0
  %v34 = vsel %vm26, %v16, 0
  %v37 = vsel %vm26, %v17, 0
  %39 = vmatprep.subr.mxu0 0.0
  %40 = vmatpush1.msra.mxu0 0.0
  %41 = vmatprep.subr.mxu0 0.0
  %42 = vmatpush1.msra.mxu0 0.0
  %43 = vmatprep.subr.mxu0 0.0
  %44 = vmatpush1.msra.mxu0 0.0
  %45 = vmatprep.subr.mxu0 0.0
  %46 = vmatpush1.msra.mxu0 0.0
  %47 = vmatprep.subr.mxu0 0.0
  %48 = vmatpush1.msra.mxu0 0.0
  %49 = vmatprep.subr.mxu0 0.0
  %50 = vmatpush1.msra.mxu0 0.0
  %51 = vmatprep.subr.mxu0 0.0
  %52 = vmatpush1.msra.mxu0 0.0
  %53 = vmatprep.subr.mxu0 0.0
  %54 = vmatpush1.msra.mxu0 0.0
  %55 = vmatprep.subr.mxu0 0.0
  %56 = vmatpush1.msra.mxu0 0.0
  %57 = vmatprep.subr.mxu0 0.0
  %58 = vmatpush1.msra.mxu0 0.0
  %59 = vmatprep.subr.mxu0 0.0
  %60 = vmatpush1.msra.mxu0 0.0
  %61 = vmatprep.subr.mxu0 0.0
  %62 = vmatpush1.msra.mxu0 0.0
  %63 = vmatprep.subr.mxu0 0.0
  %64 = vmatpush1.msra.mxu0 0.0
  %65 = vmatprep.subr.mxu0 0.0
  %66 = vmatpush1.msra.mxu0 0.0
  %67 = vmatprep.subr.mxu0 0.0
  %68 = vmatpush1.msra.mxu0 0.0
  %69 = vmatprep.subr.mxu0 0.0
  %70 = vmatpush1.msra.mxu0 %v18
  %71 = vmatprep.subr.mxu0 0.0
  %72 = vmatpush2.msra.mxu0 0.0
  %73 = vmatprep.subr.mxu0 0.0
  %74 = vmatpush2.msra.mxu0 0.0
  %75 = vmatprep.subr.mxu0 0.0
  %76 = vmatpush2.msra.mxu0 0.0
  %77 = vmatprep.subr.mxu0 0.0
  %78 = vmatpush2.msra.mxu0 0.0
  %79 = vmatprep.subr.mxu0 0.0
  %80 = vmatpush2.msra.mxu0 0.0
  %81 = vmatprep.subr.mxu0 0.0
  %82 = vmatpush2.msra.mxu0 0.0
  %83 = vmatprep.subr.mxu0 0.0
  %84 = vmatpush2.msra.mxu0 0.0
  %85 = vmatprep.subr.mxu0 0.0
  %86 = vmatpush2.msra.mxu0 0.0
  %87 = vmatprep.subr.mxu0 0.0
  %88 = vmatpush2.msra.mxu0 0.0
  %89 = vmatprep.subr.mxu0 0.0
  %90 = vmatpush2.msra.mxu0 0.0
  %91 = vmatprep.subr.mxu0 0.0
  %92 = vmatpush2.msra.mxu0 0.0
  %93 = vmatprep.subr.mxu0 0.0
  %94 = vmatpush2.msra.mxu0 0.0
  %95 = vmatprep.subr.mxu0 0.0
  %96 = vmatpush2.msra.mxu0 0.0
  %97 = vmatprep.subr.mxu0 0.0
  %98 = vmatpush2.msra.mxu0 0.0
  %99 = vmatprep.subr.mxu0 0.0
  %100 = vmatpush2.msra.mxu0 0.0
  %101 = vmatprep.subr.mxu0 0.0
  %102 = vmatpush2.msra.mxu0 0.0
  %103 = vmatprep.mubr.f32.mxu0 0.0
  %104 = vmatmul.mubr.f32.gmra.mxu0 %v28
  %v105 = vpop.f32.mrf.mxu0
  %v106 = vadd.f32 %v24, %v105
  %v107 = vpop.f32.mrf.mxu0
  %108 = vmatprep.mubr.f32.mxu0 0.0
  %109 = vmatmul.mubr.f32.gmra.mxu0 %v31
  %v110 = vpop.f32.mrf.mxu0
  %v111 = vadd.f32 %v24, %v110
  %v112 = vpop.f32.mrf.mxu0
  %113 = vmatprep.mubr.f32.mxu0 0.0
  %114 = vmatmul.mubr.f32.gmra.mxu0 %v34
  %v115 = vpop.f32.mrf.mxu0
  %v116 = vadd.f32 %v24, %v115
  %v117 = vpop.f32.mrf.mxu0
  %118 = vmatprep.mubr.f32.mxu0 0.0
  %119 = vmatmul.mubr.f32.gmra.mxu0 %v37
  %v120 = vpop.f32.mrf.mxu0
  %v121 = vadd.f32 %v24, %v120
  %v122 = vpop.f32.mrf.mxu0
  %123 = vdwg.mxu0
  %v124 = vmax.f32 %v106, 0.0
  %v125 = vmax.f32 %v111, 0.0
  %v126 = vmax.f32 %v116, 0.0
  %v127 = vmax.f32 %v121, 0.0
  %128 = vst.msk [vmem:[%s3] sm:$0xff] %vm26, %v124
  %129 = vst.msk [vmem:[%s3 + $0x8] sm:$0xff] %vm26, %v125
  %130 = vst.msk [vmem:[%s3 + $0x10] sm:$0xff] %vm26, %v126
  %131 = vst.msk [vmem:[%s3 + $0x18] sm:$0xff] %vm26, %v127
  // Predicated region
  $region14: #{lfa_forward.5} parent=0 // pred_check
    _
  $region15: #{lfa_forward.5} parent=0 // pred_check_branch
    %133 = sbr.rel (0) target = $region17
  $region16: #{lfa_forward.5} parent=0 // pred_region
    _
  $region17: #{lfa_forward.5} parent=0 // pred_fallthru
    _
  // Predicated region
  $region18: #{lfa_forward.5} parent=0 // pred_check
    _
  $region19: #{lfa_forward.5} parent=0 // pred_check_branch
    %135 = sbr.rel (0) target = $region21
  $region20: #{lfa_forward.5} parent=0 // pred_region
    _
  $region21: #{lfa_forward.5} parent=0 // pred_fallthru
    _

// kernel: lfa_forward.6
$region0: #{lfa_forward.6}
  #allocation0 [shape = 'u32[]', space=smem, size = 0x4, offset = 0x4, fixed_abs, tag = 'smem constant byte address 0x4 - core index']
  #allocation1 [shape = 'u32[144,128]{1,0:T(1,128)}', space=vmem, size = 0x12000, scoped, tag = 'internal scratch']
  %s0 = inlined_call_operand.vmem [shape: f32[32,1,3], index: 0, kind: input, shape index: {}]
  %s1 = inlined_call_operand.vmem [shape: f32[32,8,3], index: 1, kind: input, shape index: {}]
  %s2 = inlined_call_operand.vmem [shape: f32[10,8], index: 2, kind: input, shape index: {}]
  %s3 = inlined_call_operand.vmem [shape: f32[1,8], index: 3, kind: input, shape index: {}]
  %s4 = inlined_call_operand.vmem [shape: f32[32,8,8], index: 4, kind: output, shape index: {}]
  %s5 = sld [smem:[#allocation0]]
  $region26: #{lfa_forward.6} parent=0
    _
  %s7 = ssub.s32 1, %s5
  %s8 = scalar_select 0, %s7, %s5
  // Predicated region
  $region2: #{lfa_forward.6} parent=0 // pred_check
    _
  $region3: #{lfa_forward.6} parent=0 // pred_check_branch
    %10 = sbr.rel (0) target = $region5
  $region4: #{lfa_forward.6} parent=0 // pred_region
    _
  $region5: #{lfa_forward.6} parent=0 // pred_fallthru
    _
  // Predicated region
  $region6: #{lfa_forward.6} parent=0 // pred_check
    _
  $region7: #{lfa_forward.6} parent=0 // pred_check_branch
    %12 = sbr.rel (0) target = $region9
  $region8: #{lfa_forward.6} parent=0 // pred_region
    _
  $region9: #{lfa_forward.6} parent=0 // pred_fallthru
    _
  // Predicated region
  $region10: #{lfa_forward.6} parent=0 // pred_check
    _
  $region11: #{lfa_forward.6} parent=0 // pred_check_branch
    %14 = sbr.rel (0) target = $region13
  $region12: #{lfa_forward.6} parent=0 // pred_region
    _
  $region13: #{lfa_forward.6} parent=0 // pred_fallthru
    _
  // Predicated region
  $region14: #{lfa_forward.6} parent=0 // pred_check
    _
  $region15: #{lfa_forward.6} parent=0 // pred_check_branch
    %16 = sbr.rel (0) target = $region17
  $region16: #{lfa_forward.6} parent=0 // pred_region
    _
  $region17: #{lfa_forward.6} parent=0 // pred_fallthru
    _
  %v17 = vld [vmem:[%s1] sm:$0xff]
  %v18 = vld [vmem:[%s1 + $0x8] sm:$0xff]
  %v19 = vld [vmem:[%s1 + $0x10] sm:$0xff]
  %v20 = vld [vmem:[%s1 + $0x18] sm:$0xff]
  %v21 = vld [vmem:[%s1 + $0x20] sm:$0xff]
  %v22 = vld [vmem:[%s1 + $0x28] sm:$0xff]
  %v23 = vld [vmem:[%s1 + $0x30] sm:$0xff]
  %v24 = vld [vmem:[%s1 + $0x38] sm:$0xff]
  %v25 = vld [vmem:[%s1 + $0x40] sm:$0xff]
  %v26 = vld [vmem:[%s1 + $0x48] sm:$0xff]
  %v27 = vld [vmem:[%s1 + $0x50] sm:$0xff]
  %v28 = vld [vmem:[%s1 + $0x58] sm:$0xff]
  %v29 = vld [vmem:[%s1 + $0x60] sm:$0xff]
  %v30 = vld [vmem:[%s1 + $0x68] sm:$0xff]
  %v31 = vld [vmem:[%s1 + $0x70] sm:$0xff]
  %v32 = vld [vmem:[%s1 + $0x78] sm:$0xff]
  %v33 = vld [vmem:[%s1 + $0x80] sm:$0xff]
  %v34 = vld [vmem:[%s1 + $0x88] sm:$0xff]
  %v35 = vld [vmem:[%s1 + $0x90] sm:$0xff]
  %v36 = vld [vmem:[%s1 + $0x98] sm:$0xff]
  %v37 = vld [vmem:[%s1 + $0xa0] sm:$0xff]
  %v38 = vld [vmem:[%s1 + $0xa8] sm:$0xff]
  %v39 = vld [vmem:[%s1 + $0xb0] sm:$0xff]
  %v40 = vld [vmem:[%s1 + $0xb8] sm:$0xff]
  %v41 = vld [vmem:[%s1 + $0xc0] sm:$0xff]
  %v42 = vld [vmem:[%s1 + $0xc8] sm:$0xff]
  %v43 = vld [vmem:[%s1 + $0xd0] sm:$0xff]
  %v44 = vld [vmem:[%s1 + $0xd8] sm:$0xff]
  %v45 = vld [vmem:[%s1 + $0xe0] sm:$0xff]
  %v46 = vld [vmem:[%s1 + $0xe8] sm:$0xff]
  %v47 = vld [vmem:[%s1 + $0xf0] sm:$0xff]
  %v48 = vld [vmem:[%s1 + $0xf8] sm:$0xff]
  %v49 = vld [vmem:[%s0] sm:$0x1]
  %v50 = vld [vmem:[%s0 + $0x1] sm:$0x1]
  %v51 = vld [vmem:[%s0 + $0x2] sm:$0x1]
  %v52 = vld [vmem:[%s0 + $0x3] sm:$0x1]
  %v53 = vld [vmem:[%s0 + $0x4] sm:$0x1]
  %v54 = vld [vmem:[%s0 + $0x5] sm:$0x1]
  %v55 = vld [vmem:[%s0 + $0x6] sm:$0x1]
  %v56 = vld [vmem:[%s0 + $0x7] sm:$0x1]
  %v57 = vld [vmem:[%s0 + $0x8] sm:$0x1]
  %v58 = vld [vmem:[%s0 + $0x9] sm:$0x1]
  %v59 = vld [vmem:[%s0 + $0xa] sm:$0x1]
  %v60 = vld [vmem:[%s0 + $0xb] sm:$0x1]
  %v61 = vld [vmem:[%s0 + $0xc] sm:$0x1]
  %v62 = vld [vmem:[%s0 + $0xd] sm:$0x1]
  %v63 = vld [vmem:[%s0 + $0xe] sm:$0x1]
  %v64 = vld [vmem:[%s0 + $0xf] sm:$0x1]
  %v65 = vld [vmem:[%s0 + $0x10] sm:$0x1]
  %v66 = vld [vmem:[%s0 + $0x11] sm:$0x1]
  %v67 = vld [vmem:[%s0 + $0x12] sm:$0x1]
  %v68 = vld [vmem:[%s0 + $0x13] sm:$0x1]
  %v69 = vld [vmem:[%s0 + $0x14] sm:$0x1]
  %v70 = vld [vmem:[%s0 + $0x15] sm:$0x1]
  %v71 = vld [vmem:[%s0 + $0x16] sm:$0x1]
  %v72 = vld [vmem:[%s0 + $0x17] sm:$0x1]
  %v73 = vld [vmem:[%s0 + $0x18] sm:$0x1]
  %v74 = vld [vmem:[%s0 + $0x19] sm:$0x1]
  %v75 = vld [vmem:[%s0 + $0x1a] sm:$0x1]
  %v76 = vld [vmem:[%s0 + $0x1b] sm:$0x1]
  %v77 = vld [vmem:[%s0 + $0x1c] sm:$0x1]
  %v78 = vld [vmem:[%s0 + $0x1d] sm:$0x1]
  %v79 = vld [vmem:[%s0 + $0x1e] sm:$0x1]
  %v80 = vld [vmem:[%s0 + $0x1f] sm:$0x1]
  %v113 = vlaneseq
  %v114 = vshrl.u32 %v113, 7
  %v115 = vsub.s32 0, %v114
  %v116 = vrot.slane %v49, %v115
  %v117 = vlaneseq
  %v118 = vshrl.u32 %v117, 7
  %v119 = vsub.s32 0, %v118
  %v120 = vrot.slane %v50, %v119
  %v121 = vlaneseq
  %v122 = vshrl.u32 %v121, 7
  %v123 = vsub.s32 0, %v122
  %v124 = vrot.slane %v51, %v123
  %v125 = vlaneseq
  %v126 = vshrl.u32 %v125, 7
  %v127 = vsub.s32 0, %v126
  %v128 = vrot.slane %v52, %v127
  %v129 = vlaneseq
  %v130 = vshrl.u32 %v129, 7
  %v131 = vsub.s32 0, %v130
  %v132 = vrot.slane %v53, %v131
  %v133 = vlaneseq
  %v134 = vshrl.u32 %v133, 7
  %v135 = vsub.s32 0, %v134
  %v136 = vrot.slane %v54, %v135
  %v137 = vlaneseq
  %v138 = vshrl.u32 %v137, 7
  %v139 = vsub.s32 0, %v138
  %v140 = vrot.slane %v55, %v139
  %v141 = vlaneseq
  %v142 = vshrl.u32 %v141, 7
  %v143 = vsub.s32 0, %v142
  %v144 = vrot.slane %v56, %v143
  %v145 = vlaneseq
  %v146 = vshrl.u32 %v145, 7
  %v147 = vsub.s32 0, %v146
  %v148 = vrot.slane %v57, %v147
  %v149 = vlaneseq
  %v150 = vshrl.u32 %v149, 7
  %v151 = vsub.s32 0, %v150
  %v152 = vrot.slane %v58, %v151
  %v153 = vlaneseq
  %v154 = vshrl.u32 %v153, 7
  %v155 = vsub.s32 0, %v154
  %v156 = vrot.slane %v59, %v155
  %v157 = vlaneseq
  %v158 = vshrl.u32 %v157, 7
  %v159 = vsub.s32 0, %v158
  %v160 = vrot.slane %v60, %v159
  %v161 = vlaneseq
  %v162 = vshrl.u32 %v161, 7
  %v163 = vsub.s32 0, %v162
  %v164 = vrot.slane %v61, %v163
  %v165 = vlaneseq
  %v166 = vshrl.u32 %v165, 7
  %v167 = vsub.s32 0, %v166
  %v168 = vrot.slane %v62, %v167
  %v169 = vlaneseq
  %v170 = vshrl.u32 %v169, 7
  %v171 = vsub.s32 0, %v170
  %v172 = vrot.slane %v63, %v171
  %v173 = vlaneseq
  %v174 = vshrl.u32 %v173, 7
  %v175 = vsub.s32 0, %v174
  %v176 = vrot.slane %v64, %v175
  %v177 = vlaneseq
  %v178 = vshrl.u32 %v177, 7
  %v179 = vsub.s32 0, %v178
  %v180 = vrot.slane %v65, %v179
  %v181 = vlaneseq
  %v182 = vshrl.u32 %v181, 7
  %v183 = vsub.s32 0, %v182
  %v184 = vrot.slane %v66, %v183
  %v185 = vlaneseq
  %v186 = vshrl.u32 %v185, 7
  %v187 = vsub.s32 0, %v186
  %v188 = vrot.slane %v67, %v187
  %v189 = vlaneseq
  %v190 = vshrl.u32 %v189, 7
  %v191 = vsub.s32 0, %v190
  %v192 = vrot.slane %v68, %v191
  %v193 = vlaneseq
  %v194 = vshrl.u32 %v193, 7
  %v195 = vsub.s32 0, %v194
  %v196 = vrot.slane %v69, %v195
  %v197 = vlaneseq
  %v198 = vshrl.u32 %v197, 7
  %v199 = vsub.s32 0, %v198
  %v200 = vrot.slane %v70, %v199
  %v201 = vlaneseq
  %v202 = vshrl.u32 %v201, 7
  %v203 = vsub.s32 0, %v202
  %v204 = vrot.slane %v71, %v203
  %v205 = vlaneseq
  %v206 = vshrl.u32 %v205, 7
  %v207 = vsub.s32 0, %v206
  %v208 = vrot.slane %v72, %v207
  %v209 = vlaneseq
  %v210 = vshrl.u32 %v209, 7
  %v211 = vsub.s32 0, %v210
  %v212 = vrot.slane %v73, %v211
  %v213 = vlaneseq
  %v214 = vshrl.u32 %v213, 7
  %v215 = vsub.s32 0, %v214
  %v216 = vrot.slane %v74, %v215
  %v217 = vlaneseq
  %v218 = vshrl.u32 %v217, 7
  %v219 = vsub.s32 0, %v218
  %v220 = vrot.slane %v75, %v219
  %v221 = vlaneseq
  %v222 = vshrl.u32 %v221, 7
  %v223 = vsub.s32 0, %v222
  %v224 = vrot.slane %v76, %v223
  %v225 = vlaneseq
  %v226 = vshrl.u32 %v225, 7
  %v227 = vsub.s32 0, %v226
  %v228 = vrot.slane %v77, %v227
  %v229 = vlaneseq
  %v230 = vshrl.u32 %v229, 7
  %v231 = vsub.s32 0, %v230
  %v232 = vrot.slane %v78, %v231
  %v233 = vlaneseq
  %v234 = vshrl.u32 %v233, 7
  %v235 = vsub.s32 0, %v234
  %v236 = vrot.slane %v79, %v235
  %v237 = vlaneseq
  %v238 = vshrl.u32 %v237, 7
  %v239 = vsub.s32 0, %v238
  %v240 = vrot.slane %v80, %v239
  %v273 = vsub.f32 %v116, %v17
  %v274 = vsub.f32 %v120, %v18
  %v275 = vsub.f32 %v124, %v19
  %v276 = vsub.f32 %v128, %v20
  %v277 = vsub.f32 %v132, %v21
  %v278 = vsub.f32 %v136, %v22
  %v279 = vsub.f32 %v140, %v23
  %v280 = vsub.f32 %v144, %v24
  %v281 = vsub.f32 %v148, %v25
  %v282 = vsub.f32 %v152, %v26
  %v283 = vsub.f32 %v156, %v27
  %v284 = vsub.f32 %v160, %v28
  %v285 = vsub.f32 %v164, %v29
  %v286 = vsub.f32 %v168, %v30
  %v287 = vsub.f32 %v172, %v31
  %v288 = vsub.f32 %v176, %v32
  %v289 = vsub.f32 %v180, %v33
  %v290 = vsub.f32 %v184, %v34
  %v291 = vsub.f32 %v188, %v35
  %v292 = vsub.f32 %v192, %v36
  %v293 = vsub.f32 %v196, %v37
  %v294 = vsub.f32 %v200, %v38
  %v295 = vsub.f32 %v204, %v39
  %v296 = vsub.f32 %v208, %v40
  %v297 = vsub.f32 %v212, %v41
  %v298 = vsub.f32 %v216, %v42
  %v299 = vsub.f32 %v220, %v43
  %v300 = vsub.f32 %v224, %v44
  %v301 = vsub.f32 %v228, %v45
  %v302 = vsub.f32 %v232, %v46
  %v303 = vsub.f32 %v236, %v47
  %v304 = vsub.f32 %v240, %v48
  %v305 = vmul.f32 %v273, %v273
  %v306 = vmul.f32 %v274, %v274
  %v307 = vmul.f32 %v275, %v275
  %v308 = vmul.f32 %v276, %v276
  %v309 = vmul.f32 %v277, %v277
  %v310 = vmul.f32 %v278, %v278
  %v311 = vmul.f32 %v279, %v279
  %v312 = vmul.f32 %v280, %v280
  %v313 = vmul.f32 %v281, %v281
  %v314 = vmul.f32 %v282, %v282
  %v315 = vmul.f32 %v283, %v283
  %v316 = vmul.f32 %v284, %v284
  %v317 = vmul.f32 %v285, %v285
  %v318 = vmul.f32 %v286, %v286
  %v319 = vmul.f32 %v287, %v287
  %v320 = vmul.f32 %v288, %v288
  %v321 = vmul.f32 %v289, %v289
  %v322 = vmul.f32 %v290, %v290
  %v323 = vmul.f32 %v291, %v291
  %v324 = vmul.f32 %v292, %v292
  %v325 = vmul.f32 %v293, %v293
  %v326 = vmul.f32 %v294, %v294
  %v327 = vmul.f32 %v295, %v295
  %v328 = vmul.f32 %v296, %v296
  %v329 = vmul.f32 %v297, %v297
  %v330 = vmul.f32 %v298, %v298
  %v331 = vmul.f32 %v299, %v299
  %v332 = vmul.f32 %v300, %v300
  %v333 = vmul.f32 %v301, %v301
  %v334 = vmul.f32 %v302, %v302
  %v335 = vmul.f32 %v303, %v303
  %v336 = vmul.f32 %v304, %v304
  %vm337 = vcmask 23552
  %v338 = vsel %vm337, %v305, 0.0
  %339 = vadd.xlane.f32.xlu0 %v338
  %v340 = vpop.xlane.xlu0 %339
  %v341 = vsel %vm337, %v306, 0.0
  %342 = vadd.xlane.f32.xlu0 %v341
  %v343 = vpop.xlane.xlu0 %342
  %v344 = vsel %vm337, %v307, 0.0
  %345 = vadd.xlane.f32.xlu0 %v344
  %v346 = vpop.xlane.xlu0 %345
  %v347 = vsel %vm337, %v308, 0.0
  %348 = vadd.xlane.f32.xlu0 %v347
  %v349 = vpop.xlane.xlu0 %348
  %v350 = vsel %vm337, %v309, 0.0
  %351 = vadd.xlane.f32.xlu0 %v350
  %v352 = vpop.xlane.xlu0 %351
  %v353 = vsel %vm337, %v310, 0.0
  %354 = vadd.xlane.f32.xlu0 %v353
  %v355 = vpop.xlane.xlu0 %354
  %v356 = vsel %vm337, %v311, 0.0
  %357 = vadd.xlane.f32.xlu0 %v356
  %v358 = vpop.xlane.xlu0 %357
  %v359 = vsel %vm337, %v312, 0.0
  %360 = vadd.xlane.f32.xlu0 %v359
  %v361 = vpop.xlane.xlu0 %360
  %v362 = vsel %vm337, %v313, 0.0
  %363 = vadd.xlane.f32.xlu0 %v362
  %v364 = vpop.xlane.xlu0 %363
  %v365 = vsel %vm337, %v314, 0.0
  %366 = vadd.xlane.f32.xlu0 %v365
  %v367 = vpop.xlane.xlu0 %366
  %v368 = vsel %vm337, %v315, 0.0
  %369 = vadd.xlane.f32.xlu0 %v368
  %v370 = vpop.xlane.xlu0 %369
  %v371 = vsel %vm337, %v316, 0.0
  %372 = vadd.xlane.f32.xlu0 %v371
  %v373 = vpop.xlane.xlu0 %372
  %v374 = vsel %vm337, %v317, 0.0
  %375 = vadd.xlane.f32.xlu0 %v374
  %v376 = vpop.xlane.xlu0 %375
  %v377 = vsel %vm337, %v318, 0.0
  %378 = vadd.xlane.f32.xlu0 %v377
  %v379 = vpop.xlane.xlu0 %378
  %v380 = vsel %vm337, %v319, 0.0
  %381 = vadd.xlane.f32.xlu0 %v380
  %v382 = vpop.xlane.xlu0 %381
  %v383 = vsel %vm337, %v320, 0.0
  %384 = vadd.xlane.f32.xlu0 %v383
  %v385 = vpop.xlane.xlu0 %384
  %v386 = vsel %vm337, %v321, 0.0
  %387 = vadd.xlane.f32.xlu0 %v386
  %v388 = vpop.xlane.xlu0 %387
  %v389 = vsel %vm337, %v322, 0.0
  %390 = vadd.xlane.f32.xlu0 %v389
  %v391 = vpop.xlane.xlu0 %390
  %v392 = vsel %vm337, %v323, 0.0
  %393 = vadd.xlane.f32.xlu0 %v392
  %v394 = vpop.xlane.xlu0 %393
  %v395 = vsel %vm337, %v324, 0.0
  %396 = vadd.xlane.f32.xlu0 %v395
  %v397 = vpop.xlane.xlu0 %396
  %v398 = vsel %vm337, %v325, 0.0
  %399 = vadd.xlane.f32.xlu0 %v398
  %v400 = vpop.xlane.xlu0 %399
  %v401 = vsel %vm337, %v326, 0.0
  %402 = vadd.xlane.f32.xlu0 %v401
  %v403 = vpop.xlane.xlu0 %402
  %v404 = vsel %vm337, %v327, 0.0
  %405 = vadd.xlane.f32.xlu0 %v404
  %v406 = vpop.xlane.xlu0 %405
  %v407 = vsel %vm337, %v328, 0.0
  %408 = vadd.xlane.f32.xlu0 %v407
  %v409 = vpop.xlane.xlu0 %408
  %v410 = vsel %vm337, %v329, 0.0
  %411 = vadd.xlane.f32.xlu0 %v410
  %v412 = vpop.xlane.xlu0 %411
  %v413 = vsel %vm337, %v330, 0.0
  %414 = vadd.xlane.f32.xlu0 %v413
  %v415 = vpop.xlane.xlu0 %414
  %v416 = vsel %vm337, %v331, 0.0
  %417 = vadd.xlane.f32.xlu0 %v416
  %v418 = vpop.xlane.xlu0 %417
  %v419 = vsel %vm337, %v332, 0.0
  %420 = vadd.xlane.f32.xlu0 %v419
  %v421 = vpop.xlane.xlu0 %420
  %v422 = vsel %vm337, %v333, 0.0
  %423 = vadd.xlane.f32.xlu0 %v422
  %v424 = vpop.xlane.xlu0 %423
  %v425 = vsel %vm337, %v334, 0.0
  %426 = vadd.xlane.f32.xlu0 %v425
  %v427 = vpop.xlane.xlu0 %426
  %v428 = vsel %vm337, %v335, 0.0
  %429 = vadd.xlane.f32.xlu0 %v428
  %v430 = vpop.xlane.xlu0 %429
  %v431 = vsel %vm337, %v336, 0.0
  %432 = vadd.xlane.f32.xlu0 %v431
  %v433 = vpop.xlane.xlu0 %432
  %v434 = vrsqrt.pop %v340
  %v435 = vmul.f32 %v340, %v434
  %vm436 = vcmp.eq.f32.partialorder %v340, inf
  %v437 = vsel %vm436, %v340, %v435
  %vm438 = vcmp.eq.f32.partialorder %v340, 0.0
  %v439 = vand.u32 %v340, 2147483648
  %v440 = vsel %vm438, %v439, %v437
  %v441 = vrsqrt.pop %v343
  %v442 = vmul.f32 %v343, %v441
  %vm443 = vcmp.eq.f32.partialorder %v343, inf
  %v444 = vsel %vm443, %v343, %v442
  %vm445 = vcmp.eq.f32.partialorder %v343, 0.0
  %v446 = vand.u32 %v343, 2147483648
  %v447 = vsel %vm445, %v446, %v444
  %v448 = vrsqrt.pop %v346
  %v449 = vmul.f32 %v346, %v448
  %vm450 = vcmp.eq.f32.partialorder %v346, inf
  %v451 = vsel %vm450, %v346, %v449
  %vm452 = vcmp.eq.f32.partialorder %v346, 0.0
  %v453 = vand.u32 %v346, 2147483648
  %v454 = vsel %vm452, %v453, %v451
  %v455 = vrsqrt.pop %v349
  %v456 = vmul.f32 %v349, %v455
  %vm457 = vcmp.eq.f32.partialorder %v349, inf
  %v458 = vsel %vm457, %v349, %v456
  %vm459 = vcmp.eq.f32.partialorder %v349, 0.0
  %v460 = vand.u32 %v349, 2147483648
  %v461 = vsel %vm459, %v460, %v458
  %v462 = vrsqrt.pop %v352
  %v463 = vmul.f32 %v352, %v462
  %vm464 = vcmp.eq.f32.partialorder %v352, inf
  %v465 = vsel %vm464, %v352, %v463
  %vm466 = vcmp.eq.f32.partialorder %v352, 0.0
  %v467 = vand.u32 %v352, 2147483648
  %v468 = vsel %vm466, %v467, %v465
  %v469 = vrsqrt.pop %v355
  %v470 = vmul.f32 %v355, %v469
  %vm471 = vcmp.eq.f32.partialorder %v355, inf
  %v472 = vsel %vm471, %v355, %v470
  %vm473 = vcmp.eq.f32.partialorder %v355, 0.0
  %v474 = vand.u32 %v355, 2147483648
  %v475 = vsel %vm473, %v474, %v472
  %v476 = vrsqrt.pop %v358
  %v477 = vmul.f32 %v358, %v476
  %vm478 = vcmp.eq.f32.partialorder %v358, inf
  %v479 = vsel %vm478, %v358, %v477
  %vm480 = vcmp.eq.f32.partialorder %v358, 0.0
  %v481 = vand.u32 %v358, 2147483648
  %v482 = vsel %vm480, %v481, %v479
  %v483 = vrsqrt.pop %v361
  %v484 = vmul.f32 %v361, %v483
  %vm485 = vcmp.eq.f32.partialorder %v361, inf
  %v486 = vsel %vm485, %v361, %v484
  %vm487 = vcmp.eq.f32.partialorder %v361, 0.0
  %v488 = vand.u32 %v361, 2147483648
  %v489 = vsel %vm487, %v488, %v486
  %v490 = vrsqrt.pop %v364
  %v491 = vmul.f32 %v364, %v490
  %vm492 = vcmp.eq.f32.partialorder %v364, inf
  %v493 = vsel %vm492, %v364, %v491
  %vm494 = vcmp.eq.f32.partialorder %v364, 0.0
  %v495 = vand.u32 %v364, 2147483648
  %v496 = vsel %vm494, %v495, %v493
  %v497 = vrsqrt.pop %v367
  %v498 = vmul.f32 %v367, %v497
  %vm499 = vcmp.eq.f32.partialorder %v367, inf
  %v500 = vsel %vm499, %v367, %v498
  %vm501 = vcmp.eq.f32.partialorder %v367, 0.0
  %v502 = vand.u32 %v367, 2147483648
  %v503 = vsel %vm501, %v502, %v500
  %v504 = vrsqrt.pop %v370
  %v505 = vmul.f32 %v370, %v504
  %vm506 = vcmp.eq.f32.partialorder %v370, inf
  %v507 = vsel %vm506, %v370, %v505
  %vm508 = vcmp.eq.f32.partialorder %v370, 0.0
  %v509 = vand.u32 %v370, 2147483648
  %v510 = vsel %vm508, %v509, %v507
  %v511 = vrsqrt.pop %v373
  %v512 = vmul.f32 %v373, %v511
  %vm513 = vcmp.eq.f32.partialorder %v373, inf
  %v514 = vsel %vm513, %v373, %v512
  %vm515 = vcmp.eq.f32.partialorder %v373, 0.0
  %v516 = vand.u32 %v373, 2147483648
  %v517 = vsel %vm515, %v516, %v514
  %v518 = vrsqrt.pop %v376
  %v519 = vmul.f32 %v376, %v518
  %vm520 = vcmp.eq.f32.partialorder %v376, inf
  %v521 = vsel %vm520, %v376, %v519
  %vm522 = vcmp.eq.f32.partialorder %v376, 0.0
  %v523 = vand.u32 %v376, 2147483648
  %v524 = vsel %vm522, %v523, %v521
  %v525 = vrsqrt.pop %v379
  %v526 = vmul.f32 %v379, %v525
  %vm527 = vcmp.eq.f32.partialorder %v379, inf
  %v528 = vsel %vm527, %v379, %v526
  %vm529 = vcmp.eq.f32.partialorder %v379, 0.0
  %v530 = vand.u32 %v379, 2147483648
  %v531 = vsel %vm529, %v530, %v528
  %v532 = vrsqrt.pop %v382
  %v533 = vmul.f32 %v382, %v532
  %vm534 = vcmp.eq.f32.partialorder %v382, inf
  %v535 = vsel %vm534, %v382, %v533
  %vm536 = vcmp.eq.f32.partialorder %v382, 0.0
  %v537 = vand.u32 %v382, 2147483648
  %v538 = vsel %vm536, %v537, %v535
  %v539 = vrsqrt.pop %v385
  %v540 = vmul.f32 %v385, %v539
  %vm541 = vcmp.eq.f32.partialorder %v385, inf
  %v542 = vsel %vm541, %v385, %v540
  %vm543 = vcmp.eq.f32.partialorder %v385, 0.0
  %v544 = vand.u32 %v385, 2147483648
  %v545 = vsel %vm543, %v544, %v542
  %v546 = vrsqrt.pop %v388
  %v547 = vmul.f32 %v388, %v546
  %vm548 = vcmp.eq.f32.partialorder %v388, inf
  %v549 = vsel %vm548, %v388, %v547
  %vm550 = vcmp.eq.f32.partialorder %v388, 0.0
  %v551 = vand.u32 %v388, 2147483648
  %v552 = vsel %vm550, %v551, %v549
  %v553 = vrsqrt.pop %v391
  %v554 = vmul.f32 %v391, %v553
  %vm555 = vcmp.eq.f32.partialorder %v391, inf
  %v556 = vsel %vm555, %v391, %v554
  %vm557 = vcmp.eq.f32.partialorder %v391, 0.0
  %v558 = vand.u32 %v391, 2147483648
  %v559 = vsel %vm557, %v558, %v556
  %v560 = vrsqrt.pop %v394
  %v561 = vmul.f32 %v394, %v560
  %vm562 = vcmp.eq.f32.partialorder %v394, inf
  %v563 = vsel %vm562, %v394, %v561
  %vm564 = vcmp.eq.f32.partialorder %v394, 0.0
  %v565 = vand.u32 %v394, 2147483648
  %v566 = vsel %vm564, %v565, %v563
  %v567 = vrsqrt.pop %v397
  %v568 = vmul.f32 %v397, %v567
  %vm569 = vcmp.eq.f32.partialorder %v397, inf
  %v570 = vsel %vm569, %v397, %v568
  %vm571 = vcmp.eq.f32.partialorder %v397, 0.0
  %v572 = vand.u32 %v397, 2147483648
  %v573 = vsel %vm571, %v572, %v570
  %v574 = vrsqrt.pop %v400
  %v575 = vmul.f32 %v400, %v574
  %vm576 = vcmp.eq.f32.partialorder %v400, inf
  %v577 = vsel %vm576, %v400, %v575
  %vm578 = vcmp.eq.f32.partialorder %v400, 0.0
  %v579 = vand.u32 %v400, 2147483648
  %v580 = vsel %vm578, %v579, %v577
  %v581 = vrsqrt.pop %v403
  %v582 = vmul.f32 %v403, %v581
  %vm583 = vcmp.eq.f32.partialorder %v403, inf
  %v584 = vsel %vm583, %v403, %v582
  %vm585 = vcmp.eq.f32.partialorder %v403, 0.0
  %v586 = vand.u32 %v403, 2147483648
  %v587 = vsel %vm585, %v586, %v584
  %v588 = vrsqrt.pop %v406
  %v589 = vmul.f32 %v406, %v588
  %vm590 = vcmp.eq.f32.partialorder %v406, inf
  %v591 = vsel %vm590, %v406, %v589
  %vm592 = vcmp.eq.f32.partialorder %v406, 0.0
  %v593 = vand.u32 %v406, 2147483648
  %v594 = vsel %vm592, %v593, %v591
  %v595 = vrsqrt.pop %v409
  %v596 = vmul.f32 %v409, %v595
  %vm597 = vcmp.eq.f32.partialorder %v409, inf
  %v598 = vsel %vm597, %v409, %v596
  %vm599 = vcmp.eq.f32.partialorder %v409, 0.0
  %v600 = vand.u32 %v409, 2147483648
  %v601 = vsel %vm599, %v600, %v598
  %v602 = vrsqrt.pop %v412
  %v603 = vmul.f32 %v412, %v602
  %vm604 = vcmp.eq.f32.partialorder %v412, inf
  %v605 = vsel %vm604, %v412, %v603
  %vm606 = vcmp.eq.f32.partialorder %v412, 0.0
  %v607 = vand.u32 %v412, 2147483648
  %v608 = vsel %vm606, %v607, %v605
  %v609 = vrsqrt.pop %v415
  %v610 = vmul.f32 %v415, %v609
  %vm611 = vcmp.eq.f32.partialorder %v415, inf
  %v612 = vsel %vm611, %v415, %v610
  %vm613 = vcmp.eq.f32.partialorder %v415, 0.0
  %v614 = vand.u32 %v415, 2147483648
  %v615 = vsel %vm613, %v614, %v612
  %v616 = vrsqrt.pop %v418
  %v617 = vmul.f32 %v418, %v616
  %vm618 = vcmp.eq.f32.partialorder %v418, inf
  %v619 = vsel %vm618, %v418, %v617
  %vm620 = vcmp.eq.f32.partialorder %v418, 0.0
  %v621 = vand.u32 %v418, 2147483648
  %v622 = vsel %vm620, %v621, %v619
  %v623 = vrsqrt.pop %v421
  %v624 = vmul.f32 %v421, %v623
  %vm625 = vcmp.eq.f32.partialorder %v421, inf
  %v626 = vsel %vm625, %v421, %v624
  %vm627 = vcmp.eq.f32.partialorder %v421, 0.0
  %v628 = vand.u32 %v421, 2147483648
  %v629 = vsel %vm627, %v628, %v626
  %v630 = vrsqrt.pop %v424
  %v631 = vmul.f32 %v424, %v630
  %vm632 = vcmp.eq.f32.partialorder %v424, inf
  %v633 = vsel %vm632, %v424, %v631
  %vm634 = vcmp.eq.f32.partialorder %v424, 0.0
  %v635 = vand.u32 %v424, 2147483648
  %v636 = vsel %vm634, %v635, %v633
  %v637 = vrsqrt.pop %v427
  %v638 = vmul.f32 %v427, %v637
  %vm639 = vcmp.eq.f32.partialorder %v427, inf
  %v640 = vsel %vm639, %v427, %v638
  %vm641 = vcmp.eq.f32.partialorder %v427, 0.0
  %v642 = vand.u32 %v427, 2147483648
  %v643 = vsel %vm641, %v642, %v640
  %v644 = vrsqrt.pop %v430
  %v645 = vmul.f32 %v430, %v644
  %vm646 = vcmp.eq.f32.partialorder %v430, inf
  %v647 = vsel %vm646, %v430, %v645
  %vm648 = vcmp.eq.f32.partialorder %v430, 0.0
  %v649 = vand.u32 %v430, 2147483648
  %v650 = vsel %vm648, %v649, %v647
  %v651 = vrsqrt.pop %v433
  %v652 = vmul.f32 %v433, %v651
  %vm653 = vcmp.eq.f32.partialorder %v433, inf
  %v654 = vsel %vm653, %v433, %v652
  %vm655 = vcmp.eq.f32.partialorder %v433, 0.0
  %v656 = vand.u32 %v433, 2147483648
  %v657 = vsel %vm655, %v656, %v654
  %690 = vrot.lane.b32.xlu0 %v273, 1
  %v691 = vpop.permute.xlu0 %690
  %692 = vrot.lane.b32.xlu0 %v274, 1
  %v693 = vpop.permute.xlu0 %692
  %694 = vrot.lane.b32.xlu0 %v275, 1
  %v695 = vpop.permute.xlu0 %694
  %696 = vrot.lane.b32.xlu0 %v276, 1
  %v697 = vpop.permute.xlu0 %696
  %698 = vrot.lane.b32.xlu0 %v277, 1
  %v699 = vpop.permute.xlu0 %698
  %700 = vrot.lane.b32.xlu0 %v278, 1
  %v701 = vpop.permute.xlu0 %700
  %702 = vrot.lane.b32.xlu0 %v279, 1
  %v703 = vpop.permute.xlu0 %702
  %704 = vrot.lane.b32.xlu0 %v280, 1
  %v705 = vpop.permute.xlu0 %704
  %706 = vrot.lane.b32.xlu0 %v281, 1
  %v707 = vpop.permute.xlu0 %706
  %708 = vrot.lane.b32.xlu0 %v282, 1
  %v709 = vpop.permute.xlu0 %708
  %710 = vrot.lane.b32.xlu0 %v283, 1
  %v711 = vpop.permute.xlu0 %710
  %712 = vrot.lane.b32.xlu0 %v284, 1
  %v713 = vpop.permute.xlu0 %712
  %714 = vrot.lane.b32.xlu0 %v285, 1
  %v715 = vpop.permute.xlu0 %714
  %716 = vrot.lane.b32.xlu0 %v286, 1
  %v717 = vpop.permute.xlu0 %716
  %718 = vrot.lane.b32.xlu0 %v287, 1
  %v719 = vpop.permute.xlu0 %718
  %720 = vrot.lane.b32.xlu0 %v288, 1
  %v721 = vpop.permute.xlu0 %720
  %722 = vrot.lane.b32.xlu0 %v289, 1
  %v723 = vpop.permute.xlu0 %722
  %724 = vrot.lane.b32.xlu0 %v290, 1
  %v725 = vpop.permute.xlu0 %724
  %726 = vrot.lane.b32.xlu0 %v291, 1
  %v727 = vpop.permute.xlu0 %726
  %728 = vrot.lane.b32.xlu0 %v292, 1
  %v729 = vpop.permute.xlu0 %728
  %730 = vrot.lane.b32.xlu0 %v293, 1
  %v731 = vpop.permute.xlu0 %730
  %732 = vrot.lane.b32.xlu0 %v294, 1
  %v733 = vpop.permute.xlu0 %732
  %734 = vrot.lane.b32.xlu0 %v295, 1
  %v735 = vpop.permute.xlu0 %734
  %736 = vrot.lane.b32.xlu0 %v296, 1
  %v737 = vpop.permute.xlu0 %736
  %738 = vrot.lane.b32.xlu0 %v297, 1
  %v739 = vpop.permute.xlu0 %738
  %740 = vrot.lane.b32.xlu0 %v298, 1
  %v741 = vpop.permute.xlu0 %740
  %742 = vrot.lane.b32.xlu0 %v299, 1
  %v743 = vpop.permute.xlu0 %742
  %744 = vrot.lane.b32.xlu0 %v300, 1
  %v745 = vpop.permute.xlu0 %744
  %746 = vrot.lane.b32.xlu0 %v301, 1
  %v747 = vpop.permute.xlu0 %746
  %748 = vrot.lane.b32.xlu0 %v302, 1
  %v749 = vpop.permute.xlu0 %748
  %750 = vrot.lane.b32.xlu0 %v303, 1
  %v751 = vpop.permute.xlu0 %750
  %752 = vrot.lane.b32.xlu0 %v304, 1
  %v753 = vpop.permute.xlu0 %752
  %786 = vrot.lane.b32.xlu0 %v116, 4
  %v787 = vpop.permute.xlu0 %786
  %788 = vrot.lane.b32.xlu0 %v120, 4
  %v789 = vpop.permute.xlu0 %788
  %790 = vrot.lane.b32.xlu0 %v124, 4
  %v791 = vpop.permute.xlu0 %790
  %792 = vrot.lane.b32.xlu0 %v128, 4
  %v793 = vpop.permute.xlu0 %792
  %794 = vrot.lane.b32.xlu0 %v132, 4
  %v795 = vpop.permute.xlu0 %794
  %796 = vrot.lane.b32.xlu0 %v136, 4
  %v797 = vpop.permute.xlu0 %796
  %798 = vrot.lane.b32.xlu0 %v140, 4
  %v799 = vpop.permute.xlu0 %798
  %800 = vrot.lane.b32.xlu0 %v144, 4
  %v801 = vpop.permute.xlu0 %800
  %802 = vrot.lane.b32.xlu0 %v148, 4
  %v803 = vpop.permute.xlu0 %802
  %804 = vrot.lane.b32.xlu0 %v152, 4
  %v805 = vpop.permute.xlu0 %804
  %806 = vrot.lane.b32.xlu0 %v156, 4
  %v807 = vpop.permute.xlu0 %806
  %808 = vrot.lane.b32.xlu0 %v160, 4
  %v809 = vpop.permute.xlu0 %808
  %810 = vrot.lane.b32.xlu0 %v164, 4
  %v811 = vpop.permute.xlu0 %810
  %812 = vrot.lane.b32.xlu0 %v168, 4
  %v813 = vpop.permute.xlu0 %812
  %814 = vrot.lane.b32.xlu0 %v172, 4
  %v815 = vpop.permute.xlu0 %814
  %816 = vrot.lane.b32.xlu0 %v176, 4
  %v817 = vpop.permute.xlu0 %816
  %818 = vrot.lane.b32.xlu0 %v180, 4
  %v819 = vpop.permute.xlu0 %818
  %820 = vrot.lane.b32.xlu0 %v184, 4
  %v821 = vpop.permute.xlu0 %820
  %822 = vrot.lane.b32.xlu0 %v188, 4
  %v823 = vpop.permute.xlu0 %822
  %824 = vrot.lane.b32.xlu0 %v192, 4
  %v825 = vpop.permute.xlu0 %824
  %826 = vrot.lane.b32.xlu0 %v196, 4
  %v827 = vpop.permute.xlu0 %826
  %828 = vrot.lane.b32.xlu0 %v200, 4
  %v829 = vpop.permute.xlu0 %828
  %830 = vrot.lane.b32.xlu0 %v204, 4
  %v831 = vpop.permute.xlu0 %830
  %832 = vrot.lane.b32.xlu0 %v208, 4
  %v833 = vpop.permute.xlu0 %832
  %834 = vrot.lane.b32.xlu0 %v212, 4
  %v835 = vpop.permute.xlu0 %834
  %836 = vrot.lane.b32.xlu0 %v216, 4
  %v837 = vpop.permute.xlu0 %836
  %838 = vrot.lane.b32.xlu0 %v220, 4
  %v839 = vpop.permute.xlu0 %838
  %840 = vrot.lane.b32.xlu0 %v224, 4
  %v841 = vpop.permute.xlu0 %840
  %842 = vrot.lane.b32.xlu0 %v228, 4
  %v843 = vpop.permute.xlu0 %842
  %844 = vrot.lane.b32.xlu0 %v232, 4
  %v845 = vpop.permute.xlu0 %844
  %846 = vrot.lane.b32.xlu0 %v236, 4
  %v847 = vpop.permute.xlu0 %846
  %848 = vrot.lane.b32.xlu0 %v240, 4
  %v849 = vpop.permute.xlu0 %848
  %914 = vrot.lane.b32.xlu0 %v17, 7
  %v915 = vpop.permute.xlu0 %914
  %916 = vrot.lane.b32.xlu0 %v18, 7
  %v917 = vpop.permute.xlu0 %916
  %918 = vrot.lane.b32.xlu0 %v19, 7
  %v919 = vpop.permute.xlu0 %918
  %920 = vrot.lane.b32.xlu0 %v20, 7
  %v921 = vpop.permute.xlu0 %920
  %922 = vrot.lane.b32.xlu0 %v21, 7
  %v923 = vpop.permute.xlu0 %922
  %924 = vrot.lane.b32.xlu0 %v22, 7
  %v925 = vpop.permute.xlu0 %924
  %926 = vrot.lane.b32.xlu0 %v23, 7
  %v927 = vpop.permute.xlu0 %926
  %928 = vrot.lane.b32.xlu0 %v24, 7
  %v929 = vpop.permute.xlu0 %928
  %930 = vrot.lane.b32.xlu0 %v25, 7
  %v931 = vpop.permute.xlu0 %930
  %932 = vrot.lane.b32.xlu0 %v26, 7
  %v933 = vpop.permute.xlu0 %932
  %934 = vrot.lane.b32.xlu0 %v27, 7
  %v935 = vpop.permute.xlu0 %934
  %936 = vrot.lane.b32.xlu0 %v28, 7
  %v937 = vpop.permute.xlu0 %936
  %938 = vrot.lane.b32.xlu0 %v29, 7
  %v939 = vpop.permute.xlu0 %938
  %940 = vrot.lane.b32.xlu0 %v30, 7
  %v941 = vpop.permute.xlu0 %940
  %942 = vrot.lane.b32.xlu0 %v31, 7
  %v943 = vpop.permute.xlu0 %942
  %944 = vrot.lane.b32.xlu0 %v32, 7
  %v945 = vpop.permute.xlu0 %944
  %946 = vrot.lane.b32.xlu0 %v33, 7
  %v947 = vpop.permute.xlu0 %946
  %948 = vrot.lane.b32.xlu0 %v34, 7
  %v949 = vpop.permute.xlu0 %948
  %950 = vrot.lane.b32.xlu0 %v35, 7
  %v951 = vpop.permute.xlu0 %950
  %952 = vrot.lane.b32.xlu0 %v36, 7
  %v953 = vpop.permute.xlu0 %952
  %954 = vrot.lane.b32.xlu0 %v37, 7
  %v955 = vpop.permute.xlu0 %954
  %956 = vrot.lane.b32.xlu0 %v38, 7
  %v957 = vpop.permute.xlu0 %956
  %958 = vrot.lane.b32.xlu0 %v39, 7
  %v959 = vpop.permute.xlu0 %958
  %960 = vrot.lane.b32.xlu0 %v40, 7
  %v961 = vpop.permute.xlu0 %960
  %962 = vrot.lane.b32.xlu0 %v41, 7
  %v963 = vpop.permute.xlu0 %962
  %964 = vrot.lane.b32.xlu0 %v42, 7
  %v965 = vpop.permute.xlu0 %964
  %966 = vrot.lane.b32.xlu0 %v43, 7
  %v967 = vpop.permute.xlu0 %966
  %968 = vrot.lane.b32.xlu0 %v44, 7
  %v969 = vpop.permute.xlu0 %968
  %970 = vrot.lane.b32.xlu0 %v45, 7
  %v971 = vpop.permute.xlu0 %970
  %972 = vrot.lane.b32.xlu0 %v46, 7
  %v973 = vpop.permute.xlu0 %972
  %974 = vrot.lane.b32.xlu0 %v47, 7
  %v975 = vpop.permute.xlu0 %974
  %976 = vrot.lane.b32.xlu0 %v48, 7
  %v977 = vpop.permute.xlu0 %976
  %vm1010 = vcmask 7168
  %v1011 = vsel %vm1010, %v440, %v691
  %v1012 = vsel %vm1010, %v447, %v693
  %v1013 = vsel %vm1010, %v454, %v695
  %v1014 = vsel %vm1010, %v461, %v697
  %v1015 = vsel %vm1010, %v468, %v699
  %v1016 = vsel %vm1010, %v475, %v701
  %v1017 = vsel %vm1010, %v482, %v703
  %v1018 = vsel %vm1010, %v489, %v705
  %v1019 = vsel %vm1010, %v496, %v707
  %v1020 = vsel %vm1010, %v503, %v709
  %v1021 = vsel %vm1010, %v510, %v711
  %v1022 = vsel %vm1010, %v517, %v713
  %v1023 = vsel %vm1010, %v524, %v715
  %v1024 = vsel %vm1010, %v531, %v717
  %v1025 = vsel %vm1010, %v538, %v719
  %v1026 = vsel %vm1010, %v545, %v721
  %v1027 = vsel %vm1010, %v552, %v723
  %v1028 = vsel %vm1010, %v559, %v725
  %v1029 = vsel %vm1010, %v566, %v727
  %v1030 = vsel %vm1010, %v573, %v729
  %v1031 = vsel %vm1010, %v580, %v731
  %v1032 = vsel %vm1010, %v587, %v733
  %v1033 = vsel %vm1010, %v594, %v735
  %v1034 = vsel %vm1010, %v601, %v737
  %v1035 = vsel %vm1010, %v608, %v739
  %v1036 = vsel %vm1010, %v615, %v741
  %v1037 = vsel %vm1010, %v622, %v743
  %v1038 = vsel %vm1010, %v629, %v745
  %v1039 = vsel %vm1010, %v636, %v747
  %v1040 = vsel %vm1010, %v643, %v749
  %v1041 = vsel %vm1010, %v650, %v751
  %v1042 = vsel %vm1010, %v657, %v753
  %vm1043 = vcmask 31744
  %v1044 = vsel %vm1043, %v1011, %v787
  %v1045 = vsel %vm1043, %v1012, %v789
  %v1046 = vsel %vm1043, %v1013, %v791
  %v1047 = vsel %vm1043, %v1014, %v793
  %v1048 = vsel %vm1043, %v1015, %v795
  %v1049 = vsel %vm1043, %v1016, %v797
  %v1050 = vsel %vm1043, %v1017, %v799
  %v1051 = vsel %vm1043, %v1018, %v801
  %v1052 = vsel %vm1043, %v1019, %v803
  %v1053 = vsel %vm1043, %v1020, %v805
  %v1054 = vsel %vm1043, %v1021, %v807
  %v1055 = vsel %vm1043, %v1022, %v809
  %v1056 = vsel %vm1043, %v1023, %v811
  %v1057 = vsel %vm1043, %v1024, %v813
  %v1058 = vsel %vm1043, %v1025, %v815
  %v1059 = vsel %vm1043, %v1026, %v817
  %v1060 = vsel %vm1043, %v1027, %v819
  %v1061 = vsel %vm1043, %v1028, %v821
  %v1062 = vsel %vm1043, %v1029, %v823
  %v1063 = vsel %vm1043, %v1030, %v825
  %v1064 = vsel %vm1043, %v1031, %v827
  %v1065 = vsel %vm1043, %v1032, %v829
  %v1066 = vsel %vm1043, %v1033, %v831
  %v1067 = vsel %vm1043, %v1034, %v833
  %v1068 = vsel %vm1043, %v1035, %v835
  %v1069 = vsel %vm1043, %v1036, %v837
  %v1070 = vsel %vm1043, %v1037, %v839
  %v1071 = vsel %vm1043, %v1038, %v841
  %v1072 = vsel %vm1043, %v1039, %v843
  %v1073 = vsel %vm1043, %v1040, %v845
  %v1074 = vsel %vm1043, %v1041, %v847
  %v1075 = vsel %vm1043, %v1042, %v849
  %vm1076 = vcmask 56320
  %v1077 = vsel %vm1076, %v1044, %v915
  %v1078 = vsel %vm1076, %v1045, %v917
  %v1079 = vsel %vm1076, %v1046, %v919
  %v1080 = vsel %vm1076, %v1047, %v921
  %v1081 = vsel %vm1076, %v1048, %v923
  %v1082 = vsel %vm1076, %v1049, %v925
  %v1083 = vsel %vm1076, %v1050, %v927
  %v1084 = vsel %vm1076, %v1051, %v929
  %v1085 = vsel %vm1076, %v1052, %v931
  %v1086 = vsel %vm1076, %v1053, %v933
  %v1087 = vsel %vm1076, %v1054, %v935
  %v1088 = vsel %vm1076, %v1055, %v937
  %v1089 = vsel %vm1076, %v1056, %v939
  %v1090 = vsel %vm1076, %v1057, %v941
  %v1091 = vsel %vm1076, %v1058, %v943
  %v1092 = vsel %vm1076, %v1059, %v945
  %v1093 = vsel %vm1076, %v1060, %v947
  %v1094 = vsel %vm1076, %v1061, %v949
  %v1095 = vsel %vm1076, %v1062, %v951
  %v1096 = vsel %vm1076, %v1063, %v953
  %v1097 = vsel %vm1076, %v1064, %v955
  %v1098 = vsel %vm1076, %v1065, %v957
  %v1099 = vsel %vm1076, %v1066, %v959
  %v1100 = vsel %vm1076, %v1067, %v961
  %v1101 = vsel %vm1076, %v1068, %v963
  %v1102 = vsel %vm1076, %v1069, %v965
  %v1103 = vsel %vm1076, %v1070, %v967
  %v1104 = vsel %vm1076, %v1071, %v969
  %v1105 = vsel %vm1076, %v1072, %v971
  %v1106 = vsel %vm1076, %v1073, %v973
  %v1107 = vsel %vm1076, %v1074, %v975
  %v1108 = vsel %vm1076, %v1075, %v977
  %v1109 = vld [vmem:[%s2] sm:$0xff]
  %v1110 = vld [vmem:[%s2 + $0x8] sm:$0x3]
  %v1111 = vld [vmem:[%s3] sm:$0x1]
  %v1113 = vlaneseq
  %v1114 = vshrl.u32 %v1113, 7
  %v1115 = vsub.s32 0, %v1114
  %v1116 = vrot.slane %v1111, %v1115
  %vm1118 = vcmask 80896
  %v1120 = vsel %vm1118, %v1077, 0
  %v1123 = vsel %vm1118, %v1078, 0
  %v1126 = vsel %vm1118, %v1079, 0
  %v1129 = vsel %vm1118, %v1080, 0
  %v1132 = vsel %vm1118, %v1081, 0
  %v1135 = vsel %vm1118, %v1082, 0
  %v1138 = vsel %vm1118, %v1083, 0
  %v1141 = vsel %vm1118, %v1084, 0
  %v1144 = vsel %vm1118, %v1085, 0
  %v1147 = vsel %vm1118, %v1086, 0
  %v1150 = vsel %vm1118, %v1087, 0
  %v1153 = vsel %vm1118, %v1088, 0
  %v1156 = vsel %vm1118, %v1089, 0
  %v1159 = vsel %vm1118, %v1090, 0
  %v1162 = vsel %vm1118, %v1091, 0
  %v1165 = vsel %vm1118, %v1092, 0
  %v1168 = vsel %vm1118, %v1093, 0
  %v1171 = vsel %vm1118, %v1094, 0
  %v1174 = vsel %vm1118, %v1095, 0
  %v1177 = vsel %vm1118, %v1096, 0
  %v1180 = vsel %vm1118, %v1097, 0
  %v1183 = vsel %vm1118, %v1098, 0
  %v1186 = vsel %vm1118, %v1099, 0
  %v1189 = vsel %vm1118, %v1100, 0
  %v1192 = vsel %vm1118, %v1101, 0
  %v1195 = vsel %vm1118, %v1102, 0
  %v1198 = vsel %vm1118, %v1103, 0
  %v1201 = vsel %vm1118, %v1104, 0
  %v1204 = vsel %vm1118, %v1105, 0
  %v1207 = vsel %vm1118, %v1106, 0
  %v1210 = vsel %vm1118, %v1107, 0
  %v1213 = vsel %vm1118, %v1108, 0
  %vm1215 = vcmask 1041408
  %v1217 = vsel %vm1215, %v1110, 0
  %1219 = vmatprep.subr.mxu0 0.0
  %1220 = vmatpush1.msra.mxu0 0.0
  %1221 = vmatprep.subr.mxu0 0.0
  %1222 = vmatpush1.msra.mxu0 0.0
  %1223 = vmatprep.subr.mxu0 0.0
  %1224 = vmatpush1.msra.mxu0 0.0
  %1225 = vmatprep.subr.mxu0 0.0
  %1226 = vmatpush1.msra.mxu0 0.0
  %1227 = vmatprep.subr.mxu0 0.0
  %1228 = vmatpush1.msra.mxu0 0.0
  %1229 = vmatprep.subr.mxu0 0.0
  %1230 = vmatpush1.msra.mxu0 0.0
  %1231 = vmatprep.subr.mxu0 0.0
  %1232 = vmatpush1.msra.mxu0 0.0
  %1233 = vmatprep.subr.mxu0 0.0
  %1234 = vmatpush1.msra.mxu0 0.0
  %1235 = vmatprep.subr.mxu0 0.0
  %1236 = vmatpush1.msra.mxu0 0.0
  %1237 = vmatprep.subr.mxu0 0.0
  %1238 = vmatpush1.msra.mxu0 0.0
  %1239 = vmatprep.subr.mxu0 0.0
  %1240 = vmatpush1.msra.mxu0 0.0
  %1241 = vmatprep.subr.mxu0 0.0
  %1242 = vmatpush1.msra.mxu0 0.0
  %1243 = vmatprep.subr.mxu0 0.0
  %1244 = vmatpush1.msra.mxu0 0.0
  %1245 = vmatprep.subr.mxu0 0.0
  %1246 = vmatpush1.msra.mxu0 0.0
  %1247 = vmatprep.subr.mxu0 0.0
  %1248 = vmatpush1.msra.mxu0 %v1217
  %1249 = vmatprep.subr.mxu0 0.0
  %1250 = vmatpush1.msra.mxu0 %v1109
  %1251 = vmatprep.subr.mxu0 0.0
  %1252 = vmatpush2.msra.mxu0 0.0
  %1253 = vmatprep.subr.mxu0 0.0
  %1254 = vmatpush2.msra.mxu0 0.0
  %1255 = vmatprep.subr.mxu0 0.0
  %1256 = vmatpush2.msra.mxu0 0.0
  %1257 = vmatprep.subr.mxu0 0.0
  %1258 = vmatpush2.msra.mxu0 0.0
  %1259 = vmatprep.subr.mxu0 0.0
  %1260 = vmatpush2.msra.mxu0 0.0
  %1261 = vmatprep.subr.mxu0 0.0
  %1262 = vmatpush2.msra.mxu0 0.0
  %1263 = vmatprep.subr.mxu0 0.0
  %1264 = vmatpush2.msra.mxu0 0.0
  %1265 = vmatprep.subr.mxu0 0.0
  %1266 = vmatpush2.msra.mxu0 0.0
  %1267 = vmatprep.subr.mxu0 0.0
  %1268 = vmatpush2.msra.mxu0 0.0
  %1269 = vmatprep.subr.mxu0 0.0
  %1270 = vmatpush2.msra.mxu0 0.0
  %1271 = vmatprep.subr.mxu0 0.0
  %1272 = vmatpush2.msra.mxu0 0.0
  %1273 = vmatprep.subr.mxu0 0.0
  %1274 = vmatpush2.msra.mxu0 0.0
  %1275 = vmatprep.subr.mxu0 0.0
  %1276 = vmatpush2.msra.mxu0 0.0
  %1277 = vmatprep.subr.mxu0 0.0
  %1278 = vmatpush2.msra.mxu0 0.0
  %1279 = vmatprep.subr.mxu0 0.0
  %1280 = vmatpush2.msra.mxu0 0.0
  %1281 = vmatprep.subr.mxu0 0.0
  %1282 = vmatpush2.msra.mxu0 0.0
  %1283 = vmatprep.mubr.f32.mxu0 0.0
  %1284 = vmatmul.mubr.f32.gmra.mxu0 %v1120
  %v1285 = vpop.f32.mrf.mxu0
  %v1286 = vadd.f32 %v1116, %v1285
  %v1287 = vpop.f32.mrf.mxu0
  %1288 = vmatprep.mubr.f32.mxu0 0.0
  %1289 = vmatmul.mubr.f32.gmra.mxu0 %v1123
  %v1290 = vpop.f32.mrf.mxu0
  %v1291 = vadd.f32 %v1116, %v1290
  %v1292 = vpop.f32.mrf.mxu0
  %1293 = vmatprep.mubr.f32.mxu0 0.0
  %1294 = vmatmul.mubr.f32.gmra.mxu0 %v1126
  %v1295 = vpop.f32.mrf.mxu0
  %v1296 = vadd.f32 %v1116, %v1295
  %v1297 = vpop.f32.mrf.mxu0
  %1298 = vmatprep.mubr.f32.mxu0 0.0
  %1299 = vmatmul.mubr.f32.gmra.mxu0 %v1129
  %v1300 = vpop.f32.mrf.mxu0
  %v1301 = vadd.f32 %v1116, %v1300
  %v1302 = vpop.f32.mrf.mxu0
  %1303 = vmatprep.mubr.f32.mxu0 0.0
  %1304 = vmatmul.mubr.f32.gmra.mxu0 %v1132
  %v1305 = vpop.f32.mrf.mxu0
  %v1306 = vadd.f32 %v1116, %v1305
  %v1307 = vpop.f32.mrf.mxu0
  %1308 = vmatprep.mubr.f32.mxu0 0.0
  %1309 = vmatmul.mubr.f32.gmra.mxu0 %v1135
  %v1310 = vpop.f32.mrf.mxu0
  %v1311 = vadd.f32 %v1116, %v1310
  %v1312 = vpop.f32.mrf.mxu0
  %1313 = vmatprep.mubr.f32.mxu0 0.0
  %1314 = vmatmul.mubr.f32.gmra.mxu0 %v1138
  %v1315 = vpop.f32.mrf.mxu0
  %v1316 = vadd.f32 %v1116, %v1315
  %v1317 = vpop.f32.mrf.mxu0
  %1318 = vmatprep.mubr.f32.mxu0 0.0
  %1319 = vmatmul.mubr.f32.gmra.mxu0 %v1141
  %v1320 = vpop.f32.mrf.mxu0
  %v1321 = vadd.f32 %v1116, %v1320
  %v1322 = vpop.f32.mrf.mxu0
  %1323 = vmatprep.mubr.f32.mxu0 0.0
  %1324 = vmatmul.mubr.f32.gmra.mxu0 %v1144
  %v1325 = vpop.f32.mrf.mxu0
  %v1326 = vadd.f32 %v1116, %v1325
  %v1327 = vpop.f32.mrf.mxu0
  %1328 = vmatprep.mubr.f32.mxu0 0.0
  %1329 = vmatmul.mubr.f32.gmra.mxu0 %v1147
  %v1330 = vpop.f32.mrf.mxu0
  %v1331 = vadd.f32 %v1116, %v1330
  %v1332 = vpop.f32.mrf.mxu0
  %1333 = vmatprep.mubr.f32.mxu0 0.0
  %1334 = vmatmul.mubr.f32.gmra.mxu0 %v1150
  %v1335 = vpop.f32.mrf.mxu0
  %v1336 = vadd.f32 %v1116, %v1335
  %v1337 = vpop.f32.mrf.mxu0
  %1338 = vmatprep.mubr.f32.mxu0 0.0
  %1339 = vmatmul.mubr.f32.gmra.mxu0 %v1153
  %v1340 = vpop.f32.mrf.mxu0
  %v1341 = vadd.f32 %v1116, %v1340
  %v1342 = vpop.f32.mrf.mxu0
  %1343 = vmatprep.mubr.f32.mxu0 0.0
  %1344 = vmatmul.mubr.f32.gmra.mxu0 %v1156
  %v1345 = vpop.f32.mrf.mxu0
  %v1346 = vadd.f32 %v1116, %v1345
  %v1347 = vpop.f32.mrf.mxu0
  %1348 = vmatprep.mubr.f32.mxu0 0.0
  %1349 = vmatmul.mubr.f32.gmra.mxu0 %v1159
  %v1350 = vpop.f32.mrf.mxu0
  %v1351 = vadd.f32 %v1116, %v1350
  %v1352 = vpop.f32.mrf.mxu0
  %1353 = vmatprep.mubr.f32.mxu0 0.0
  %1354 = vmatmul.mubr.f32.gmra.mxu0 %v1162
  %v1355 = vpop.f32.mrf.mxu0
  %v1356 = vadd.f32 %v1116, %v1355
  %v1357 = vpop.f32.mrf.mxu0
  %1358 = vmatprep.mubr.f32.mxu0 0.0
  %1359 = vmatmul.mubr.f32.gmra.mxu0 %v1165
  %v1360 = vpop.f32.mrf.mxu0
  %v1361 = vadd.f32 %v1116, %v1360
  %v1362 = vpop.f32.mrf.mxu0
  %1363 = vmatprep.mubr.f32.mxu0 0.0
  %1364 = vmatmul.mubr.f32.gmra.mxu0 %v1168
  %v1365 = vpop.f32.mrf.mxu0
  %v1366 = vadd.f32 %v1116, %v1365
  %v1367 = vpop.f32.mrf.mxu0
  %1368 = vmatprep.mubr.f32.mxu0 0.0
  %1369 = vmatmul.mubr.f32.gmra.mxu0 %v1171
  %v1370 = vpop.f32.mrf.mxu0
  %v1371 = vadd.f32 %v1116, %v1370
  %v1372 = vpop.f32.mrf.mxu0
  %1373 = vmatprep.mubr.f32.mxu0 0.0
  %1374 = vmatmul.mubr.f32.gmra.mxu0 %v1174
  %v1375 = vpop.f32.mrf.mxu0
  %v1376 = vadd.f32 %v1116, %v1375
  %v1377 = vpop.f32.mrf.mxu0
  %1378 = vmatprep.mubr.f32.mxu0 0.0
  %1379 = vmatmul.mubr.f32.gmra.mxu0 %v1177
  %v1380 = vpop.f32.mrf.mxu0
  %v1381 = vadd.f32 %v1116, %v1380
  %v1382 = vpop.f32.mrf.mxu0
  %1383 = vmatprep.mubr.f32.mxu0 0.0
  %1384 = vmatmul.mubr.f32.gmra.mxu0 %v1180
  %v1385 = vpop.f32.mrf.mxu0
  %v1386 = vadd.f32 %v1116, %v1385
  %v1387 = vpop.f32.mrf.mxu0
  %1388 = vmatprep.mubr.f32.mxu0 0.0
  %1389 = vmatmul.mubr.f32.gmra.mxu0 %v1183
  %v1390 = vpop.f32.mrf.mxu0
  %v1391 = vadd.f32 %v1116, %v1390
  %v1392 = vpop.f32.mrf.mxu0
  %1393 = vmatprep.mubr.f32.mxu0 0.0
  %1394 = vmatmul.mubr.f32.gmra.mxu0 %v1186
  %v1395 = vpop.f32.mrf.mxu0
  %v1396 = vadd.f32 %v1116, %v1395
  %v1397 = vpop.f32.mrf.mxu0
  %1398 = vmatprep.mubr.f32.mxu0 0.0
  %1399 = vmatmul.mubr.f32.gmra.mxu0 %v1189
  %v1400 = vpop.f32.mrf.mxu0
  %v1401 = vadd.f32 %v1116, %v1400
  %v1402 = vpop.f32.mrf.mxu0
  %1403 = vmatprep.mubr.f32.mxu0 0.0
  %1404 = vmatmul.mubr.f32.gmra.mxu0 %v1192
  %v1405 = vpop.f32.mrf.mxu0
  %v1406 = vadd.f32 %v1116, %v1405
  %v1407 = vpop.f32.mrf.mxu0
  %1408 = vmatprep.mubr.f32.mxu0 0.0
  %1409 = vmatmul.mubr.f32.gmra.mxu0 %v1195
  %v1410 = vpop.f32.mrf.mxu0
  %v1411 = vadd.f32 %v1116, %v1410
  %v1412 = vpop.f32.mrf.mxu0
  %1413 = vmatprep.mubr.f32.mxu0 0.0
  %1414 = vmatmul.mubr.f32.gmra.mxu0 %v1198
  %v1415 = vpop.f32.mrf.mxu0
  %v1416 = vadd.f32 %v1116, %v1415
  %v1417 = vpop.f32.mrf.mxu0
  %1418 = vmatprep.mubr.f32.mxu0 0.0
  %1419 = vmatmul.mubr.f32.gmra.mxu0 %v1201
  %v1420 = vpop.f32.mrf.mxu0
  %v1421 = vadd.f32 %v1116, %v1420
  %v1422 = vpop.f32.mrf.mxu0
  %1423 = vmatprep.mubr.f32.mxu0 0.0
  %1424 = vmatmul.mubr.f32.gmra.mxu0 %v1204
  %v1425 = vpop.f32.mrf.mxu0
  %v1426 = vadd.f32 %v1116, %v1425
  %v1427 = vpop.f32.mrf.mxu0
  %1428 = vmatprep.mubr.f32.mxu0 0.0
  %1429 = vmatmul.mubr.f32.gmra.mxu0 %v1207
  %v1430 = vpop.f32.mrf.mxu0
  %v1431 = vadd.f32 %v1116, %v1430
  %v1432 = vpop.f32.mrf.mxu0
  %1433 = vmatprep.mubr.f32.mxu0 0.0
  %1434 = vmatmul.mubr.f32.gmra.mxu0 %v1210
  %v1435 = vpop.f32.mrf.mxu0
  %v1436 = vadd.f32 %v1116, %v1435
  %v1437 = vpop.f32.mrf.mxu0
  %1438 = vmatprep.mubr.f32.mxu0 0.0
  %1439 = vmatmul.mubr.f32.gmra.mxu0 %v1213
  %v1440 = vpop.f32.mrf.mxu0
  %v1441 = vadd.f32 %v1116, %v1440
  %v1442 = vpop.f32.mrf.mxu0
  %1443 = vdwg.mxu0
  %v1444 = vmax.f32 %v1286, 0.0
  %v1445 = vmax.f32 %v1291, 0.0
  %v1446 = vmax.f32 %v1296, 0.0
  %v1447 = vmax.f32 %v1301, 0.0
  %v1448 = vmax.f32 %v1306, 0.0
  %v1449 = vmax.f32 %v1311, 0.0
  %v1450 = vmax.f32 %v1316, 0.0
  %v1451 = vmax.f32 %v1321, 0.0
  %v1452 = vmax.f32 %v1326, 0.0
  %v1453 = vmax.f32 %v1331, 0.0
  %v1454 = vmax.f32 %v1336, 0.0
  %v1455 = vmax.f32 %v1341, 0.0
  %v1456 = vmax.f32 %v1346, 0.0
  %v1457 = vmax.f32 %v1351, 0.0
  %v1458 = vmax.f32 %v1356, 0.0
  %v1459 = vmax.f32 %v1361, 0.0
  %v1460 = vmax.f32 %v1366, 0.0
  %v1461 = vmax.f32 %v1371, 0.0
  %v1462 = vmax.f32 %v1376, 0.0
  %v1463 = vmax.f32 %v1381, 0.0
  %v1464 = vmax.f32 %v1386, 0.0
  %v1465 = vmax.f32 %v1391, 0.0
  %v1466 = vmax.f32 %v1396, 0.0
  %v1467 = vmax.f32 %v1401, 0.0
  %v1468 = vmax.f32 %v1406, 0.0
  %v1469 = vmax.f32 %v1411, 0.0
  %v1470 = vmax.f32 %v1416, 0.0
  %v1471 = vmax.f32 %v1421, 0.0
  %v1472 = vmax.f32 %v1426, 0.0
  %v1473 = vmax.f32 %v1431, 0.0
  %v1474 = vmax.f32 %v1436, 0.0
  %v1475 = vmax.f32 %v1441, 0.0
  %vm1476 = vcmask 64512
  %1477 = vst.msk [vmem:[%s4] sm:$0xff] %vm1476, %v1444
  %1478 = vst.msk [vmem:[%s4 + $0x8] sm:$0xff] %vm1476, %v1445
  %1479 = vst.msk [vmem:[%s4 + $0x10] sm:$0xff] %vm1476, %v1446
  %1480 = vst.msk [vmem:[%s4 + $0x18] sm:$0xff] %vm1476, %v1447
  %1481 = vst.msk [vmem:[%s4 + $0x20] sm:$0xff] %vm1476, %v1448
  %1482 = vst.msk [vmem:[%s4 + $0x28] sm:$0xff] %vm1476, %v1449
  %1483 = vst.msk [vmem:[%s4 + $0x30] sm:$0xff] %vm1476, %v1450
  %1484 = vst.msk [vmem:[%s4 + $0x38] sm:$0xff] %vm1476, %v1451
  %1485 = vst.msk [vmem:[%s4 + $0x40] sm:$0xff] %vm1476, %v1452
  %1486 = vst.msk [vmem:[%s4 + $0x48] sm:$0xff] %vm1476, %v1453
  %1487 = vst.msk [vmem:[%s4 + $0x50] sm:$0xff] %vm1476, %v1454
  %1488 = vst.msk [vmem:[%s4 + $0x58] sm:$0xff] %vm1476, %v1455
  %1489 = vst.msk [vmem:[%s4 + $0x60] sm:$0xff] %vm1476, %v1456
  %1490 = vst.msk [vmem:[%s4 + $0x68] sm:$0xff] %vm1476, %v1457
  %1491 = vst.msk [vmem:[%s4 + $0x70] sm:$0xff] %vm1476, %v1458
  %1492 = vst.msk [vmem:[%s4 + $0x78] sm:$0xff] %vm1476, %v1459
  %1493 = vst.msk [vmem:[%s4 + $0x80] sm:$0xff] %vm1476, %v1460
  %1494 = vst.msk [vmem:[%s4 + $0x88] sm:$0xff] %vm1476, %v1461
  %1495 = vst.msk [vmem:[%s4 + $0x90] sm:$0xff] %vm1476, %v1462
  %1496 = vst.msk [vmem:[%s4 + $0x98] sm:$0xff] %vm1476, %v1463
  %1497 = vst.msk [vmem:[%s4 + $0xa0] sm:$0xff] %vm1476, %v1464
  %1498 = vst.msk [vmem:[%s4 + $0xa8] sm:$0xff] %vm1476, %v1465
  %1499 = vst.msk [vmem:[%s4 + $0xb0] sm:$0xff] %vm1476, %v1466
  %1500 = vst.msk [vmem:[%s4 + $0xb8] sm:$0xff] %vm1476, %v1467
  %1501 = vst.msk [vmem:[%s4 + $0xc0] sm:$0xff] %vm1476, %v1468
  %1502 = vst.msk [vmem:[%s4 + $0xc8] sm:$0xff] %vm1476, %v1469
  %1503 = vst.msk [vmem:[%s4 + $0xd0] sm:$0xff] %vm1476, %v1470
  %1504 = vst.msk [vmem:[%s4 + $0xd8] sm:$0xff] %vm1476, %v1471
  %1505 = vst.msk [vmem:[%s4 + $0xe0] sm:$0xff] %vm1476, %v1472
  %1506 = vst.msk [vmem:[%s4 + $0xe8] sm:$0xff] %vm1476, %v1473
  %1507 = vst.msk [vmem:[%s4 + $0xf0] sm:$0xff] %vm1476, %v1474
  %1508 = vst.msk [vmem:[%s4 + $0xf8] sm:$0xff] %vm1476, %v1475
  // Predicated region
  $region18: #{lfa_forward.6} parent=0 // pred_check
    _
  $region19: #{lfa_forward.6} parent=0 // pred_check_branch
    %1510 = sbr.rel (0) target = $region21
  $region20: #{lfa_forward.6} parent=0 // pred_region
    _
  $region21: #{lfa_forward.6} parent=0 // pred_fallthru
    _
  // Predicated region
  $region22: #{lfa_forward.6} parent=0 // pred_check
    _
  $region23: #{lfa_forward.6} parent=0 // pred_check_branch
    %1512 = sbr.rel (0) target = $region25
  $region24: #{lfa_forward.6} parent=0 // pred_region
    _
  $region25: #{lfa_forward.6} parent=0 // pred_fallthru
    _

// kernel: lfa_forward.7
$region0: #{lfa_forward.7}
  #allocation0 [shape = 'u32[]', space=smem, size = 0x4, offset = 0x4, fixed_abs, tag = 'smem constant byte address 0x4 - core index']
  #allocation1 [shape = 'u32[144,128]{1,0:T(1,128)}', space=vmem, size = 0x12000, scoped, tag = 'internal scratch']
  %s0 = inlined_call_operand.vmem [shape: f32[32,8,8], index: 0, kind: input, shape index: {}]
  %s1 = inlined_call_operand.vmem [shape: f32[32,8,8], index: 1, kind: input, shape index: {}]
  %s2 = inlined_call_operand.vmem [shape: f32[16,16], index: 2, kind: input, shape index: {}]
  %s3 = inlined_call_operand.vmem [shape: f32[16,8], index: 3, kind: input, shape index: {}]
  %s4 = inlined_call_operand.vmem [shape: f32[1,8], index: 4, kind: input, shape index: {}]
  %s5 = inlined_call_operand.vmem [shape: f32[32,8], index: 5, kind: output, shape index: {}]
  %s6 = sld [smem:[#allocation0]]
  $region30: #{lfa_forward.7} parent=0
    _
  %s8 = ssub.s32 1, %s6
  %s9 = scalar_select 0, %s8, %s6
  // Predicated region
  $region2: #{lfa_forward.7} parent=0 // pred_check
    _
  $region3: #{lfa_forward.7} parent=0 // pred_check_branch
    %11 = sbr.rel (0) target = $region5
  $region4: #{lfa_forward.7} parent=0 // pred_region
    _
  $region5: #{lfa_forward.7} parent=0 // pred_fallthru
    _
  // Predicated region
  $region6: #{lfa_forward.7} parent=0 // pred_check
    _
  $region7: #{lfa_forward.7} parent=0 // pred_check_branch
    %13 = sbr.rel (0) target = $region9
  $region8: #{lfa_forward.7} parent=0 // pred_region
    _
  $region9: #{lfa_forward.7} parent=0 // pred_fallthru
    _
  // Predicated region
  $region10: #{lfa_forward.7} parent=0 // pred_check
    _
  $region11: #{lfa_forward.7} parent=0 // pred_check_branch
    %15 = sbr.rel (0) target = $region13
  $region12: #{lfa_forward.7} parent=0 // pred_region
    _
  $region13: #{lfa_forward.7} parent=0 // pred_fallthru
    _
  // Predicated region
  $region14: #{lfa_forward.7} parent=0 // pred_check
    _
  $region15: #{lfa_forward.7} parent=0 // pred_check_branch
    %17 = sbr.rel (0) target = $region17
  $region16: #{lfa_forward.7} parent=0 // pred_region
    _
  $region17: #{lfa_forward.7} parent=0 // pred_fallthru
    _
  // Predicated region
  $region18: #{lfa_forward.7} parent=0 // pred_check
    _
  $region19: #{lfa_forward.7} parent=0 // pred_check_branch
    %19 = sbr.rel (0) target = $region21
  $region20: #{lfa_forward.7} parent=0 // pred_region
    _
  $region21: #{lfa_forward.7} parent=0 // pred_fallthru
    _
  %v20 = vld [vmem:[%s0] sm:$0xff]
  %v21 = vld [vmem:[%s0 + $0x8] sm:$0xff]
  %v22 = vld [vmem:[%s0 + $0x10] sm:$0xff]
  %v23 = vld [vmem:[%s0 + $0x18] sm:$0xff]
  %v24 = vld [vmem:[%s0 + $0x20] sm:$0xff]
  %v25 = vld [vmem:[%s0 + $0x28] sm:$0xff]
  %v26 = vld [vmem:[%s0 + $0x30] sm:$0xff]
  %v27 = vld [vmem:[%s0 + $0x38] sm:$0xff]
  %v28 = vld [vmem:[%s0 + $0x40] sm:$0xff]
  %v29 = vld [vmem:[%s0 + $0x48] sm:$0xff]
  %v30 = vld [vmem:[%s0 + $0x50] sm:$0xff]
  %v31 = vld [vmem:[%s0 + $0x58] sm:$0xff]
  %v32 = vld [vmem:[%s0 + $0x60] sm:$0xff]
  %v33 = vld [vmem:[%s0 + $0x68] sm:$0xff]
  %v34 = vld [vmem:[%s0 + $0x70] sm:$0xff]
  %v35 = vld [vmem:[%s0 + $0x78] sm:$0xff]
  %v36 = vld [vmem:[%s0 + $0x80] sm:$0xff]
  %v37 = vld [vmem:[%s0 + $0x88] sm:$0xff]
  %v38 = vld [vmem:[%s0 + $0x90] sm:$0xff]
  %v39 = vld [vmem:[%s0 + $0x98] sm:$0xff]
  %v40 = vld [vmem:[%s0 + $0xa0] sm:$0xff]
  %v41 = vld [vmem:[%s0 + $0xa8] sm:$0xff]
  %v42 = vld [vmem:[%s0 + $0xb0] sm:$0xff]
  %v43 = vld [vmem:[%s0 + $0xb8] sm:$0xff]
  %v44 = vld [vmem:[%s0 + $0xc0] sm:$0xff]
  %v45 = vld [vmem:[%s0 + $0xc8] sm:$0xff]
  %v46 = vld [vmem:[%s0 + $0xd0] sm:$0xff]
  %v47 = vld [vmem:[%s0 + $0xd8] sm:$0xff]
  %v48 = vld [vmem:[%s0 + $0xe0] sm:$0xff]
  %v49 = vld [vmem:[%s0 + $0xe8] sm:$0xff]
  %v50 = vld [vmem:[%s0 + $0xf0] sm:$0xff]
  %v51 = vld [vmem:[%s0 + $0xf8] sm:$0xff]
  %v52 = vld [vmem:[%s1] sm:$0xff]
  %v53 = vld [vmem:[%s1 + $0x8] sm:$0xff]
  %v54 = vld [vmem:[%s1 + $0x10] sm:$0xff]
  %v55 = vld [vmem:[%s1 + $0x18] sm:$0xff]
  %v56 = vld [vmem:[%s1 + $0x20] sm:$0xff]
  %v57 = vld [vmem:[%s1 + $0x28] sm:$0xff]
  %v58 = vld [vmem:[%s1 + $0x30] sm:$0xff]
  %v59 = vld [vmem:[%s1 + $0x38] sm:$0xff]
  %v60 = vld [vmem:[%s1 + $0x40] sm:$0xff]
  %v61 = vld [vmem:[%s1 + $0x48] sm:$0xff]
  %v62 = vld [vmem:[%s1 + $0x50] sm:$0xff]
  %v63 = vld [vmem:[%s1 + $0x58] sm:$0xff]
  %v64 = vld [vmem:[%s1 + $0x60] sm:$0xff]
  %v65 = vld [vmem:[%s1 + $0x68] sm:$0xff]
  %v66 = vld [vmem:[%s1 + $0x70] sm:$0xff]
  %v67 = vld [vmem:[%s1 + $0x78] sm:$0xff]
  %v68 = vld [vmem:[%s1 + $0x80] sm:$0xff]
  %v69 = vld [vmem:[%s1 + $0x88] sm:$0xff]
  %v70 = vld [vmem:[%s1 + $0x90] sm:$0xff]
  %v71 = vld [vmem:[%s1 + $0x98] sm:$0xff]
  %v72 = vld [vmem:[%s1 + $0xa0] sm:$0xff]
  %v73 = vld [vmem:[%s1 + $0xa8] sm:$0xff]
  %v74 = vld [vmem:[%s1 + $0xb0] sm:$0xff]
  %v75 = vld [vmem:[%s1 + $0xb8] sm:$0xff]
  %v76 = vld [vmem:[%s1 + $0xc0] sm:$0xff]
  %v77 = vld [vmem:[%s1 + $0xc8] sm:$0xff]
  %v78 = vld [vmem:[%s1 + $0xd0] sm:$0xff]
  %v79 = vld [vmem:[%s1 + $0xd8] sm:$0xff]
  %v80 = vld [vmem:[%s1 + $0xe0] sm:$0xff]
  %v81 = vld [vmem:[%s1 + $0xe8] sm:$0xff]
  %v82 = vld [vmem:[%s1 + $0xf0] sm:$0xff]
  %v83 = vld [vmem:[%s1 + $0xf8] sm:$0xff]
  %116 = vrot.lane.b32.xlu0 %v52, 8
  %v117 = vpop.permute.xlu0 %116
  %118 = vrot.lane.b32.xlu0 %v53, 8
  %v119 = vpop.permute.xlu0 %118
  %120 = vrot.lane.b32.xlu0 %v54, 8
  %v121 = vpop.permute.xlu0 %120
  %122 = vrot.lane.b32.xlu0 %v55, 8
  %v123 = vpop.permute.xlu0 %122
  %124 = vrot.lane.b32.xlu0 %v56, 8
  %v125 = vpop.permute.xlu0 %124
  %126 = vrot.lane.b32.xlu0 %v57, 8
  %v127 = vpop.permute.xlu0 %126
  %128 = vrot.lane.b32.xlu0 %v58, 8
  %v129 = vpop.permute.xlu0 %128
  %130 = vrot.lane.b32.xlu0 %v59, 8
  %v131 = vpop.permute.xlu0 %130
  %132 = vrot.lane.b32.xlu0 %v60, 8
  %v133 = vpop.permute.xlu0 %132
  %134 = vrot.lane.b32.xlu0 %v61, 8
  %v135 = vpop.permute.xlu0 %134
  %136 = vrot.lane.b32.xlu0 %v62, 8
  %v137 = vpop.permute.xlu0 %136
  %138 = vrot.lane.b32.xlu0 %v63, 8
  %v139 = vpop.permute.xlu0 %138
  %140 = vrot.lane.b32.xlu0 %v64, 8
  %v141 = vpop.permute.xlu0 %140
  %142 = vrot.lane.b32.xlu0 %v65, 8
  %v143 = vpop.permute.xlu0 %142
  %144 = vrot.lane.b32.xlu0 %v66, 8
  %v145 = vpop.permute.xlu0 %144
  %146 = vrot.lane.b32.xlu0 %v67, 8
  %v147 = vpop.permute.xlu0 %146
  %148 = vrot.lane.b32.xlu0 %v68, 8
  %v149 = vpop.permute.xlu0 %148
  %150 = vrot.lane.b32.xlu0 %v69, 8
  %v151 = vpop.permute.xlu0 %150
  %152 = vrot.lane.b32.xlu0 %v70, 8
  %v153 = vpop.permute.xlu0 %152
  %154 = vrot.lane.b32.xlu0 %v71, 8
  %v155 = vpop.permute.xlu0 %154
  %156 = vrot.lane.b32.xlu0 %v72, 8
  %v157 = vpop.permute.xlu0 %156
  %158 = vrot.lane.b32.xlu0 %v73, 8
  %v159 = vpop.permute.xlu0 %158
  %160 = vrot.lane.b32.xlu0 %v74, 8
  %v161 = vpop.permute.xlu0 %160
  %162 = vrot.lane.b32.xlu0 %v75, 8
  %v163 = vpop.permute.xlu0 %162
  %164 = vrot.lane.b32.xlu0 %v76, 8
  %v165 = vpop.permute.xlu0 %164
  %166 = vrot.lane.b32.xlu0 %v77, 8
  %v167 = vpop.permute.xlu0 %166
  %168 = vrot.lane.b32.xlu0 %v78, 8
  %v169 = vpop.permute.xlu0 %168
  %170 = vrot.lane.b32.xlu0 %v79, 8
  %v171 = vpop.permute.xlu0 %170
  %172 = vrot.lane.b32.xlu0 %v80, 8
  %v173 = vpop.permute.xlu0 %172
  %174 = vrot.lane.b32.xlu0 %v81, 8
  %v175 = vpop.permute.xlu0 %174
  %176 = vrot.lane.b32.xlu0 %v82, 8
  %v177 = vpop.permute.xlu0 %176
  %178 = vrot.lane.b32.xlu0 %v83, 8
  %v179 = vpop.permute.xlu0 %178
  %vm212 = vcmask 64512
  %v213 = vsel %vm212, %v20, %v117
  %v214 = vsel %vm212, %v21, %v119
  %v215 = vsel %vm212, %v22, %v121
  %v216 = vsel %vm212, %v23, %v123
  %v217 = vsel %vm212, %v24, %v125
  %v218 = vsel %vm212, %v25, %v127
  %v219 = vsel %vm212, %v26, %v129
  %v220 = vsel %vm212, %v27, %v131
  %v221 = vsel %vm212, %v28, %v133
  %v222 = vsel %vm212, %v29, %v135
  %v223 = vsel %vm212, %v30, %v137
  %v224 = vsel %vm212, %v31, %v139
  %v225 = vsel %vm212, %v32, %v141
  %v226 = vsel %vm212, %v33, %v143
  %v227 = vsel %vm212, %v34, %v145
  %v228 = vsel %vm212, %v35, %v147
  %v229 = vsel %vm212, %v36, %v149
  %v230 = vsel %vm212, %v37, %v151
  %v231 = vsel %vm212, %v38, %v153
  %v232 = vsel %vm212, %v39, %v155
  %v233 = vsel %vm212, %v40, %v157
  %v234 = vsel %vm212, %v41, %v159
  %v235 = vsel %vm212, %v42, %v161
  %v236 = vsel %vm212, %v43, %v163
  %v237 = vsel %vm212, %v44, %v165
  %v238 = vsel %vm212, %v45, %v167
  %v239 = vsel %vm212, %v46, %v169
  %v240 = vsel %vm212, %v47, %v171
  %v241 = vsel %vm212, %v48, %v173
  %v242 = vsel %vm212, %v49, %v175
  %v243 = vsel %vm212, %v50, %v177
  %v244 = vsel %vm212, %v51, %v179
  %v245 = vld [vmem:[%s2] sm:$0xff]
  %v246 = vld [vmem:[%s2 + $0x8] sm:$0xff]
  %vm247 = vcmask 130048
  %v249 = vsel %vm247, %v213, 0
  %v252 = vsel %vm247, %v214, 0
  %v255 = vsel %vm247, %v215, 0
  %v258 = vsel %vm247, %v216, 0
  %v261 = vsel %vm247, %v217, 0
  %v264 = vsel %vm247, %v218, 0
  %v267 = vsel %vm247, %v219, 0
  %v270 = vsel %vm247, %v220, 0
  %v273 = vsel %vm247, %v221, 0
  %v276 = vsel %vm247, %v222, 0
  %v279 = vsel %vm247, %v223, 0
  %v282 = vsel %vm247, %v224, 0
  %v285 = vsel %vm247, %v225, 0
  %v288 = vsel %vm247, %v226, 0
  %v291 = vsel %vm247, %v227, 0
  %v294 = vsel %vm247, %v228, 0
  %v297 = vsel %vm247, %v229, 0
  %v300 = vsel %vm247, %v230, 0
  %v303 = vsel %vm247, %v231, 0
  %v306 = vsel %vm247, %v232, 0
  %v309 = vsel %vm247, %v233, 0
  %v312 = vsel %vm247, %v234, 0
  %v315 = vsel %vm247, %v235, 0
  %v318 = vsel %vm247, %v236, 0
  %v321 = vsel %vm247, %v237, 0
  %v324 = vsel %vm247, %v238, 0
  %v327 = vsel %vm247, %v239, 0
  %v330 = vsel %vm247, %v240, 0
  %v333 = vsel %vm247, %v241, 0
  %v336 = vsel %vm247, %v242, 0
  %v339 = vsel %vm247, %v243, 0
  %v342 = vsel %vm247, %v244, 0
  %344 = vmatprep.subr.mxu0 0.0
  %345 = vmatpush1.msra.mxu0 0.0
  %346 = vmatprep.subr.mxu0 0.0
  %347 = vmatpush1.msra.mxu0 0.0
  %348 = vmatprep.subr.mxu0 0.0
  %349 = vmatpush1.msra.mxu0 0.0
  %350 = vmatprep.subr.mxu0 0.0
  %351 = vmatpush1.msra.mxu0 0.0
  %352 = vmatprep.subr.mxu0 0.0
  %353 = vmatpush1.msra.mxu0 0.0
  %354 = vmatprep.subr.mxu0 0.0
  %355 = vmatpush1.msra.mxu0 0.0
  %356 = vmatprep.subr.mxu0 0.0
  %357 = vmatpush1.msra.mxu0 0.0
  %358 = vmatprep.subr.mxu0 0.0
  %359 = vmatpush1.msra.mxu0 0.0
  %360 = vmatprep.subr.mxu0 0.0
  %361 = vmatpush1.msra.mxu0 0.0
  %362 = vmatprep.subr.mxu0 0.0
  %363 = vmatpush1.msra.mxu0 0.0
  %364 = vmatprep.subr.mxu0 0.0
  %365 = vmatpush1.msra.mxu0 0.0
  %366 = vmatprep.subr.mxu0 0.0
  %367 = vmatpush1.msra.mxu0 0.0
  %368 = vmatprep.subr.mxu0 0.0
  %369 = vmatpush1.msra.mxu0 0.0
  %370 = vmatprep.subr.mxu0 0.0
  %371 = vmatpush1.msra.mxu0 0.0
  %372 = vmatprep.subr.mxu0 0.0
  %373 = vmatpush1.msra.mxu0 %v246
  %374 = vmatprep.subr.mxu0 0.0
  %375 = vmatpush1.msra.mxu0 %v245
  %376 = vmatprep.subr.mxu0 0.0
  %377 = vmatpush2.msra.mxu0 0.0
  %378 = vmatprep.subr.mxu0 0.0
  %379 = vmatpush2.msra.mxu0 0.0
  %380 = vmatprep.subr.mxu0 0.0
  %381 = vmatpush2.msra.mxu0 0.0
  %382 = vmatprep.subr.mxu0 0.0
  %383 = vmatpush2.msra.mxu0 0.0
  %384 = vmatprep.subr.mxu0 0.0
  %385 = vmatpush2.msra.mxu0 0.0
  %386 = vmatprep.subr.mxu0 0.0
  %387 = vmatpush2.msra.mxu0 0.0
  %388 = vmatprep.subr.mxu0 0.0
  %389 = vmatpush2.msra.mxu0 0.0
  %390 = vmatprep.subr.mxu0 0.0
  %391 = vmatpush2.msra.mxu0 0.0
  %392 = vmatprep.subr.mxu0 0.0
  %393 = vmatpush2.msra.mxu0 0.0
  %394 = vmatprep.subr.mxu0 0.0
  %395 = vmatpush2.msra.mxu0 0.0
  %396 = vmatprep.subr.mxu0 0.0
  %397 = vmatpush2.msra.mxu0 0.0
  %398 = vmatprep.subr.mxu0 0.0
  %399 = vmatpush2.msra.mxu0 0.0
  %400 = vmatprep.subr.mxu0 0.0
  %401 = vmatpush2.msra.mxu0 0.0
  %402 = vmatprep.subr.mxu0 0.0
  %403 = vmatpush2.msra.mxu0 0.0
  %404 = vmatprep.subr.mxu0 0.0
  %405 = vmatpush2.msra.mxu0 0.0
  %406 = vmatprep.subr.mxu0 0.0
  %407 = vmatpush2.msra.mxu0 0.0
  %408 = vmatprep.mubr.f32.mxu0 0.0
  %409 = vmatmul.mubr.f32.gmra.mxu0 %v249
  %v410 = vpop.f32.mrf.mxu0
  %v411 = vadd.f32 0.0, %v410
  %v412 = vpop.f32.mrf.mxu0
  %413 = vmatprep.mubr.f32.mxu0 0.0
  %414 = vmatmul.mubr.f32.gmra.mxu0 %v252
  %v415 = vpop.f32.mrf.mxu0
  %v416 = vadd.f32 0.0, %v415
  %v417 = vpop.f32.mrf.mxu0
  %418 = vmatprep.mubr.f32.mxu0 0.0
  %419 = vmatmul.mubr.f32.gmra.mxu0 %v255
  %v420 = vpop.f32.mrf.mxu0
  %v421 = vadd.f32 0.0, %v420
  %v422 = vpop.f32.mrf.mxu0
  %423 = vmatprep.mubr.f32.mxu0 0.0
  %424 = vmatmul.mubr.f32.gmra.mxu0 %v258
  %v425 = vpop.f32.mrf.mxu0
  %v426 = vadd.f32 0.0, %v425
  %v427 = vpop.f32.mrf.mxu0
  %428 = vmatprep.mubr.f32.mxu0 0.0
  %429 = vmatmul.mubr.f32.gmra.mxu0 %v261
  %v430 = vpop.f32.mrf.mxu0
  %v431 = vadd.f32 0.0, %v430
  %v432 = vpop.f32.mrf.mxu0
  %433 = vmatprep.mubr.f32.mxu0 0.0
  %434 = vmatmul.mubr.f32.gmra.mxu0 %v264
  %v435 = vpop.f32.mrf.mxu0
  %v436 = vadd.f32 0.0, %v435
  %v437 = vpop.f32.mrf.mxu0
  %438 = vmatprep.mubr.f32.mxu0 0.0
  %439 = vmatmul.mubr.f32.gmra.mxu0 %v267
  %v440 = vpop.f32.mrf.mxu0
  %v441 = vadd.f32 0.0, %v440
  %v442 = vpop.f32.mrf.mxu0
  %443 = vmatprep.mubr.f32.mxu0 0.0
  %444 = vmatmul.mubr.f32.gmra.mxu0 %v270
  %v445 = vpop.f32.mrf.mxu0
  %v446 = vadd.f32 0.0, %v445
  %v447 = vpop.f32.mrf.mxu0
  %448 = vmatprep.mubr.f32.mxu0 0.0
  %449 = vmatmul.mubr.f32.gmra.mxu0 %v273
  %v450 = vpop.f32.mrf.mxu0
  %v451 = vadd.f32 0.0, %v450
  %v452 = vpop.f32.mrf.mxu0
  %453 = vmatprep.mubr.f32.mxu0 0.0
  %454 = vmatmul.mubr.f32.gmra.mxu0 %v276
  %v455 = vpop.f32.mrf.mxu0
  %v456 = vadd.f32 0.0, %v455
  %v457 = vpop.f32.mrf.mxu0
  %458 = vmatprep.mubr.f32.mxu0 0.0
  %459 = vmatmul.mubr.f32.gmra.mxu0 %v279
  %v460 = vpop.f32.mrf.mxu0
  %v461 = vadd.f32 0.0, %v460
  %v462 = vpop.f32.mrf.mxu0
  %463 = vmatprep.mubr.f32.mxu0 0.0
  %464 = vmatmul.mubr.f32.gmra.mxu0 %v282
  %v465 = vpop.f32.mrf.mxu0
  %v466 = vadd.f32 0.0, %v465
  %v467 = vpop.f32.mrf.mxu0
  %468 = vmatprep.mubr.f32.mxu0 0.0
  %469 = vmatmul.mubr.f32.gmra.mxu0 %v285
  %v470 = vpop.f32.mrf.mxu0
  %v471 = vadd.f32 0.0, %v470
  %v472 = vpop.f32.mrf.mxu0
  %473 = vmatprep.mubr.f32.mxu0 0.0
  %474 = vmatmul.mubr.f32.gmra.mxu0 %v288
  %v475 = vpop.f32.mrf.mxu0
  %v476 = vadd.f32 0.0, %v475
  %v477 = vpop.f32.mrf.mxu0
  %478 = vmatprep.mubr.f32.mxu0 0.0
  %479 = vmatmul.mubr.f32.gmra.mxu0 %v291
  %v480 = vpop.f32.mrf.mxu0
  %v481 = vadd.f32 0.0, %v480
  %v482 = vpop.f32.mrf.mxu0
  %483 = vmatprep.mubr.f32.mxu0 0.0
  %484 = vmatmul.mubr.f32.gmra.mxu0 %v294
  %v485 = vpop.f32.mrf.mxu0
  %v486 = vadd.f32 0.0, %v485
  %v487 = vpop.f32.mrf.mxu0
  %488 = vmatprep.mubr.f32.mxu0 0.0
  %489 = vmatmul.mubr.f32.gmra.mxu0 %v297
  %v490 = vpop.f32.mrf.mxu0
  %v491 = vadd.f32 0.0, %v490
  %v492 = vpop.f32.mrf.mxu0
  %493 = vmatprep.mubr.f32.mxu0 0.0
  %494 = vmatmul.mubr.f32.gmra.mxu0 %v300
  %v495 = vpop.f32.mrf.mxu0
  %v496 = vadd.f32 0.0, %v495
  %v497 = vpop.f32.mrf.mxu0
  %498 = vmatprep.mubr.f32.mxu0 0.0
  %499 = vmatmul.mubr.f32.gmra.mxu0 %v303
  %v500 = vpop.f32.mrf.mxu0
  %v501 = vadd.f32 0.0, %v500
  %v502 = vpop.f32.mrf.mxu0
  %503 = vmatprep.mubr.f32.mxu0 0.0
  %504 = vmatmul.mubr.f32.gmra.mxu0 %v306
  %v505 = vpop.f32.mrf.mxu0
  %v506 = vadd.f32 0.0, %v505
  %v507 = vpop.f32.mrf.mxu0
  %508 = vmatprep.mubr.f32.mxu0 0.0
  %509 = vmatmul.mubr.f32.gmra.mxu0 %v309
  %v510 = vpop.f32.mrf.mxu0
  %v511 = vadd.f32 0.0, %v510
  %v512 = vpop.f32.mrf.mxu0
  %513 = vmatprep.mubr.f32.mxu0 0.0
  %514 = vmatmul.mubr.f32.gmra.mxu0 %v312
  %v515 = vpop.f32.mrf.mxu0
  %v516 = vadd.f32 0.0, %v515
  %v517 = vpop.f32.mrf.mxu0
  %518 = vmatprep.mubr.f32.mxu0 0.0
  %519 = vmatmul.mubr.f32.gmra.mxu0 %v315
  %v520 = vpop.f32.mrf.mxu0
  %v521 = vadd.f32 0.0, %v520
  %v522 = vpop.f32.mrf.mxu0
  %523 = vmatprep.mubr.f32.mxu0 0.0
  %524 = vmatmul.mubr.f32.gmra.mxu0 %v318
  %v525 = vpop.f32.mrf.mxu0
  %v526 = vadd.f32 0.0, %v525
  %v527 = vpop.f32.mrf.mxu0
  %528 = vmatprep.mubr.f32.mxu0 0.0
  %529 = vmatmul.mubr.f32.gmra.mxu0 %v321
  %v530 = vpop.f32.mrf.mxu0
  %v531 = vadd.f32 0.0, %v530
  %v532 = vpop.f32.mrf.mxu0
  %533 = vmatprep.mubr.f32.mxu0 0.0
  %534 = vmatmul.mubr.f32.gmra.mxu0 %v324
  %v535 = vpop.f32.mrf.mxu0
  %v536 = vadd.f32 0.0, %v535
  %v537 = vpop.f32.mrf.mxu0
  %538 = vmatprep.mubr.f32.mxu0 0.0
  %539 = vmatmul.mubr.f32.gmra.mxu0 %v327
  %v540 = vpop.f32.mrf.mxu0
  %v541 = vadd.f32 0.0, %v540
  %v542 = vpop.f32.mrf.mxu0
  %543 = vmatprep.mubr.f32.mxu0 0.0
  %544 = vmatmul.mubr.f32.gmra.mxu0 %v330
  %v545 = vpop.f32.mrf.mxu0
  %v546 = vadd.f32 0.0, %v545
  %v547 = vpop.f32.mrf.mxu0
  %548 = vmatprep.mubr.f32.mxu0 0.0
  %549 = vmatmul.mubr.f32.gmra.mxu0 %v333
  %v550 = vpop.f32.mrf.mxu0
  %v551 = vadd.f32 0.0, %v550
  %v552 = vpop.f32.mrf.mxu0
  %553 = vmatprep.mubr.f32.mxu0 0.0
  %554 = vmatmul.mubr.f32.gmra.mxu0 %v336
  %v555 = vpop.f32.mrf.mxu0
  %v556 = vadd.f32 0.0, %v555
  %v557 = vpop.f32.mrf.mxu0
  %558 = vmatprep.mubr.f32.mxu0 0.0
  %559 = vmatmul.mubr.f32.gmra.mxu0 %v339
  %v560 = vpop.f32.mrf.mxu0
  %v561 = vadd.f32 0.0, %v560
  %v562 = vpop.f32.mrf.mxu0
  %563 = vmatprep.mubr.f32.mxu0 0.0
  %564 = vmatmul.mubr.f32.gmra.mxu0 %v342
  %v565 = vpop.f32.mrf.mxu0
  %v566 = vadd.f32 0.0, %v565
  %v567 = vpop.f32.mrf.mxu0
  %568 = vdwg.mxu0
  %v569 = vsel %vm247, %v411, -inf
  %v570 = vrot.slane %v569, 4
  %v571 = vmax.f32 %v569, %v570
  %v572 = vrot.slane %v571, 2
  %v573 = vmax.f32 %v571, %v572
  %v574 = vrot.slane %v573, 1
  %v575 = vmax.f32 %v573, %v574
  %v576 = vsel %vm247, %v416, -inf
  %v577 = vrot.slane %v576, 4
  %v578 = vmax.f32 %v576, %v577
  %v579 = vrot.slane %v578, 2
  %v580 = vmax.f32 %v578, %v579
  %v581 = vrot.slane %v580, 1
  %v582 = vmax.f32 %v580, %v581
  %v583 = vsel %vm247, %v421, -inf
  %v584 = vrot.slane %v583, 4
  %v585 = vmax.f32 %v583, %v584
  %v586 = vrot.slane %v585, 2
  %v587 = vmax.f32 %v585, %v586
  %v588 = vrot.slane %v587, 1
  %v589 = vmax.f32 %v587, %v588
  %v590 = vsel %vm247, %v426, -inf
  %v591 = vrot.slane %v590, 4
  %v592 = vmax.f32 %v590, %v591
  %v593 = vrot.slane %v592, 2
  %v594 = vmax.f32 %v592, %v593
  %v595 = vrot.slane %v594, 1
  %v596 = vmax.f32 %v594, %v595
  %v597 = vsel %vm247, %v431, -inf
  %v598 = vrot.slane %v597, 4
  %v599 = vmax.f32 %v597, %v598
  %v600 = vrot.slane %v599, 2
  %v601 = vmax.f32 %v599, %v600
  %v602 = vrot.slane %v601, 1
  %v603 = vmax.f32 %v601, %v602
  %v604 = vsel %vm247, %v436, -inf
  %v605 = vrot.slane %v604, 4
  %v606 = vmax.f32 %v604, %v605
  %v607 = vrot.slane %v606, 2
  %v608 = vmax.f32 %v606, %v607
  %v609 = vrot.slane %v608, 1
  %v610 = vmax.f32 %v608, %v609
  %v611 = vsel %vm247, %v441, -inf
  %v612 = vrot.slane %v611, 4
  %v613 = vmax.f32 %v611, %v612
  %v614 = vrot.slane %v613, 2
  %v615 = vmax.f32 %v613, %v614
  %v616 = vrot.slane %v615, 1
  %v617 = vmax.f32 %v615, %v616
  %v618 = vsel %vm247, %v446, -inf
  %v619 = vrot.slane %v618, 4
  %v620 = vmax.f32 %v618, %v619
  %v621 = vrot.slane %v620, 2
  %v622 = vmax.f32 %v620, %v621
  %v623 = vrot.slane %v622, 1
  %v624 = vmax.f32 %v622, %v623
  %v625 = vsel %vm247, %v451, -inf
  %v626 = vrot.slane %v625, 4
  %v627 = vmax.f32 %v625, %v626
  %v628 = vrot.slane %v627, 2
  %v629 = vmax.f32 %v627, %v628
  %v630 = vrot.slane %v629, 1
  %v631 = vmax.f32 %v629, %v630
  %v632 = vsel %vm247, %v456, -inf
  %v633 = vrot.slane %v632, 4
  %v634 = vmax.f32 %v632, %v633
  %v635 = vrot.slane %v634, 2
  %v636 = vmax.f32 %v634, %v635
  %v637 = vrot.slane %v636, 1
  %v638 = vmax.f32 %v636, %v637
  %v639 = vsel %vm247, %v461, -inf
  %v640 = vrot.slane %v639, 4
  %v641 = vmax.f32 %v639, %v640
  %v642 = vrot.slane %v641, 2
  %v643 = vmax.f32 %v641, %v642
  %v644 = vrot.slane %v643, 1
  %v645 = vmax.f32 %v643, %v644
  %v646 = vsel %vm247, %v466, -inf
  %v647 = vrot.slane %v646, 4
  %v648 = vmax.f32 %v646, %v647
  %v649 = vrot.slane %v648, 2
  %v650 = vmax.f32 %v648, %v649
  %v651 = vrot.slane %v650, 1
  %v652 = vmax.f32 %v650, %v651
  %v653 = vsel %vm247, %v471, -inf
  %v654 = vrot.slane %v653, 4
  %v655 = vmax.f32 %v653, %v654
  %v656 = vrot.slane %v655, 2
  %v657 = vmax.f32 %v655, %v656
  %v658 = vrot.slane %v657, 1
  %v659 = vmax.f32 %v657, %v658
  %v660 = vsel %vm247, %v476, -inf
  %v661 = vrot.slane %v660, 4
  %v662 = vmax.f32 %v660, %v661
  %v663 = vrot.slane %v662, 2
  %v664 = vmax.f32 %v662, %v663
  %v665 = vrot.slane %v664, 1
  %v666 = vmax.f32 %v664, %v665
  %v667 = vsel %vm247, %v481, -inf
  %v668 = vrot.slane %v667, 4
  %v669 = vmax.f32 %v667, %v668
  %v670 = vrot.slane %v669, 2
  %v671 = vmax.f32 %v669, %v670
  %v672 = vrot.slane %v671, 1
  %v673 = vmax.f32 %v671, %v672
  %v674 = vsel %vm247, %v486, -inf
  %v675 = vrot.slane %v674, 4
  %v676 = vmax.f32 %v674, %v675
  %v677 = vrot.slane %v676, 2
  %v678 = vmax.f32 %v676, %v677
  %v679 = vrot.slane %v678, 1
  %v680 = vmax.f32 %v678, %v679
  %v681 = vsel %vm247, %v491, -inf
  %v682 = vrot.slane %v681, 4
  %v683 = vmax.f32 %v681, %v682
  %v684 = vrot.slane %v683, 2
  %v685 = vmax.f32 %v683, %v684
  %v686 = vrot.slane %v685, 1
  %v687 = vmax.f32 %v685, %v686
  %v688 = vsel %vm247, %v496, -inf
  %v689 = vrot.slane %v688, 4
  %v690 = vmax.f32 %v688, %v689
  %v691 = vrot.slane %v690, 2
  %v692 = vmax.f32 %v690, %v691
  %v693 = vrot.slane %v692, 1
  %v694 = vmax.f32 %v692, %v693
  %v695 = vsel %vm247, %v501, -inf
  %v696 = vrot.slane %v695, 4
  %v697 = vmax.f32 %v695, %v696
  %v698 = vrot.slane %v697, 2
  %v699 = vmax.f32 %v697, %v698
  %v700 = vrot.slane %v699, 1
  %v701 = vmax.f32 %v699, %v700
  %v702 = vsel %vm247, %v506, -inf
  %v703 = vrot.slane %v702, 4
  %v704 = vmax.f32 %v702, %v703
  %v705 = vrot.slane %v704, 2
  %v706 = vmax.f32 %v704, %v705
  %v707 = vrot.slane %v706, 1
  %v708 = vmax.f32 %v706, %v707
  %v709 = vsel %vm247, %v511, -inf
  %v710 = vrot.slane %v709, 4
  %v711 = vmax.f32 %v709, %v710
  %v712 = vrot.slane %v711, 2
  %v713 = vmax.f32 %v711, %v712
  %v714 = vrot.slane %v713, 1
  %v715 = vmax.f32 %v713, %v714
  %v716 = vsel %vm247, %v516, -inf
  %v717 = vrot.slane %v716, 4
  %v718 = vmax.f32 %v716, %v717
  %v719 = vrot.slane %v718, 2
  %v720 = vmax.f32 %v718, %v719
  %v721 = vrot.slane %v720, 1
  %v722 = vmax.f32 %v720, %v721
  %v723 = vsel %vm247, %v521, -inf
  %v724 = vrot.slane %v723, 4
  %v725 = vmax.f32 %v723, %v724
  %v726 = vrot.slane %v725, 2
  %v727 = vmax.f32 %v725, %v726
  %v728 = vrot.slane %v727, 1
  %v729 = vmax.f32 %v727, %v728
  %v730 = vsel %vm247, %v526, -inf
  %v731 = vrot.slane %v730, 4
  %v732 = vmax.f32 %v730, %v731
  %v733 = vrot.slane %v732, 2
  %v734 = vmax.f32 %v732, %v733
  %v735 = vrot.slane %v734, 1
  %v736 = vmax.f32 %v734, %v735
  %v737 = vsel %vm247, %v531, -inf
  %v738 = vrot.slane %v737, 4
  %v739 = vmax.f32 %v737, %v738
  %v740 = vrot.slane %v739, 2
  %v741 = vmax.f32 %v739, %v740
  %v742 = vrot.slane %v741, 1
  %v743 = vmax.f32 %v741, %v742
  %v744 = vsel %vm247, %v536, -inf
  %v745 = vrot.slane %v744, 4
  %v746 = vmax.f32 %v744, %v745
  %v747 = vrot.slane %v746, 2
  %v748 = vmax.f32 %v746, %v747
  %v749 = vrot.slane %v748, 1
  %v750 = vmax.f32 %v748, %v749
  %v751 = vsel %vm247, %v541, -inf
  %v752 = vrot.slane %v751, 4
  %v753 = vmax.f32 %v751, %v752
  %v754 = vrot.slane %v753, 2
  %v755 = vmax.f32 %v753, %v754
  %v756 = vrot.slane %v755, 1
  %v757 = vmax.f32 %v755, %v756
  %v758 = vsel %vm247, %v546, -inf
  %v759 = vrot.slane %v758, 4
  %v760 = vmax.f32 %v758, %v759
  %v761 = vrot.slane %v760, 2
  %v762 = vmax.f32 %v760, %v761
  %v763 = vrot.slane %v762, 1
  %v764 = vmax.f32 %v762, %v763
  %v765 = vsel %vm247, %v551, -inf
  %v766 = vrot.slane %v765, 4
  %v767 = vmax.f32 %v765, %v766
  %v768 = vrot.slane %v767, 2
  %v769 = vmax.f32 %v767, %v768
  %v770 = vrot.slane %v769, 1
  %v771 = vmax.f32 %v769, %v770
  %v772 = vsel %vm247, %v556, -inf
  %v773 = vrot.slane %v772, 4
  %v774 = vmax.f32 %v772, %v773
  %v775 = vrot.slane %v774, 2
  %v776 = vmax.f32 %v774, %v775
  %v777 = vrot.slane %v776, 1
  %v778 = vmax.f32 %v776, %v777
  %v779 = vsel %vm247, %v561, -inf
  %v780 = vrot.slane %v779, 4
  %v781 = vmax.f32 %v779, %v780
  %v782 = vrot.slane %v781, 2
  %v783 = vmax.f32 %v781, %v782
  %v784 = vrot.slane %v783, 1
  %v785 = vmax.f32 %v783, %v784
  %v786 = vsel %vm247, %v566, -inf
  %v787 = vrot.slane %v786, 4
  %v788 = vmax.f32 %v786, %v787
  %v789 = vrot.slane %v788, 2
  %v790 = vmax.f32 %v788, %v789
  %v791 = vrot.slane %v790, 1
  %v792 = vmax.f32 %v790, %v791
  %v793 = vsub.f32 %v411, %v575
  %v794 = vsub.f32 %v416, %v582
  %v795 = vsub.f32 %v421, %v589
  %v796 = vsub.f32 %v426, %v596
  %v797 = vsub.f32 %v431, %v603
  %v798 = vsub.f32 %v436, %v610
  %v799 = vsub.f32 %v441, %v617
  %v800 = vsub.f32 %v446, %v624
  %v801 = vsub.f32 %v451, %v631
  %v802 = vsub.f32 %v456, %v638
  %v803 = vsub.f32 %v461, %v645
  %v804 = vsub.f32 %v466, %v652
  %v805 = vsub.f32 %v471, %v659
  %v806 = vsub.f32 %v476, %v666
  %v807 = vsub.f32 %v481, %v673
  %v808 = vsub.f32 %v486, %v680
  %v809 = vsub.f32 %v491, %v687
  %v810 = vsub.f32 %v496, %v694
  %v811 = vsub.f32 %v501, %v701
  %v812 = vsub.f32 %v506, %v708
  %v813 = vsub.f32 %v511, %v715
  %v814 = vsub.f32 %v516, %v722
  %v815 = vsub.f32 %v521, %v729
  %v816 = vsub.f32 %v526, %v736
  %v817 = vsub.f32 %v531, %v743
  %v818 = vsub.f32 %v536, %v750
  %v819 = vsub.f32 %v541, %v757
  %v820 = vsub.f32 %v546, %v764
  %v821 = vsub.f32 %v551, %v771
  %v822 = vsub.f32 %v556, %v778
  %v823 = vsub.f32 %v561, %v785
  %v824 = vsub.f32 %v566, %v792
  %v825 = vmul.f32 %v793, 1.442695
  %v826 = vpow.pop %v825
  %v827 = vmul.f32 %v794, 1.442695
  %v828 = vpow.pop %v827
  %v829 = vmul.f32 %v795, 1.442695
  %v830 = vpow.pop %v829
  %v831 = vmul.f32 %v796, 1.442695
  %v832 = vpow.pop %v831
  %v833 = vmul.f32 %v797, 1.442695
  %v834 = vpow.pop %v833
  %v835 = vmul.f32 %v798, 1.442695
  %v836 = vpow.pop %v835
  %v837 = vmul.f32 %v799, 1.442695
  %v838 = vpow.pop %v837
  %v839 = vmul.f32 %v800, 1.442695
  %v840 = vpow.pop %v839
  %v841 = vmul.f32 %v801, 1.442695
  %v842 = vpow.pop %v841
  %v843 = vmul.f32 %v802, 1.442695
  %v844 = vpow.pop %v843
  %v845 = vmul.f32 %v803, 1.442695
  %v846 = vpow.pop %v845
  %v847 = vmul.f32 %v804, 1.442695
  %v848 = vpow.pop %v847
  %v849 = vmul.f32 %v805, 1.442695
  %v850 = vpow.pop %v849
  %v851 = vmul.f32 %v806, 1.442695
  %v852 = vpow.pop %v851
  %v853 = vmul.f32 %v807, 1.442695
  %v854 = vpow.pop %v853
  %v855 = vmul.f32 %v808, 1.442695
  %v856 = vpow.pop %v855
  %v857 = vmul.f32 %v809, 1.442695
  %v858 = vpow.pop %v857
  %v859 = vmul.f32 %v810, 1.442695
  %v860 = vpow.pop %v859
  %v861 = vmul.f32 %v811, 1.442695
  %v862 = vpow.pop %v861
  %v863 = vmul.f32 %v812, 1.442695
  %v864 = vpow.pop %v863
  %v865 = vmul.f32 %v813, 1.442695
  %v866 = vpow.pop %v865
  %v867 = vmul.f32 %v814, 1.442695
  %v868 = vpow.pop %v867
  %v869 = vmul.f32 %v815, 1.442695
  %v870 = vpow.pop %v869
  %v871 = vmul.f32 %v816, 1.442695
  %v872 = vpow.pop %v871
  %v873 = vmul.f32 %v817, 1.442695
  %v874 = vpow.pop %v873
  %v875 = vmul.f32 %v818, 1.442695
  %v876 = vpow.pop %v875
  %v877 = vmul.f32 %v819, 1.442695
  %v878 = vpow.pop %v877
  %v879 = vmul.f32 %v820, 1.442695
  %v880 = vpow.pop %v879
  %v881 = vmul.f32 %v821, 1.442695
  %v882 = vpow.pop %v881
  %v883 = vmul.f32 %v822, 1.442695
  %v884 = vpow.pop %v883
  %v885 = vmul.f32 %v823, 1.442695
  %v886 = vpow.pop %v885
  %v887 = vmul.f32 %v824, 1.442695
  %v888 = vpow.pop %v887
  %v889 = vsel %vm247, %v826, 0.0
  %v890 = vrot.slane %v889, 4
  %v891 = vadd.f32 %v889, %v890
  %v892 = vrot.slane %v891, 2
  %v893 = vadd.f32 %v891, %v892
  %v894 = vrot.slane %v893, 1
  %v895 = vadd.f32 %v893, %v894
  %v896 = vsel %vm247, %v828, 0.0
  %v897 = vrot.slane %v896, 4
  %v898 = vadd.f32 %v896, %v897
  %v899 = vrot.slane %v898, 2
  %v900 = vadd.f32 %v898, %v899
  %v901 = vrot.slane %v900, 1
  %v902 = vadd.f32 %v900, %v901
  %v903 = vsel %vm247, %v830, 0.0
  %v904 = vrot.slane %v903, 4
  %v905 = vadd.f32 %v903, %v904
  %v906 = vrot.slane %v905, 2
  %v907 = vadd.f32 %v905, %v906
  %v908 = vrot.slane %v907, 1
  %v909 = vadd.f32 %v907, %v908
  %v910 = vsel %vm247, %v832, 0.0
  %v911 = vrot.slane %v910, 4
  %v912 = vadd.f32 %v910, %v911
  %v913 = vrot.slane %v912, 2
  %v914 = vadd.f32 %v912, %v913
  %v915 = vrot.slane %v914, 1
  %v916 = vadd.f32 %v914, %v915
  %v917 = vsel %vm247, %v834, 0.0
  %v918 = vrot.slane %v917, 4
  %v919 = vadd.f32 %v917, %v918
  %v920 = vrot.slane %v919, 2
  %v921 = vadd.f32 %v919, %v920
  %v922 = vrot.slane %v921, 1
  %v923 = vadd.f32 %v921, %v922
  %v924 = vsel %vm247, %v836, 0.0
  %v925 = vrot.slane %v924, 4
  %v926 = vadd.f32 %v924, %v925
  %v927 = vrot.slane %v926, 2
  %v928 = vadd.f32 %v926, %v927
  %v929 = vrot.slane %v928, 1
  %v930 = vadd.f32 %v928, %v929
  %v931 = vsel %vm247, %v838, 0.0
  %v932 = vrot.slane %v931, 4
  %v933 = vadd.f32 %v931, %v932
  %v934 = vrot.slane %v933, 2
  %v935 = vadd.f32 %v933, %v934
  %v936 = vrot.slane %v935, 1
  %v937 = vadd.f32 %v935, %v936
  %v938 = vsel %vm247, %v840, 0.0
  %v939 = vrot.slane %v938, 4
  %v940 = vadd.f32 %v938, %v939
  %v941 = vrot.slane %v940, 2
  %v942 = vadd.f32 %v940, %v941
  %v943 = vrot.slane %v942, 1
  %v944 = vadd.f32 %v942, %v943
  %v945 = vsel %vm247, %v842, 0.0
  %v946 = vrot.slane %v945, 4
  %v947 = vadd.f32 %v945, %v946
  %v948 = vrot.slane %v947, 2
  %v949 = vadd.f32 %v947, %v948
  %v950 = vrot.slane %v949, 1
  %v951 = vadd.f32 %v949, %v950
  %v952 = vsel %vm247, %v844, 0.0
  %v953 = vrot.slane %v952, 4
  %v954 = vadd.f32 %v952, %v953
  %v955 = vrot.slane %v954, 2
  %v956 = vadd.f32 %v954, %v955
  %v957 = vrot.slane %v956, 1
  %v958 = vadd.f32 %v956, %v957
  %v959 = vsel %vm247, %v846, 0.0
  %v960 = vrot.slane %v959, 4
  %v961 = vadd.f32 %v959, %v960
  %v962 = vrot.slane %v961, 2
  %v963 = vadd.f32 %v961, %v962
  %v964 = vrot.slane %v963, 1
  %v965 = vadd.f32 %v963, %v964
  %v966 = vsel %vm247, %v848, 0.0
  %v967 = vrot.slane %v966, 4
  %v968 = vadd.f32 %v966, %v967
  %v969 = vrot.slane %v968, 2
  %v970 = vadd.f32 %v968, %v969
  %v971 = vrot.slane %v970, 1
  %v972 = vadd.f32 %v970, %v971
  %v973 = vsel %vm247, %v850, 0.0
  %v974 = vrot.slane %v973, 4
  %v975 = vadd.f32 %v973, %v974
  %v976 = vrot.slane %v975, 2
  %v977 = vadd.f32 %v975, %v976
  %v978 = vrot.slane %v977, 1
  %v979 = vadd.f32 %v977, %v978
  %v980 = vsel %vm247, %v852, 0.0
  %v981 = vrot.slane %v980, 4
  %v982 = vadd.f32 %v980, %v981
  %v983 = vrot.slane %v982, 2
  %v984 = vadd.f32 %v982, %v983
  %v985 = vrot.slane %v984, 1
  %v986 = vadd.f32 %v984, %v985
  %v987 = vsel %vm247, %v854, 0.0
  %v988 = vrot.slane %v987, 4
  %v989 = vadd.f32 %v987, %v988
  %v990 = vrot.slane %v989, 2
  %v991 = vadd.f32 %v989, %v990
  %v992 = vrot.slane %v991, 1
  %v993 = vadd.f32 %v991, %v992
  %v994 = vsel %vm247, %v856, 0.0
  %v995 = vrot.slane %v994, 4
  %v996 = vadd.f32 %v994, %v995
  %v997 = vrot.slane %v996, 2
  %v998 = vadd.f32 %v996, %v997
  %v999 = vrot.slane %v998, 1
  %v1000 = vadd.f32 %v998, %v999
  %v1001 = vsel %vm247, %v858, 0.0
  %v1002 = vrot.slane %v1001, 4
  %v1003 = vadd.f32 %v1001, %v1002
  %v1004 = vrot.slane %v1003, 2
  %v1005 = vadd.f32 %v1003, %v1004
  %v1006 = vrot.slane %v1005, 1
  %v1007 = vadd.f32 %v1005, %v1006
  %v1008 = vsel %vm247, %v860, 0.0
  %v1009 = vrot.slane %v1008, 4
  %v1010 = vadd.f32 %v1008, %v1009
  %v1011 = vrot.slane %v1010, 2
  %v1012 = vadd.f32 %v1010, %v1011
  %v1013 = vrot.slane %v1012, 1
  %v1014 = vadd.f32 %v1012, %v1013
  %v1015 = vsel %vm247, %v862, 0.0
  %v1016 = vrot.slane %v1015, 4
  %v1017 = vadd.f32 %v1015, %v1016
  %v1018 = vrot.slane %v1017, 2
  %v1019 = vadd.f32 %v1017, %v1018
  %v1020 = vrot.slane %v1019, 1
  %v1021 = vadd.f32 %v1019, %v1020
  %v1022 = vsel %vm247, %v864, 0.0
  %v1023 = vrot.slane %v1022, 4
  %v1024 = vadd.f32 %v1022, %v1023
  %v1025 = vrot.slane %v1024, 2
  %v1026 = vadd.f32 %v1024, %v1025
  %v1027 = vrot.slane %v1026, 1
  %v1028 = vadd.f32 %v1026, %v1027
  %v1029 = vsel %vm247, %v866, 0.0
  %v1030 = vrot.slane %v1029, 4
  %v1031 = vadd.f32 %v1029, %v1030
  %v1032 = vrot.slane %v1031, 2
  %v1033 = vadd.f32 %v1031, %v1032
  %v1034 = vrot.slane %v1033, 1
  %v1035 = vadd.f32 %v1033, %v1034
  %v1036 = vsel %vm247, %v868, 0.0
  %v1037 = vrot.slane %v1036, 4
  %v1038 = vadd.f32 %v1036, %v1037
  %v1039 = vrot.slane %v1038, 2
  %v1040 = vadd.f32 %v1038, %v1039
  %v1041 = vrot.slane %v1040, 1
  %v1042 = vadd.f32 %v1040, %v1041
  %v1043 = vsel %vm247, %v870, 0.0
  %v1044 = vrot.slane %v1043, 4
  %v1045 = vadd.f32 %v1043, %v1044
  %v1046 = vrot.slane %v1045, 2
  %v1047 = vadd.f32 %v1045, %v1046
  %v1048 = vrot.slane %v1047, 1
  %v1049 = vadd.f32 %v1047, %v1048
  %v1050 = vsel %vm247, %v872, 0.0
  %v1051 = vrot.slane %v1050, 4
  %v1052 = vadd.f32 %v1050, %v1051
  %v1053 = vrot.slane %v1052, 2
  %v1054 = vadd.f32 %v1052, %v1053
  %v1055 = vrot.slane %v1054, 1
  %v1056 = vadd.f32 %v1054, %v1055
  %v1057 = vsel %vm247, %v874, 0.0
  %v1058 = vrot.slane %v1057, 4
  %v1059 = vadd.f32 %v1057, %v1058
  %v1060 = vrot.slane %v1059, 2
  %v1061 = vadd.f32 %v1059, %v1060
  %v1062 = vrot.slane %v1061, 1
  %v1063 = vadd.f32 %v1061, %v1062
  %v1064 = vsel %vm247, %v876, 0.0
  %v1065 = vrot.slane %v1064, 4
  %v1066 = vadd.f32 %v1064, %v1065
  %v1067 = vrot.slane %v1066, 2
  %v1068 = vadd.f32 %v1066, %v1067
  %v1069 = vrot.slane %v1068, 1
  %v1070 = vadd.f32 %v1068, %v1069
  %v1071 = vsel %vm247, %v878, 0.0
  %v1072 = vrot.slane %v1071, 4
  %v1073 = vadd.f32 %v1071, %v1072
  %v1074 = vrot.slane %v1073, 2
  %v1075 = vadd.f32 %v1073, %v1074
  %v1076 = vrot.slane %v1075, 1
  %v1077 = vadd.f32 %v1075, %v1076
  %v1078 = vsel %vm247, %v880, 0.0
  %v1079 = vrot.slane %v1078, 4
  %v1080 = vadd.f32 %v1078, %v1079
  %v1081 = vrot.slane %v1080, 2
  %v1082 = vadd.f32 %v1080, %v1081
  %v1083 = vrot.slane %v1082, 1
  %v1084 = vadd.f32 %v1082, %v1083
  %v1085 = vsel %vm247, %v882, 0.0
  %v1086 = vrot.slane %v1085, 4
  %v1087 = vadd.f32 %v1085, %v1086
  %v1088 = vrot.slane %v1087, 2
  %v1089 = vadd.f32 %v1087, %v1088
  %v1090 = vrot.slane %v1089, 1
  %v1091 = vadd.f32 %v1089, %v1090
  %v1092 = vsel %vm247, %v884, 0.0
  %v1093 = vrot.slane %v1092, 4
  %v1094 = vadd.f32 %v1092, %v1093
  %v1095 = vrot.slane %v1094, 2
  %v1096 = vadd.f32 %v1094, %v1095
  %v1097 = vrot.slane %v1096, 1
  %v1098 = vadd.f32 %v1096, %v1097
  %v1099 = vsel %vm247, %v886, 0.0
  %v1100 = vrot.slane %v1099, 4
  %v1101 = vadd.f32 %v1099, %v1100
  %v1102 = vrot.slane %v1101, 2
  %v1103 = vadd.f32 %v1101, %v1102
  %v1104 = vrot.slane %v1103, 1
  %v1105 = vadd.f32 %v1103, %v1104
  %v1106 = vsel %vm247, %v888, 0.0
  %v1107 = vrot.slane %v1106, 4
  %v1108 = vadd.f32 %v1106, %v1107
  %v1109 = vrot.slane %v1108, 2
  %v1110 = vadd.f32 %v1108, %v1109
  %v1111 = vrot.slane %v1110, 1
  %v1112 = vadd.f32 %v1110, %v1111
  %v1113 = vrcp.pop %v895
  %v1114 = vrcp.pop %v902
  %v1115 = vrcp.pop %v909
  %v1116 = vrcp.pop %v916
  %v1117 = vrcp.pop %v923
  %v1118 = vrcp.pop %v930
  %v1119 = vrcp.pop %v937
  %v1120 = vrcp.pop %v944
  %v1121 = vrcp.pop %v951
  %v1122 = vrcp.pop %v958
  %v1123 = vrcp.pop %v965
  %v1124 = vrcp.pop %v972
  %v1125 = vrcp.pop %v979
  %v1126 = vrcp.pop %v986
  %v1127 = vrcp.pop %v993
  %v1128 = vrcp.pop %v1000
  %v1129 = vrcp.pop %v1007
  %v1130 = vrcp.pop %v1014
  %v1131 = vrcp.pop %v1021
  %v1132 = vrcp.pop %v1028
  %v1133 = vrcp.pop %v1035
  %v1134 = vrcp.pop %v1042
  %v1135 = vrcp.pop %v1049
  %v1136 = vrcp.pop %v1056
  %v1137 = vrcp.pop %v1063
  %v1138 = vrcp.pop %v1070
  %v1139 = vrcp.pop %v1077
  %v1140 = vrcp.pop %v1084
  %v1141 = vrcp.pop %v1091
  %v1142 = vrcp.pop %v1098
  %v1143 = vrcp.pop %v1105
  %v1144 = vrcp.pop %v1112
  %v1145 = vmul.f32 %v826, %v1113
  %v1146 = vmul.f32 %v828, %v1114
  %v1147 = vmul.f32 %v830, %v1115
  %v1148 = vmul.f32 %v832, %v1116
  %v1149 = vmul.f32 %v834, %v1117
  %v1150 = vmul.f32 %v836, %v1118
  %v1151 = vmul.f32 %v838, %v1119
  %v1152 = vmul.f32 %v840, %v1120
  %v1153 = vmul.f32 %v842, %v1121
  %v1154 = vmul.f32 %v844, %v1122
  %v1155 = vmul.f32 %v846, %v1123
  %v1156 = vmul.f32 %v848, %v1124
  %v1157 = vmul.f32 %v850, %v1125
  %v1158 = vmul.f32 %v852, %v1126
  %v1159 = vmul.f32 %v854, %v1127
  %v1160 = vmul.f32 %v856, %v1128
  %v1161 = vmul.f32 %v858, %v1129
  %v1162 = vmul.f32 %v860, %v1130
  %v1163 = vmul.f32 %v862, %v1131
  %v1164 = vmul.f32 %v864, %v1132
  %v1165 = vmul.f32 %v866, %v1133
  %v1166 = vmul.f32 %v868, %v1134
  %v1167 = vmul.f32 %v870, %v1135
  %v1168 = vmul.f32 %v872, %v1136
  %v1169 = vmul.f32 %v874, %v1137
  %v1170 = vmul.f32 %v876, %v1138
  %v1171 = vmul.f32 %v878, %v1139
  %v1172 = vmul.f32 %v880, %v1140
  %v1173 = vmul.f32 %v882, %v1141
  %v1174 = vmul.f32 %v884, %v1142
  %v1175 = vmul.f32 %v886, %v1143
  %v1176 = vmul.f32 %v888, %v1144
  %v1177 = vmul.f32 %v213, %v1145
  %v1178 = vmul.f32 %v214, %v1146
  %v1179 = vmul.f32 %v215, %v1147
  %v1180 = vmul.f32 %v216, %v1148
  %v1181 = vmul.f32 %v217, %v1149
  %v1182 = vmul.f32 %v218, %v1150
  %v1183 = vmul.f32 %v219, %v1151
  %v1184 = vmul.f32 %v220, %v1152
  %v1185 = vmul.f32 %v221, %v1153
  %v1186 = vmul.f32 %v222, %v1154
  %v1187 = vmul.f32 %v223, %v1155
  %v1188 = vmul.f32 %v224, %v1156
  %v1189 = vmul.f32 %v225, %v1157
  %v1190 = vmul.f32 %v226, %v1158
  %v1191 = vmul.f32 %v227, %v1159
  %v1192 = vmul.f32 %v228, %v1160
  %v1193 = vmul.f32 %v229, %v1161
  %v1194 = vmul.f32 %v230, %v1162
  %v1195 = vmul.f32 %v231, %v1163
  %v1196 = vmul.f32 %v232, %v1164
  %v1197 = vmul.f32 %v233, %v1165
  %v1198 = vmul.f32 %v234, %v1166
  %v1199 = vmul.f32 %v235, %v1167
  %v1200 = vmul.f32 %v236, %v1168
  %v1201 = vmul.f32 %v237, %v1169
  %v1202 = vmul.f32 %v238, %v1170
  %v1203 = vmul.f32 %v239, %v1171
  %v1204 = vmul.f32 %v240, %v1172
  %v1205 = vmul.f32 %v241, %v1173
  %v1206 = vmul.f32 %v242, %v1174
  %v1207 = vmul.f32 %v243, %v1175
  %v1208 = vmul.f32 %v244, %v1176
  %v1209 = vsel %vm247, %v1177, 0.0
  %v1210 = vrot.slane %v1209, 4
  %v1211 = vadd.f32 %v1209, %v1210
  %v1212 = vrot.slane %v1211, 2
  %v1213 = vadd.f32 %v1211, %v1212
  %v1214 = vrot.slane %v1213, 1
  %v1215 = vadd.f32 %v1213, %v1214
  %v1216 = vsel %vm247, %v1178, 0.0
  %v1217 = vrot.slane %v1216, 4
  %v1218 = vadd.f32 %v1216, %v1217
  %v1219 = vrot.slane %v1218, 2
  %v1220 = vadd.f32 %v1218, %v1219
  %v1221 = vrot.slane %v1220, 1
  %v1222 = vadd.f32 %v1220, %v1221
  %v1223 = vsel %vm247, %v1179, 0.0
  %v1224 = vrot.slane %v1223, 4
  %v1225 = vadd.f32 %v1223, %v1224
  %v1226 = vrot.slane %v1225, 2
  %v1227 = vadd.f32 %v1225, %v1226
  %v1228 = vrot.slane %v1227, 1
  %v1229 = vadd.f32 %v1227, %v1228
  %v1230 = vsel %vm247, %v1180, 0.0
  %v1231 = vrot.slane %v1230, 4
  %v1232 = vadd.f32 %v1230, %v1231
  %v1233 = vrot.slane %v1232, 2
  %v1234 = vadd.f32 %v1232, %v1233
  %v1235 = vrot.slane %v1234, 1
  %v1236 = vadd.f32 %v1234, %v1235
  %v1237 = vsel %vm247, %v1181, 0.0
  %v1238 = vrot.slane %v1237, 4
  %v1239 = vadd.f32 %v1237, %v1238
  %v1240 = vrot.slane %v1239, 2
  %v1241 = vadd.f32 %v1239, %v1240
  %v1242 = vrot.slane %v1241, 1
  %v1243 = vadd.f32 %v1241, %v1242
  %v1244 = vsel %vm247, %v1182, 0.0
  %v1245 = vrot.slane %v1244, 4
  %v1246 = vadd.f32 %v1244, %v1245
  %v1247 = vrot.slane %v1246, 2
  %v1248 = vadd.f32 %v1246, %v1247
  %v1249 = vrot.slane %v1248, 1
  %v1250 = vadd.f32 %v1248, %v1249
  %v1251 = vsel %vm247, %v1183, 0.0
  %v1252 = vrot.slane %v1251, 4
  %v1253 = vadd.f32 %v1251, %v1252
  %v1254 = vrot.slane %v1253, 2
  %v1255 = vadd.f32 %v1253, %v1254
  %v1256 = vrot.slane %v1255, 1
  %v1257 = vadd.f32 %v1255, %v1256
  %v1258 = vsel %vm247, %v1184, 0.0
  %v1259 = vrot.slane %v1258, 4
  %v1260 = vadd.f32 %v1258, %v1259
  %v1261 = vrot.slane %v1260, 2
  %v1262 = vadd.f32 %v1260, %v1261
  %v1263 = vrot.slane %v1262, 1
  %v1264 = vadd.f32 %v1262, %v1263
  %v1265 = vsel %vm247, %v1185, 0.0
  %v1266 = vrot.slane %v1265, 4
  %v1267 = vadd.f32 %v1265, %v1266
  %v1268 = vrot.slane %v1267, 2
  %v1269 = vadd.f32 %v1267, %v1268
  %v1270 = vrot.slane %v1269, 1
  %v1271 = vadd.f32 %v1269, %v1270
  %v1272 = vsel %vm247, %v1186, 0.0
  %v1273 = vrot.slane %v1272, 4
  %v1274 = vadd.f32 %v1272, %v1273
  %v1275 = vrot.slane %v1274, 2
  %v1276 = vadd.f32 %v1274, %v1275
  %v1277 = vrot.slane %v1276, 1
  %v1278 = vadd.f32 %v1276, %v1277
  %v1279 = vsel %vm247, %v1187, 0.0
  %v1280 = vrot.slane %v1279, 4
  %v1281 = vadd.f32 %v1279, %v1280
  %v1282 = vrot.slane %v1281, 2
  %v1283 = vadd.f32 %v1281, %v1282
  %v1284 = vrot.slane %v1283, 1
  %v1285 = vadd.f32 %v1283, %v1284
  %v1286 = vsel %vm247, %v1188, 0.0
  %v1287 = vrot.slane %v1286, 4
  %v1288 = vadd.f32 %v1286, %v1287
  %v1289 = vrot.slane %v1288, 2
  %v1290 = vadd.f32 %v1288, %v1289
  %v1291 = vrot.slane %v1290, 1
  %v1292 = vadd.f32 %v1290, %v1291
  %v1293 = vsel %vm247, %v1189, 0.0
  %v1294 = vrot.slane %v1293, 4
  %v1295 = vadd.f32 %v1293, %v1294
  %v1296 = vrot.slane %v1295, 2
  %v1297 = vadd.f32 %v1295, %v1296
  %v1298 = vrot.slane %v1297, 1
  %v1299 = vadd.f32 %v1297, %v1298
  %v1300 = vsel %vm247, %v1190, 0.0
  %v1301 = vrot.slane %v1300, 4
  %v1302 = vadd.f32 %v1300, %v1301
  %v1303 = vrot.slane %v1302, 2
  %v1304 = vadd.f32 %v1302, %v1303
  %v1305 = vrot.slane %v1304, 1
  %v1306 = vadd.f32 %v1304, %v1305
  %v1307 = vsel %vm247, %v1191, 0.0
  %v1308 = vrot.slane %v1307, 4
  %v1309 = vadd.f32 %v1307, %v1308
  %v1310 = vrot.slane %v1309, 2
  %v1311 = vadd.f32 %v1309, %v1310
  %v1312 = vrot.slane %v1311, 1
  %v1313 = vadd.f32 %v1311, %v1312
  %v1314 = vsel %vm247, %v1192, 0.0
  %v1315 = vrot.slane %v1314, 4
  %v1316 = vadd.f32 %v1314, %v1315
  %v1317 = vrot.slane %v1316, 2
  %v1318 = vadd.f32 %v1316, %v1317
  %v1319 = vrot.slane %v1318, 1
  %v1320 = vadd.f32 %v1318, %v1319
  %v1321 = vsel %vm247, %v1193, 0.0
  %v1322 = vrot.slane %v1321, 4
  %v1323 = vadd.f32 %v1321, %v1322
  %v1324 = vrot.slane %v1323, 2
  %v1325 = vadd.f32 %v1323, %v1324
  %v1326 = vrot.slane %v1325, 1
  %v1327 = vadd.f32 %v1325, %v1326
  %v1328 = vsel %vm247, %v1194, 0.0
  %v1329 = vrot.slane %v1328, 4
  %v1330 = vadd.f32 %v1328, %v1329
  %v1331 = vrot.slane %v1330, 2
  %v1332 = vadd.f32 %v1330, %v1331
  %v1333 = vrot.slane %v1332, 1
  %v1334 = vadd.f32 %v1332, %v1333
  %v1335 = vsel %vm247, %v1195, 0.0
  %v1336 = vrot.slane %v1335, 4
  %v1337 = vadd.f32 %v1335, %v1336
  %v1338 = vrot.slane %v1337, 2
  %v1339 = vadd.f32 %v1337, %v1338
  %v1340 = vrot.slane %v1339, 1
  %v1341 = vadd.f32 %v1339, %v1340
  %v1342 = vsel %vm247, %v1196, 0.0
  %v1343 = vrot.slane %v1342, 4
  %v1344 = vadd.f32 %v1342, %v1343
  %v1345 = vrot.slane %v1344, 2
  %v1346 = vadd.f32 %v1344, %v1345
  %v1347 = vrot.slane %v1346, 1
  %v1348 = vadd.f32 %v1346, %v1347
  %v1349 = vsel %vm247, %v1197, 0.0
  %v1350 = vrot.slane %v1349, 4
  %v1351 = vadd.f32 %v1349, %v1350
  %v1352 = vrot.slane %v1351, 2
  %v1353 = vadd.f32 %v1351, %v1352
  %v1354 = vrot.slane %v1353, 1
  %v1355 = vadd.f32 %v1353, %v1354
  %v1356 = vsel %vm247, %v1198, 0.0
  %v1357 = vrot.slane %v1356, 4
  %v1358 = vadd.f32 %v1356, %v1357
  %v1359 = vrot.slane %v1358, 2
  %v1360 = vadd.f32 %v1358, %v1359
  %v1361 = vrot.slane %v1360, 1
  %v1362 = vadd.f32 %v1360, %v1361
  %v1363 = vsel %vm247, %v1199, 0.0
  %v1364 = vrot.slane %v1363, 4
  %v1365 = vadd.f32 %v1363, %v1364
  %v1366 = vrot.slane %v1365, 2
  %v1367 = vadd.f32 %v1365, %v1366
  %v1368 = vrot.slane %v1367, 1
  %v1369 = vadd.f32 %v1367, %v1368
  %v1370 = vsel %vm247, %v1200, 0.0
  %v1371 = vrot.slane %v1370, 4
  %v1372 = vadd.f32 %v1370, %v1371
  %v1373 = vrot.slane %v1372, 2
  %v1374 = vadd.f32 %v1372, %v1373
  %v1375 = vrot.slane %v1374, 1
  %v1376 = vadd.f32 %v1374, %v1375
  %v1377 = vsel %vm247, %v1201, 0.0
  %v1378 = vrot.slane %v1377, 4
  %v1379 = vadd.f32 %v1377, %v1378
  %v1380 = vrot.slane %v1379, 2
  %v1381 = vadd.f32 %v1379, %v1380
  %v1382 = vrot.slane %v1381, 1
  %v1383 = vadd.f32 %v1381, %v1382
  %v1384 = vsel %vm247, %v1202, 0.0
  %v1385 = vrot.slane %v1384, 4
  %v1386 = vadd.f32 %v1384, %v1385
  %v1387 = vrot.slane %v1386, 2
  %v1388 = vadd.f32 %v1386, %v1387
  %v1389 = vrot.slane %v1388, 1
  %v1390 = vadd.f32 %v1388, %v1389
  %v1391 = vsel %vm247, %v1203, 0.0
  %v1392 = vrot.slane %v1391, 4
  %v1393 = vadd.f32 %v1391, %v1392
  %v1394 = vrot.slane %v1393, 2
  %v1395 = vadd.f32 %v1393, %v1394
  %v1396 = vrot.slane %v1395, 1
  %v1397 = vadd.f32 %v1395, %v1396
  %v1398 = vsel %vm247, %v1204, 0.0
  %v1399 = vrot.slane %v1398, 4
  %v1400 = vadd.f32 %v1398, %v1399
  %v1401 = vrot.slane %v1400, 2
  %v1402 = vadd.f32 %v1400, %v1401
  %v1403 = vrot.slane %v1402, 1
  %v1404 = vadd.f32 %v1402, %v1403
  %v1405 = vsel %vm247, %v1205, 0.0
  %v1406 = vrot.slane %v1405, 4
  %v1407 = vadd.f32 %v1405, %v1406
  %v1408 = vrot.slane %v1407, 2
  %v1409 = vadd.f32 %v1407, %v1408
  %v1410 = vrot.slane %v1409, 1
  %v1411 = vadd.f32 %v1409, %v1410
  %v1412 = vsel %vm247, %v1206, 0.0
  %v1413 = vrot.slane %v1412, 4
  %v1414 = vadd.f32 %v1412, %v1413
  %v1415 = vrot.slane %v1414, 2
  %v1416 = vadd.f32 %v1414, %v1415
  %v1417 = vrot.slane %v1416, 1
  %v1418 = vadd.f32 %v1416, %v1417
  %v1419 = vsel %vm247, %v1207, 0.0
  %v1420 = vrot.slane %v1419, 4
  %v1421 = vadd.f32 %v1419, %v1420
  %v1422 = vrot.slane %v1421, 2
  %v1423 = vadd.f32 %v1421, %v1422
  %v1424 = vrot.slane %v1423, 1
  %v1425 = vadd.f32 %v1423, %v1424
  %v1426 = vsel %vm247, %v1208, 0.0
  %v1427 = vrot.slane %v1426, 4
  %v1428 = vadd.f32 %v1426, %v1427
  %v1429 = vrot.slane %v1428, 2
  %v1430 = vadd.f32 %v1428, %v1429
  %v1431 = vrot.slane %v1430, 1
  %v1432 = vadd.f32 %v1430, %v1431
  %v1433 = vld [vmem:[%s3] sm:$0xff]
  %v1434 = vld [vmem:[%s3 + $0x8] sm:$0xff]
  %v1435 = vld [vmem:[%s4] sm:$0x1]
  %v1437 = vlaneseq
  %v1438 = vshrl.u32 %v1437, 7
  %v1439 = vsub.s32 0, %v1438
  %v1440 = vrot.slane %v1435, %v1439
  %vm1474 = vcmask 1041409
  %v1475 = vsel %vm1474, %v1222, %v1215
  %vm1476 = vcmask 1042434
  %v1477 = vsel %vm1476, %v1229, %v1475
  %vm1478 = vcmask 1043459
  %v1479 = vsel %vm1478, %v1236, %v1477
  %vm1480 = vcmask 1044484
  %v1481 = vsel %vm1480, %v1243, %v1479
  %vm1482 = vcmask 1045509
  %v1483 = vsel %vm1482, %v1250, %v1481
  %vm1484 = vcmask 1046534
  %v1485 = vsel %vm1484, %v1257, %v1483
  %vm1486 = vcmask 1047559
  %v1487 = vsel %vm1486, %v1264, %v1485
  %v1488 = vsel %vm1474, %v1278, %v1271
  %v1489 = vsel %vm1476, %v1285, %v1488
  %v1490 = vsel %vm1478, %v1292, %v1489
  %v1491 = vsel %vm1480, %v1299, %v1490
  %v1492 = vsel %vm1482, %v1306, %v1491
  %v1493 = vsel %vm1484, %v1313, %v1492
  %v1494 = vsel %vm1486, %v1320, %v1493
  %v1495 = vsel %vm1474, %v1334, %v1327
  %v1496 = vsel %vm1476, %v1341, %v1495
  %v1497 = vsel %vm1478, %v1348, %v1496
  %v1498 = vsel %vm1480, %v1355, %v1497
  %v1499 = vsel %vm1482, %v1362, %v1498
  %v1500 = vsel %vm1484, %v1369, %v1499
  %v1501 = vsel %vm1486, %v1376, %v1500
  %v1502 = vsel %vm1474, %v1390, %v1383
  %v1503 = vsel %vm1476, %v1397, %v1502
  %v1504 = vsel %vm1478, %v1404, %v1503
  %v1505 = vsel %vm1480, %v1411, %v1504
  %v1506 = vsel %vm1482, %v1418, %v1505
  %v1507 = vsel %vm1484, %v1425, %v1506
  %v1508 = vsel %vm1486, %v1432, %v1507
  %v1509 = vsel %vm247, %v1487, 0
  %v1511 = vsel %vm247, %v1494, 0
  %v1513 = vsel %vm247, %v1501, 0
  %v1515 = vsel %vm247, %v1508, 0
  %1517 = vmatprep.subr.mxu0 0.0
  %1518 = vmatpush1.msra.mxu0 0.0
  %1519 = vmatprep.subr.mxu0 0.0
  %1520 = vmatpush1.msra.mxu0 0.0
  %1521 = vmatprep.subr.mxu0 0.0
  %1522 = vmatpush1.msra.mxu0 0.0
  %1523 = vmatprep.subr.mxu0 0.0
  %1524 = vmatpush1.msra.mxu0 0.0
  %1525 = vmatprep.subr.mxu0 0.0
  %1526 = vmatpush1.msra.mxu0 0.0
  %1527 = vmatprep.subr.mxu0 0.0
  %1528 = vmatpush1.msra.mxu0 0.0
  %1529 = vmatprep.subr.mxu0 0.0
  %1530 = vmatpush1.msra.mxu0 0.0
  %1531 = vmatprep.subr.mxu0 0.0
  %1532 = vmatpush1.msra.mxu0 0.0
  %1533 = vmatprep.subr.mxu0 0.0
  %1534 = vmatpush1.msra.mxu0 0.0
  %1535 = vmatprep.subr.mxu0 0.0
  %1536 = vmatpush1.msra.mxu0 0.0
  %1537 = vmatprep.subr.mxu0 0.0
  %1538 = vmatpush1.msra.mxu0 0.0
  %1539 = vmatprep.subr.mxu0 0.0
  %1540 = vmatpush1.msra.mxu0 0.0
  %1541 = vmatprep.subr.mxu0 0.0
  %1542 = vmatpush1.msra.mxu0 0.0
  %1543 = vmatprep.subr.mxu0 0.0
  %1544 = vmatpush1.msra.mxu0 0.0
  %1545 = vmatprep.subr.mxu0 0.0
  %1546 = vmatpush1.msra.mxu0 %v1434
  %1547 = vmatprep.subr.mxu0 0.0
  %1548 = vmatpush1.msra.mxu0 %v1433
  %1549 = vmatprep.subr.mxu0 0.0
  %1550 = vmatpush2.msra.mxu0 0.0
  %1551 = vmatprep.subr.mxu0 0.0
  %1552 = vmatpush2.msra.mxu0 0.0
  %1553 = vmatprep.subr.mxu0 0.0
  %1554 = vmatpush2.msra.mxu0 0.0
  %1555 = vmatprep.subr.mxu0 0.0
  %1556 = vmatpush2.msra.mxu0 0.0
  %1557 = vmatprep.subr.mxu0 0.0
  %1558 = vmatpush2.msra.mxu0 0.0
  %1559 = vmatprep.subr.mxu0 0.0
  %1560 = vmatpush2.msra.mxu0 0.0
  %1561 = vmatprep.subr.mxu0 0.0
  %1562 = vmatpush2.msra.mxu0 0.0
  %1563 = vmatprep.subr.mxu0 0.0
  %1564 = vmatpush2.msra.mxu0 0.0
  %1565 = vmatprep.subr.mxu0 0.0
  %1566 = vmatpush2.msra.mxu0 0.0
  %1567 = vmatprep.subr.mxu0 0.0
  %1568 = vmatpush2.msra.mxu0 0.0
  %1569 = vmatprep.subr.mxu0 0.0
  %1570 = vmatpush2.msra.mxu0 0.0
  %1571 = vmatprep.subr.mxu0 0.0
  %1572 = vmatpush2.msra.mxu0 0.0
  %1573 = vmatprep.subr.mxu0 0.0
  %1574 = vmatpush2.msra.mxu0 0.0
  %1575 = vmatprep.subr.mxu0 0.0
  %1576 = vmatpush2.msra.mxu0 0.0
  %1577 = vmatprep.subr.mxu0 0.0
  %1578 = vmatpush2.msra.mxu0 0.0
  %1579 = vmatprep.subr.mxu0 0.0
  %1580 = vmatpush2.msra.mxu0 0.0
  %1581 = vmatprep.mubr.f32.mxu0 0.0
  %1582 = vmatmul.mubr.f32.gmra.mxu0 %v1509
  %v1583 = vpop.f32.mrf.mxu0
  %v1584 = vadd.f32 %v1440, %v1583
  %v1585 = vpop.f32.mrf.mxu0
  %1586 = vmatprep.mubr.f32.mxu0 0.0
  %1587 = vmatmul.mubr.f32.gmra.mxu0 %v1511
  %v1588 = vpop.f32.mrf.mxu0
  %v1589 = vadd.f32 %v1440, %v1588
  %v1590 = vpop.f32.mrf.mxu0
  %1591 = vmatprep.mubr.f32.mxu0 0.0
  %1592 = vmatmul.mubr.f32.gmra.mxu0 %v1513
  %v1593 = vpop.f32.mrf.mxu0
  %v1594 = vadd.f32 %v1440, %v1593
  %v1595 = vpop.f32.mrf.mxu0
  %1596 = vmatprep.mubr.f32.mxu0 0.0
  %1597 = vmatmul.mubr.f32.gmra.mxu0 %v1515
  %v1598 = vpop.f32.mrf.mxu0
  %v1599 = vadd.f32 %v1440, %v1598
  %v1600 = vpop.f32.mrf.mxu0
  %1601 = vdwg.mxu0
  %v1602 = vmax.f32 %v1584, 0.0
  %v1603 = vmax.f32 %v1589, 0.0
  %v1604 = vmax.f32 %v1594, 0.0
  %v1605 = vmax.f32 %v1599, 0.0
  %1606 = vst.msk [vmem:[%s5] sm:$0xff] %vm212, %v1602
  %1607 = vst.msk [vmem:[%s5 + $0x8] sm:$0xff] %vm212, %v1603
  %1608 = vst.msk [vmem:[%s5 + $0x10] sm:$0xff] %vm212, %v1604
  %1609 = vst.msk [vmem:[%s5 + $0x18] sm:$0xff] %vm212, %v1605
  // Predicated region
  $region22: #{lfa_forward.7} parent=0 // pred_check
    _
  $region23: #{lfa_forward.7} parent=0 // pred_check_branch
    %1611 = sbr.rel (0) target = $region25
  $region24: #{lfa_forward.7} parent=0 // pred_region
    _
  $region25: #{lfa_forward.7} parent=0 // pred_fallthru
    _
  // Predicated region
  $region26: #{lfa_forward.7} parent=0 // pred_check
    _
  $region27: #{lfa_forward.7} parent=0 // pred_check_branch
    %1613 = sbr.rel (0) target = $region29
  $region28: #{lfa_forward.7} parent=0 // pred_region
    _
  $region29: #{lfa_forward.7} parent=0 // pred_fallthru
    _

// kernel: lfa_forward.8
$region0: #{lfa_forward.8}
  #allocation0 [shape = 'u32[]', space=smem, size = 0x4, offset = 0x4, fixed_abs, tag = 'smem constant byte address 0x4 - core index']
  #allocation1 [shape = 'u32[144,128]{1,0:T(1,128)}', space=vmem, size = 0x12000, scoped, tag = 'internal scratch']
  %s0 = inlined_call_operand.vmem [shape: f32[32,8,8], index: 0, kind: input, shape index: {}]
  %s1 = inlined_call_operand.vmem [shape: f32[32,8,8], index: 1, kind: input, shape index: {}]
  %s2 = inlined_call_operand.vmem [shape: f32[8,8], index: 2, kind: input, shape index: {}]
  %s3 = inlined_call_operand.vmem [shape: f32[1,8], index: 3, kind: input, shape index: {}]
  %s4 = inlined_call_operand.vmem [shape: f32[16,16], index: 4, kind: input, shape index: {}]
  %s5 = inlined_call_operand.vmem [shape: f32[16,16], index: 5, kind: input, shape index: {}]
  %s6 = inlined_call_operand.vmem [shape: f32[1,16], index: 6, kind: input, shape index: {}]
  %s7 = inlined_call_operand.vmem [shape: f32[32,16], index: 7, kind: output, shape index: {}]
  %s8 = sld [smem:[#allocation0]]
  $region38: #{lfa_forward.8} parent=0
    _
  %s10 = ssub.s32 1, %s8
  %s11 = scalar_select 0, %s10, %s8
  // Predicated region
  $region2: #{lfa_forward.8} parent=0 // pred_check
    _
  $region3: #{lfa_forward.8} parent=0 // pred_check_branch
    %13 = sbr.rel (0) target = $region5
  $region4: #{lfa_forward.8} parent=0 // pred_region
    _
  $region5: #{lfa_forward.8} parent=0 // pred_fallthru
    _
  // Predicated region
  $region6: #{lfa_forward.8} parent=0 // pred_check
    _
  $region7: #{lfa_forward.8} parent=0 // pred_check_branch
    %15 = sbr.rel (0) target = $region9
  $region8: #{lfa_forward.8} parent=0 // pred_region
    _
  $region9: #{lfa_forward.8} parent=0 // pred_fallthru
    _
  // Predicated region
  $region10: #{lfa_forward.8} parent=0 // pred_check
    _
  $region11: #{lfa_forward.8} parent=0 // pred_check_branch
    %17 = sbr.rel (0) target = $region13
  $region12: #{lfa_forward.8} parent=0 // pred_region
    _
  $region13: #{lfa_forward.8} parent=0 // pred_fallthru
    _
  // Predicated region
  $region14: #{lfa_forward.8} parent=0 // pred_check
    _
  $region15: #{lfa_forward.8} parent=0 // pred_check_branch
    %19 = sbr.rel (0) target = $region17
  $region16: #{lfa_forward.8} parent=0 // pred_region
    _
  $region17: #{lfa_forward.8} parent=0 // pred_fallthru
    _
  // Predicated region
  $region18: #{lfa_forward.8} parent=0 // pred_check
    _
  $region19: #{lfa_forward.8} parent=0 // pred_check_branch
    %21 = sbr.rel (0) target = $region21
  $region20: #{lfa_forward.8} parent=0 // pred_region
    _
  $region21: #{lfa_forward.8} parent=0 // pred_fallthru
    _
  // Predicated region
  $region22: #{lfa_forward.8} parent=0 // pred_check
    _
  $region23: #{lfa_forward.8} parent=0 // pred_check_branch
    %23 = sbr.rel (0) target = $region25
  $region24: #{lfa_forward.8} parent=0 // pred_region
    _
  $region25: #{lfa_forward.8} parent=0 // pred_fallthru
    _
  // Predicated region
  $region26: #{lfa_forward.8} parent=0 // pred_check
    _
  $region27: #{lfa_forward.8} parent=0 // pred_check_branch
    %25 = sbr.rel (0) target = $region29
  $region28: #{lfa_forward.8} parent=0 // pred_region
    _
  $region29: #{lfa_forward.8} parent=0 // pred_fallthru
    _
  %v26 = vld [vmem:[%s0] sm:$0xff]
  %v27 = vld [vmem:[%s0 + $0x8] sm:$0xff]
  %v28 = vld [vmem:[%s0 + $0x10] sm:$0xff]
  %v29 = vld [vmem:[%s0 + $0x18] sm:$0xff]
  %v30 = vld [vmem:[%s0 + $0x20] sm:$0xff]
  %v31 = vld [vmem:[%s0 + $0x28] sm:$0xff]
  %v32 = vld [vmem:[%s0 + $0x30] sm:$0xff]
  %v33 = vld [vmem:[%s0 + $0x38] sm:$0xff]
  %v34 = vld [vmem:[%s0 + $0x40] sm:$0xff]
  %v35 = vld [vmem:[%s0 + $0x48] sm:$0xff]
  %v36 = vld [vmem:[%s0 + $0x50] sm:$0xff]
  %v37 = vld [vmem:[%s0 + $0x58] sm:$0xff]
  %v38 = vld [vmem:[%s0 + $0x60] sm:$0xff]
  %v39 = vld [vmem:[%s0 + $0x68] sm:$0xff]
  %v40 = vld [vmem:[%s0 + $0x70] sm:$0xff]
  %v41 = vld [vmem:[%s0 + $0x78] sm:$0xff]
  %v42 = vld [vmem:[%s0 + $0x80] sm:$0xff]
  %v43 = vld [vmem:[%s0 + $0x88] sm:$0xff]
  %v44 = vld [vmem:[%s0 + $0x90] sm:$0xff]
  %v45 = vld [vmem:[%s0 + $0x98] sm:$0xff]
  %v46 = vld [vmem:[%s0 + $0xa0] sm:$0xff]
  %v47 = vld [vmem:[%s0 + $0xa8] sm:$0xff]
  %v48 = vld [vmem:[%s0 + $0xb0] sm:$0xff]
  %v49 = vld [vmem:[%s0 + $0xb8] sm:$0xff]
  %v50 = vld [vmem:[%s0 + $0xc0] sm:$0xff]
  %v51 = vld [vmem:[%s0 + $0xc8] sm:$0xff]
  %v52 = vld [vmem:[%s0 + $0xd0] sm:$0xff]
  %v53 = vld [vmem:[%s0 + $0xd8] sm:$0xff]
  %v54 = vld [vmem:[%s0 + $0xe0] sm:$0xff]
  %v55 = vld [vmem:[%s0 + $0xe8] sm:$0xff]
  %v56 = vld [vmem:[%s0 + $0xf0] sm:$0xff]
  %v57 = vld [vmem:[%s0 + $0xf8] sm:$0xff]
  %v58 = vld [vmem:[%s1] sm:$0xff]
  %v59 = vld [vmem:[%s1 + $0x8] sm:$0xff]
  %v60 = vld [vmem:[%s1 + $0x10] sm:$0xff]
  %v61 = vld [vmem:[%s1 + $0x18] sm:$0xff]
  %v62 = vld [vmem:[%s1 + $0x20] sm:$0xff]
  %v63 = vld [vmem:[%s1 + $0x28] sm:$0xff]
  %v64 = vld [vmem:[%s1 + $0x30] sm:$0xff]
  %v65 = vld [vmem:[%s1 + $0x38] sm:$0xff]
  %v66 = vld [vmem:[%s1 + $0x40] sm:$0xff]
  %v67 = vld [vmem:[%s1 + $0x48] sm:$0xff]
  %v68 = vld [vmem:[%s1 + $0x50] sm:$0xff]
  %v69 = vld [vmem:[%s1 + $0x58] sm:$0xff]
  %v70 = vld [vmem:[%s1 + $0x60] sm:$0xff]
  %v71 = vld [vmem:[%s1 + $0x68] sm:$0xff]
  %v72 = vld [vmem:[%s1 + $0x70] sm:$0xff]
  %v73 = vld [vmem:[%s1 + $0x78] sm:$0xff]
  %v74 = vld [vmem:[%s1 + $0x80] sm:$0xff]
  %v75 = vld [vmem:[%s1 + $0x88] sm:$0xff]
  %v76 = vld [vmem:[%s1 + $0x90] sm:$0xff]
  %v77 = vld [vmem:[%s1 + $0x98] sm:$0xff]
  %v78 = vld [vmem:[%s1 + $0xa0] sm:$0xff]
  %v79 = vld [vmem:[%s1 + $0xa8] sm:$0xff]
  %v80 = vld [vmem:[%s1 + $0xb0] sm:$0xff]
  %v81 = vld [vmem:[%s1 + $0xb8] sm:$0xff]
  %v82 = vld [vmem:[%s1 + $0xc0] sm:$0xff]
  %v83 = vld [vmem:[%s1 + $0xc8] sm:$0xff]
  %v84 = vld [vmem:[%s1 + $0xd0] sm:$0xff]
  %v85 = vld [vmem:[%s1 + $0xd8] sm:$0xff]
  %v86 = vld [vmem:[%s1 + $0xe0] sm:$0xff]
  %v87 = vld [vmem:[%s1 + $0xe8] sm:$0xff]
  %v88 = vld [vmem:[%s1 + $0xf0] sm:$0xff]
  %v89 = vld [vmem:[%s1 + $0xf8] sm:$0xff]
  %v90 = vld [vmem:[%s2] sm:$0xff]
  %v91 = vld [vmem:[%s3] sm:$0x1]
  %v93 = vlaneseq
  %v94 = vshrl.u32 %v93, 7
  %v95 = vsub.s32 0, %v94
  %v96 = vrot.slane %v91, %v95
  %vm98 = vcmask 64512
  %v100 = vsel %vm98, %v58, 0
  %v103 = vsel %vm98, %v59, 0
  %v106 = vsel %vm98, %v60, 0
  %v109 = vsel %vm98, %v61, 0
  %v112 = vsel %vm98, %v62, 0
  %v115 = vsel %vm98, %v63, 0
  %v118 = vsel %vm98, %v64, 0
  %v121 = vsel %vm98, %v65, 0
  %v124 = vsel %vm98, %v66, 0
  %v127 = vsel %vm98, %v67, 0
  %v130 = vsel %vm98, %v68, 0
  %v133 = vsel %vm98, %v69, 0
  %v136 = vsel %vm98, %v70, 0
  %v139 = vsel %vm98, %v71, 0
  %v142 = vsel %vm98, %v72, 0
  %v145 = vsel %vm98, %v73, 0
  %v148 = vsel %vm98, %v74, 0
  %v151 = vsel %vm98, %v75, 0
  %v154 = vsel %vm98, %v76, 0
  %v157 = vsel %vm98, %v77, 0
  %v160 = vsel %vm98, %v78, 0
  %v163 = vsel %vm98, %v79, 0
  %v166 = vsel %vm98, %v80, 0
  %v169 = vsel %vm98, %v81, 0
  %v172 = vsel %vm98, %v82, 0
  %v175 = vsel %vm98, %v83, 0
  %v178 = vsel %vm98, %v84, 0
  %v181 = vsel %vm98, %v85, 0
  %v184 = vsel %vm98, %v86, 0
  %v187 = vsel %vm98, %v87, 0
  %v190 = vsel %vm98, %v88, 0
  %v193 = vsel %vm98, %v89, 0
  %195 = vmatprep.subr.mxu0 0.0
  %196 = vmatpush1.msra.mxu0 0.0
  %197 = vmatprep.subr.mxu0 0.0
  %198 = vmatpush1.msra.mxu0 0.0
  %199 = vmatprep.subr.mxu0 0.0
  %200 = vmatpush1.msra.mxu0 0.0
  %201 = vmatprep.subr.mxu0 0.0
  %202 = vmatpush1.msra.mxu0 0.0
  %203 = vmatprep.subr.mxu0 0.0
  %204 = vmatpush1.msra.mxu0 0.0
  %205 = vmatprep.subr.mxu0 0.0
  %206 = vmatpush1.msra.mxu0 0.0
  %207 = vmatprep.subr.mxu0 0.0
  %208 = vmatpush1.msra.mxu0 0.0
  %209 = vmatprep.subr.mxu0 0.0
  %210 = vmatpush1.msra.mxu0 0.0
  %211 = vmatprep.subr.mxu0 0.0
  %212 = vmatpush1.msra.mxu0 0.0
  %213 = vmatprep.subr.mxu0 0.0
  %214 = vmatpush1.msra.mxu0 0.0
  %215 = vmatprep.subr.mxu0 0.0
  %216 = vmatpush1.msra.mxu0 0.0
  %217 = vmatprep.subr.mxu0 0.0
  %218 = vmatpush1.msra.mxu0 0.0
  %219 = vmatprep.subr.mxu0 0.0
  %220 = vmatpush1.msra.mxu0 0.0
  %221 = vmatprep.subr.mxu0 0.0
  %222 = vmatpush1.msra.mxu0 0.0
  %223 = vmatprep.subr.mxu0 0.0
  %224 = vmatpush1.msra.mxu0 0.0
  %225 = vmatprep.subr.mxu0 0.0
  %226 = vmatpush1.msra.mxu0 %v90
  %227 = vmatprep.subr.mxu0 0.0
  %228 = vmatpush2.msra.mxu0 0.0
  %229 = vmatprep.subr.mxu0 0.0
  %230 = vmatpush2.msra.mxu0 0.0
  %231 = vmatprep.subr.mxu0 0.0
  %232 = vmatpush2.msra.mxu0 0.0
  %233 = vmatprep.subr.mxu0 0.0
  %234 = vmatpush2.msra.mxu0 0.0
  %235 = vmatprep.subr.mxu0 0.0
  %236 = vmatpush2.msra.mxu0 0.0
  %237 = vmatprep.subr.mxu0 0.0
  %238 = vmatpush2.msra.mxu0 0.0
  %239 = vmatprep.subr.mxu0 0.0
  %240 = vmatpush2.msra.mxu0 0.0
  %241 = vmatprep.subr.mxu0 0.0
  %242 = vmatpush2.msra.mxu0 0.0
  %243 = vmatprep.subr.mxu0 0.0
  %244 = vmatpush2.msra.mxu0 0.0
  %245 = vmatprep.subr.mxu0 0.0
  %246 = vmatpush2.msra.mxu0 0.0
  %247 = vmatprep.subr.mxu0 0.0
  %248 = vmatpush2.msra.mxu0 0.0
  %249 = vmatprep.subr.mxu0 0.0
  %250 = vmatpush2.msra.mxu0 0.0
  %251 = vmatprep.subr.mxu0 0.0
  %252 = vmatpush2.msra.mxu0 0.0
  %253 = vmatprep.subr.mxu0 0.0
  %254 = vmatpush2.msra.mxu0 0.0
  %255 = vmatprep.subr.mxu0 0.0
  %256 = vmatpush2.msra.mxu0 0.0
  %257 = vmatprep.subr.mxu0 0.0
  %258 = vmatpush2.msra.mxu0 0.0
  %259 = vmatprep.mubr.f32.mxu0 0.0
  %260 = vmatmul.mubr.f32.gmra.mxu0 %v100
  %v261 = vpop.f32.mrf.mxu0
  %v262 = vadd.f32 %v96, %v261
  %v263 = vpop.f32.mrf.mxu0
  %264 = vmatprep.mubr.f32.mxu0 0.0
  %265 = vmatmul.mubr.f32.gmra.mxu0 %v103
  %v266 = vpop.f32.mrf.mxu0
  %v267 = vadd.f32 %v96, %v266
  %v268 = vpop.f32.mrf.mxu0
  %269 = vmatprep.mubr.f32.mxu0 0.0
  %270 = vmatmul.mubr.f32.gmra.mxu0 %v106
  %v271 = vpop.f32.mrf.mxu0
  %v272 = vadd.f32 %v96, %v271
  %v273 = vpop.f32.mrf.mxu0
  %274 = vmatprep.mubr.f32.mxu0 0.0
  %275 = vmatmul.mubr.f32.gmra.mxu0 %v109
  %v276 = vpop.f32.mrf.mxu0
  %v277 = vadd.f32 %v96, %v276
  %v278 = vpop.f32.mrf.mxu0
  %279 = vmatprep.mubr.f32.mxu0 0.0
  %280 = vmatmul.mubr.f32.gmra.mxu0 %v112
  %v281 = vpop.f32.mrf.mxu0
  %v282 = vadd.f32 %v96, %v281
  %v283 = vpop.f32.mrf.mxu0
  %284 = vmatprep.mubr.f32.mxu0 0.0
  %285 = vmatmul.mubr.f32.gmra.mxu0 %v115
  %v286 = vpop.f32.mrf.mxu0
  %v287 = vadd.f32 %v96, %v286
  %v288 = vpop.f32.mrf.mxu0
  %289 = vmatprep.mubr.f32.mxu0 0.0
  %290 = vmatmul.mubr.f32.gmra.mxu0 %v118
  %v291 = vpop.f32.mrf.mxu0
  %v292 = vadd.f32 %v96, %v291
  %v293 = vpop.f32.mrf.mxu0
  %294 = vmatprep.mubr.f32.mxu0 0.0
  %295 = vmatmul.mubr.f32.gmra.mxu0 %v121
  %v296 = vpop.f32.mrf.mxu0
  %v297 = vadd.f32 %v96, %v296
  %v298 = vpop.f32.mrf.mxu0
  %299 = vmatprep.mubr.f32.mxu0 0.0
  %300 = vmatmul.mubr.f32.gmra.mxu0 %v124
  %v301 = vpop.f32.mrf.mxu0
  %v302 = vadd.f32 %v96, %v301
  %v303 = vpop.f32.mrf.mxu0
  %304 = vmatprep.mubr.f32.mxu0 0.0
  %305 = vmatmul.mubr.f32.gmra.mxu0 %v127
  %v306 = vpop.f32.mrf.mxu0
  %v307 = vadd.f32 %v96, %v306
  %v308 = vpop.f32.mrf.mxu0
  %309 = vmatprep.mubr.f32.mxu0 0.0
  %310 = vmatmul.mubr.f32.gmra.mxu0 %v130
  %v311 = vpop.f32.mrf.mxu0
  %v312 = vadd.f32 %v96, %v311
  %v313 = vpop.f32.mrf.mxu0
  %314 = vmatprep.mubr.f32.mxu0 0.0
  %315 = vmatmul.mubr.f32.gmra.mxu0 %v133
  %v316 = vpop.f32.mrf.mxu0
  %v317 = vadd.f32 %v96, %v316
  %v318 = vpop.f32.mrf.mxu0
  %319 = vmatprep.mubr.f32.mxu0 0.0
  %320 = vmatmul.mubr.f32.gmra.mxu0 %v136
  %v321 = vpop.f32.mrf.mxu0
  %v322 = vadd.f32 %v96, %v321
  %v323 = vpop.f32.mrf.mxu0
  %324 = vmatprep.mubr.f32.mxu0 0.0
  %325 = vmatmul.mubr.f32.gmra.mxu0 %v139
  %v326 = vpop.f32.mrf.mxu0
  %v327 = vadd.f32 %v96, %v326
  %v328 = vpop.f32.mrf.mxu0
  %329 = vmatprep.mubr.f32.mxu0 0.0
  %330 = vmatmul.mubr.f32.gmra.mxu0 %v142
  %v331 = vpop.f32.mrf.mxu0
  %v332 = vadd.f32 %v96, %v331
  %v333 = vpop.f32.mrf.mxu0
  %334 = vmatprep.mubr.f32.mxu0 0.0
  %335 = vmatmul.mubr.f32.gmra.mxu0 %v145
  %v336 = vpop.f32.mrf.mxu0
  %v337 = vadd.f32 %v96, %v336
  %v338 = vpop.f32.mrf.mxu0
  %339 = vmatprep.mubr.f32.mxu0 0.0
  %340 = vmatmul.mubr.f32.gmra.mxu0 %v148
  %v341 = vpop.f32.mrf.mxu0
  %v342 = vadd.f32 %v96, %v341
  %v343 = vpop.f32.mrf.mxu0
  %344 = vmatprep.mubr.f32.mxu0 0.0
  %345 = vmatmul.mubr.f32.gmra.mxu0 %v151
  %v346 = vpop.f32.mrf.mxu0
  %v347 = vadd.f32 %v96, %v346
  %v348 = vpop.f32.mrf.mxu0
  %349 = vmatprep.mubr.f32.mxu0 0.0
  %350 = vmatmul.mubr.f32.gmra.mxu0 %v154
  %v351 = vpop.f32.mrf.mxu0
  %v352 = vadd.f32 %v96, %v351
  %v353 = vpop.f32.mrf.mxu0
  %354 = vmatprep.mubr.f32.mxu0 0.0
  %355 = vmatmul.mubr.f32.gmra.mxu0 %v157
  %v356 = vpop.f32.mrf.mxu0
  %v357 = vadd.f32 %v96, %v356
  %v358 = vpop.f32.mrf.mxu0
  %359 = vmatprep.mubr.f32.mxu0 0.0
  %360 = vmatmul.mubr.f32.gmra.mxu0 %v160
  %v361 = vpop.f32.mrf.mxu0
  %v362 = vadd.f32 %v96, %v361
  %v363 = vpop.f32.mrf.mxu0
  %364 = vmatprep.mubr.f32.mxu0 0.0
  %365 = vmatmul.mubr.f32.gmra.mxu0 %v163
  %v366 = vpop.f32.mrf.mxu0
  %v367 = vadd.f32 %v96, %v366
  %v368 = vpop.f32.mrf.mxu0
  %369 = vmatprep.mubr.f32.mxu0 0.0
  %370 = vmatmul.mubr.f32.gmra.mxu0 %v166
  %v371 = vpop.f32.mrf.mxu0
  %v372 = vadd.f32 %v96, %v371
  %v373 = vpop.f32.mrf.mxu0
  %374 = vmatprep.mubr.f32.mxu0 0.0
  %375 = vmatmul.mubr.f32.gmra.mxu0 %v169
  %v376 = vpop.f32.mrf.mxu0
  %v377 = vadd.f32 %v96, %v376
  %v378 = vpop.f32.mrf.mxu0
  %379 = vmatprep.mubr.f32.mxu0 0.0
  %380 = vmatmul.mubr.f32.gmra.mxu0 %v172
  %v381 = vpop.f32.mrf.mxu0
  %v382 = vadd.f32 %v96, %v381
  %v383 = vpop.f32.mrf.mxu0
  %384 = vmatprep.mubr.f32.mxu0 0.0
  %385 = vmatmul.mubr.f32.gmra.mxu0 %v175
  %v386 = vpop.f32.mrf.mxu0
  %v387 = vadd.f32 %v96, %v386
  %v388 = vpop.f32.mrf.mxu0
  %389 = vmatprep.mubr.f32.mxu0 0.0
  %390 = vmatmul.mubr.f32.gmra.mxu0 %v178
  %v391 = vpop.f32.mrf.mxu0
  %v392 = vadd.f32 %v96, %v391
  %v393 = vpop.f32.mrf.mxu0
  %394 = vmatprep.mubr.f32.mxu0 0.0
  %395 = vmatmul.mubr.f32.gmra.mxu0 %v181
  %v396 = vpop.f32.mrf.mxu0
  %v397 = vadd.f32 %v96, %v396
  %v398 = vpop.f32.mrf.mxu0
  %399 = vmatprep.mubr.f32.mxu0 0.0
  %400 = vmatmul.mubr.f32.gmra.mxu0 %v184
  %v401 = vpop.f32.mrf.mxu0
  %v402 = vadd.f32 %v96, %v401
  %v403 = vpop.f32.mrf.mxu0
  %404 = vmatprep.mubr.f32.mxu0 0.0
  %405 = vmatmul.mubr.f32.gmra.mxu0 %v187
  %v406 = vpop.f32.mrf.mxu0
  %v407 = vadd.f32 %v96, %v406
  %v408 = vpop.f32.mrf.mxu0
  %409 = vmatprep.mubr.f32.mxu0 0.0
  %410 = vmatmul.mubr.f32.gmra.mxu0 %v190
  %v411 = vpop.f32.mrf.mxu0
  %v412 = vadd.f32 %v96, %v411
  %v413 = vpop.f32.mrf.mxu0
  %414 = vmatprep.mubr.f32.mxu0 0.0
  %415 = vmatmul.mubr.f32.gmra.mxu0 %v193
  %v416 = vpop.f32.mrf.mxu0
  %v417 = vadd.f32 %v96, %v416
  %v418 = vpop.f32.mrf.mxu0
  %419 = vdwg.mxu0
  %v420 = vmax.f32 %v262, 0.0
  %v421 = vmax.f32 %v267, 0.0
  %v422 = vmax.f32 %v272, 0.0
  %v423 = vmax.f32 %v277, 0.0
  %v424 = vmax.f32 %v282, 0.0
  %v425 = vmax.f32 %v287, 0.0
  %v426 = vmax.f32 %v292, 0.0
  %v427 = vmax.f32 %v297, 0.0
  %v428 = vmax.f32 %v302, 0.0
  %v429 = vmax.f32 %v307, 0.0
  %v430 = vmax.f32 %v312, 0.0
  %v431 = vmax.f32 %v317, 0.0
  %v432 = vmax.f32 %v322, 0.0
  %v433 = vmax.f32 %v327, 0.0
  %v434 = vmax.f32 %v332, 0.0
  %v435 = vmax.f32 %v337, 0.0
  %v436 = vmax.f32 %v342, 0.0
  %v437 = vmax.f32 %v347, 0.0
  %v438 = vmax.f32 %v352, 0.0
  %v439 = vmax.f32 %v357, 0.0
  %v440 = vmax.f32 %v362, 0.0
  %v441 = vmax.f32 %v367, 0.0
  %v442 = vmax.f32 %v372, 0.0
  %v443 = vmax.f32 %v377, 0.0
  %v444 = vmax.f32 %v382, 0.0
  %v445 = vmax.f32 %v387, 0.0
  %v446 = vmax.f32 %v392, 0.0
  %v447 = vmax.f32 %v397, 0.0
  %v448 = vmax.f32 %v402, 0.0
  %v449 = vmax.f32 %v407, 0.0
  %v450 = vmax.f32 %v412, 0.0
  %v451 = vmax.f32 %v417, 0.0
  %484 = vrot.lane.b32.xlu0 %v420, 8
  %v485 = vpop.permute.xlu0 %484
  %486 = vrot.lane.b32.xlu0 %v421, 8
  %v487 = vpop.permute.xlu0 %486
  %488 = vrot.lane.b32.xlu0 %v422, 8
  %v489 = vpop.permute.xlu0 %488
  %490 = vrot.lane.b32.xlu0 %v423, 8
  %v491 = vpop.permute.xlu0 %490
  %492 = vrot.lane.b32.xlu0 %v424, 8
  %v493 = vpop.permute.xlu0 %492
  %494 = vrot.lane.b32.xlu0 %v425, 8
  %v495 = vpop.permute.xlu0 %494
  %496 = vrot.lane.b32.xlu0 %v426, 8
  %v497 = vpop.permute.xlu0 %496
  %498 = vrot.lane.b32.xlu0 %v427, 8
  %v499 = vpop.permute.xlu0 %498
  %500 = vrot.lane.b32.xlu0 %v428, 8
  %v501 = vpop.permute.xlu0 %500
  %502 = vrot.lane.b32.xlu0 %v429, 8
  %v503 = vpop.permute.xlu0 %502
  %504 = vrot.lane.b32.xlu0 %v430, 8
  %v505 = vpop.permute.xlu0 %504
  %506 = vrot.lane.b32.xlu0 %v431, 8
  %v507 = vpop.permute.xlu0 %506
  %508 = vrot.lane.b32.xlu0 %v432, 8
  %v509 = vpop.permute.xlu0 %508
  %510 = vrot.lane.b32.xlu0 %v433, 8
  %v511 = vpop.permute.xlu0 %510
  %512 = vrot.lane.b32.xlu0 %v434, 8
  %v513 = vpop.permute.xlu0 %512
  %514 = vrot.lane.b32.xlu0 %v435, 8
  %v515 = vpop.permute.xlu0 %514
  %516 = vrot.lane.b32.xlu0 %v436, 8
  %v517 = vpop.permute.xlu0 %516
  %518 = vrot.lane.b32.xlu0 %v437, 8
  %v519 = vpop.permute.xlu0 %518
  %520 = vrot.lane.b32.xlu0 %v438, 8
  %v521 = vpop.permute.xlu0 %520
  %522 = vrot.lane.b32.xlu0 %v439, 8
  %v523 = vpop.permute.xlu0 %522
  %524 = vrot.lane.b32.xlu0 %v440, 8
  %v525 = vpop.permute.xlu0 %524
  %526 = vrot.lane.b32.xlu0 %v441, 8
  %v527 = vpop.permute.xlu0 %526
  %528 = vrot.lane.b32.xlu0 %v442, 8
  %v529 = vpop.permute.xlu0 %528
  %530 = vrot.lane.b32.xlu0 %v443, 8
  %v531 = vpop.permute.xlu0 %530
  %532 = vrot.lane.b32.xlu0 %v444, 8
  %v533 = vpop.permute.xlu0 %532
  %534 = vrot.lane.b32.xlu0 %v445, 8
  %v535 = vpop.permute.xlu0 %534
  %536 = vrot.lane.b32.xlu0 %v446, 8
  %v537 = vpop.permute.xlu0 %536
  %538 = vrot.lane.b32.xlu0 %v447, 8
  %v539 = vpop.permute.xlu0 %538
  %540 = vrot.lane.b32.xlu0 %v448, 8
  %v541 = vpop.permute.xlu0 %540
  %542 = vrot.lane.b32.xlu0 %v449, 8
  %v543 = vpop.permute.xlu0 %542
  %544 = vrot.lane.b32.xlu0 %v450, 8
  %v545 = vpop.permute.xlu0 %544
  %546 = vrot.lane.b32.xlu0 %v451, 8
  %v547 = vpop.permute.xlu0 %546
  %v580 = vsel %vm98, %v26, %v485
  %v581 = vsel %vm98, %v27, %v487
  %v582 = vsel %vm98, %v28, %v489
  %v583 = vsel %vm98, %v29, %v491
  %v584 = vsel %vm98, %v30, %v493
  %v585 = vsel %vm98, %v31, %v495
  %v586 = vsel %vm98, %v32, %v497
  %v587 = vsel %vm98, %v33, %v499
  %v588 = vsel %vm98, %v34, %v501
  %v589 = vsel %vm98, %v35, %v503
  %v590 = vsel %vm98, %v36, %v505
  %v591 = vsel %vm98, %v37, %v507
  %v592 = vsel %vm98, %v38, %v509
  %v593 = vsel %vm98, %v39, %v511
  %v594 = vsel %vm98, %v40, %v513
  %v595 = vsel %vm98, %v41, %v515
  %v596 = vsel %vm98, %v42, %v517
  %v597 = vsel %vm98, %v43, %v519
  %v598 = vsel %vm98, %v44, %v521
  %v599 = vsel %vm98, %v45, %v523
  %v600 = vsel %vm98, %v46, %v525
  %v601 = vsel %vm98, %v47, %v527
  %v602 = vsel %vm98, %v48, %v529
  %v603 = vsel %vm98, %v49, %v531
  %v604 = vsel %vm98, %v50, %v533
  %v605 = vsel %vm98, %v51, %v535
  %v606 = vsel %vm98, %v52, %v537
  %v607 = vsel %vm98, %v53, %v539
  %v608 = vsel %vm98, %v54, %v541
  %v609 = vsel %vm98, %v55, %v543
  %v610 = vsel %vm98, %v56, %v545
  %v611 = vsel %vm98, %v57, %v547
  %v612 = vld [vmem:[%s4] sm:$0xff]
  %v613 = vld [vmem:[%s4 + $0x8] sm:$0xff]
  %vm614 = vcmask 130048
  %v616 = vsel %vm614, %v580, 0
  %v619 = vsel %vm614, %v581, 0
  %v622 = vsel %vm614, %v582, 0
  %v625 = vsel %vm614, %v583, 0
  %v628 = vsel %vm614, %v584, 0
  %v631 = vsel %vm614, %v585, 0
  %v634 = vsel %vm614, %v586, 0
  %v637 = vsel %vm614, %v587, 0
  %v640 = vsel %vm614, %v588, 0
  %v643 = vsel %vm614, %v589, 0
  %v646 = vsel %vm614, %v590, 0
  %v649 = vsel %vm614, %v591, 0
  %v652 = vsel %vm614, %v592, 0
  %v655 = vsel %vm614, %v593, 0
  %v658 = vsel %vm614, %v594, 0
  %v661 = vsel %vm614, %v595, 0
  %v664 = vsel %vm614, %v596, 0
  %v667 = vsel %vm614, %v597, 0
  %v670 = vsel %vm614, %v598, 0
  %v673 = vsel %vm614, %v599, 0
  %v676 = vsel %vm614, %v600, 0
  %v679 = vsel %vm614, %v601, 0
  %v682 = vsel %vm614, %v602, 0
  %v685 = vsel %vm614, %v603, 0
  %v688 = vsel %vm614, %v604, 0
  %v691 = vsel %vm614, %v605, 0
  %v694 = vsel %vm614, %v606, 0
  %v697 = vsel %vm614, %v607, 0
  %v700 = vsel %vm614, %v608, 0
  %v703 = vsel %vm614, %v609, 0
  %v706 = vsel %vm614, %v610, 0
  %v709 = vsel %vm614, %v611, 0
  %711 = vmatprep.subr.mxu0 0.0
  %712 = vmatpush1.msra.mxu0 0.0
  %713 = vmatprep.subr.mxu0 0.0
  %714 = vmatpush1.msra.mxu0 0.0
  %715 = vmatprep.subr.mxu0 0.0
  %716 = vmatpush1.msra.mxu0 0.0
  %717 = vmatprep.subr.mxu0 0.0
  %718 = vmatpush1.msra.mxu0 0.0
  %719 = vmatprep.subr.mxu0 0.0
  %720 = vmatpush1.msra.mxu0 0.0
  %721 = vmatprep.subr.mxu0 0.0
  %722 = vmatpush1.msra.mxu0 0.0
  %723 = vmatprep.subr.mxu0 0.0
  %724 = vmatpush1.msra.mxu0 0.0
  %725 = vmatprep.subr.mxu0 0.0
  %726 = vmatpush1.msra.mxu0 0.0
  %727 = vmatprep.subr.mxu0 0.0
  %728 = vmatpush1.msra.mxu0 0.0
  %729 = vmatprep.subr.mxu0 0.0
  %730 = vmatpush1.msra.mxu0 0.0
  %731 = vmatprep.subr.mxu0 0.0
  %732 = vmatpush1.msra.mxu0 0.0
  %733 = vmatprep.subr.mxu0 0.0
  %734 = vmatpush1.msra.mxu0 0.0
  %735 = vmatprep.subr.mxu0 0.0
  %736 = vmatpush1.msra.mxu0 0.0
  %737 = vmatprep.subr.mxu0 0.0
  %738 = vmatpush1.msra.mxu0 0.0
  %739 = vmatprep.subr.mxu0 0.0
  %740 = vmatpush1.msra.mxu0 %v613
  %741 = vmatprep.subr.mxu0 0.0
  %742 = vmatpush1.msra.mxu0 %v612
  %743 = vmatprep.subr.mxu0 0.0
  %744 = vmatpush2.msra.mxu0 0.0
  %745 = vmatprep.subr.mxu0 0.0
  %746 = vmatpush2.msra.mxu0 0.0
  %747 = vmatprep.subr.mxu0 0.0
  %748 = vmatpush2.msra.mxu0 0.0
  %749 = vmatprep.subr.mxu0 0.0
  %750 = vmatpush2.msra.mxu0 0.0
  %751 = vmatprep.subr.mxu0 0.0
  %752 = vmatpush2.msra.mxu0 0.0
  %753 = vmatprep.subr.mxu0 0.0
  %754 = vmatpush2.msra.mxu0 0.0
  %755 = vmatprep.subr.mxu0 0.0
  %756 = vmatpush2.msra.mxu0 0.0
  %757 = vmatprep.subr.mxu0 0.0
  %758 = vmatpush2.msra.mxu0 0.0
  %759 = vmatprep.subr.mxu0 0.0
  %760 = vmatpush2.msra.mxu0 0.0
  %761 = vmatprep.subr.mxu0 0.0
  %762 = vmatpush2.msra.mxu0 0.0
  %763 = vmatprep.subr.mxu0 0.0
  %764 = vmatpush2.msra.mxu0 0.0
  %765 = vmatprep.subr.mxu0 0.0
  %766 = vmatpush2.msra.mxu0 0.0
  %767 = vmatprep.subr.mxu0 0.0
  %768 = vmatpush2.msra.mxu0 0.0
  %769 = vmatprep.subr.mxu0 0.0
  %770 = vmatpush2.msra.mxu0 0.0
  %771 = vmatprep.subr.mxu0 0.0
  %772 = vmatpush2.msra.mxu0 0.0
  %773 = vmatprep.subr.mxu0 0.0
  %774 = vmatpush2.msra.mxu0 0.0
  %775 = vmatprep.mubr.f32.mxu0 0.0
  %776 = vmatmul.mubr.f32.gmra.mxu0 %v616
  %v777 = vpop.f32.mrf.mxu0
  %v778 = vadd.f32 0.0, %v777
  %v779 = vpop.f32.mrf.mxu0
  %780 = vmatprep.mubr.f32.mxu0 0.0
  %781 = vmatmul.mubr.f32.gmra.mxu0 %v619
  %v782 = vpop.f32.mrf.mxu0
  %v783 = vadd.f32 0.0, %v782
  %v784 = vpop.f32.mrf.mxu0
  %785 = vmatprep.mubr.f32.mxu0 0.0
  %786 = vmatmul.mubr.f32.gmra.mxu0 %v622
  %v787 = vpop.f32.mrf.mxu0
  %v788 = vadd.f32 0.0, %v787
  %v789 = vpop.f32.mrf.mxu0
  %790 = vmatprep.mubr.f32.mxu0 0.0
  %791 = vmatmul.mubr.f32.gmra.mxu0 %v625
  %v792 = vpop.f32.mrf.mxu0
  %v793 = vadd.f32 0.0, %v792
  %v794 = vpop.f32.mrf.mxu0
  %795 = vmatprep.mubr.f32.mxu0 0.0
  %796 = vmatmul.mubr.f32.gmra.mxu0 %v628
  %v797 = vpop.f32.mrf.mxu0
  %v798 = vadd.f32 0.0, %v797
  %v799 = vpop.f32.mrf.mxu0
  %800 = vmatprep.mubr.f32.mxu0 0.0
  %801 = vmatmul.mubr.f32.gmra.mxu0 %v631
  %v802 = vpop.f32.mrf.mxu0
  %v803 = vadd.f32 0.0, %v802
  %v804 = vpop.f32.mrf.mxu0
  %805 = vmatprep.mubr.f32.mxu0 0.0
  %806 = vmatmul.mubr.f32.gmra.mxu0 %v634
  %v807 = vpop.f32.mrf.mxu0
  %v808 = vadd.f32 0.0, %v807
  %v809 = vpop.f32.mrf.mxu0
  %810 = vmatprep.mubr.f32.mxu0 0.0
  %811 = vmatmul.mubr.f32.gmra.mxu0 %v637
  %v812 = vpop.f32.mrf.mxu0
  %v813 = vadd.f32 0.0, %v812
  %v814 = vpop.f32.mrf.mxu0
  %815 = vmatprep.mubr.f32.mxu0 0.0
  %816 = vmatmul.mubr.f32.gmra.mxu0 %v640
  %v817 = vpop.f32.mrf.mxu0
  %v818 = vadd.f32 0.0, %v817
  %v819 = vpop.f32.mrf.mxu0
  %820 = vmatprep.mubr.f32.mxu0 0.0
  %821 = vmatmul.mubr.f32.gmra.mxu0 %v643
  %v822 = vpop.f32.mrf.mxu0
  %v823 = vadd.f32 0.0, %v822
  %v824 = vpop.f32.mrf.mxu0
  %825 = vmatprep.mubr.f32.mxu0 0.0
  %826 = vmatmul.mubr.f32.gmra.mxu0 %v646
  %v827 = vpop.f32.mrf.mxu0
  %v828 = vadd.f32 0.0, %v827
  %v829 = vpop.f32.mrf.mxu0
  %830 = vmatprep.mubr.f32.mxu0 0.0
  %831 = vmatmul.mubr.f32.gmra.mxu0 %v649
  %v832 = vpop.f32.mrf.mxu0
  %v833 = vadd.f32 0.0, %v832
  %v834 = vpop.f32.mrf.mxu0
  %835 = vmatprep.mubr.f32.mxu0 0.0
  %836 = vmatmul.mubr.f32.gmra.mxu0 %v652
  %v837 = vpop.f32.mrf.mxu0
  %v838 = vadd.f32 0.0, %v837
  %v839 = vpop.f32.mrf.mxu0
  %840 = vmatprep.mubr.f32.mxu0 0.0
  %841 = vmatmul.mubr.f32.gmra.mxu0 %v655
  %v842 = vpop.f32.mrf.mxu0
  %v843 = vadd.f32 0.0, %v842
  %v844 = vpop.f32.mrf.mxu0
  %845 = vmatprep.mubr.f32.mxu0 0.0
  %846 = vmatmul.mubr.f32.gmra.mxu0 %v658
  %v847 = vpop.f32.mrf.mxu0
  %v848 = vadd.f32 0.0, %v847
  %v849 = vpop.f32.mrf.mxu0
  %850 = vmatprep.mubr.f32.mxu0 0.0
  %851 = vmatmul.mubr.f32.gmra.mxu0 %v661
  %v852 = vpop.f32.mrf.mxu0
  %v853 = vadd.f32 0.0, %v852
  %v854 = vpop.f32.mrf.mxu0
  %855 = vmatprep.mubr.f32.mxu0 0.0
  %856 = vmatmul.mubr.f32.gmra.mxu0 %v664
  %v857 = vpop.f32.mrf.mxu0
  %v858 = vadd.f32 0.0, %v857
  %v859 = vpop.f32.mrf.mxu0
  %860 = vmatprep.mubr.f32.mxu0 0.0
  %861 = vmatmul.mubr.f32.gmra.mxu0 %v667
  %v862 = vpop.f32.mrf.mxu0
  %v863 = vadd.f32 0.0, %v862
  %v864 = vpop.f32.mrf.mxu0
  %865 = vmatprep.mubr.f32.mxu0 0.0
  %866 = vmatmul.mubr.f32.gmra.mxu0 %v670
  %v867 = vpop.f32.mrf.mxu0
  %v868 = vadd.f32 0.0, %v867
  %v869 = vpop.f32.mrf.mxu0
  %870 = vmatprep.mubr.f32.mxu0 0.0
  %871 = vmatmul.mubr.f32.gmra.mxu0 %v673
  %v872 = vpop.f32.mrf.mxu0
  %v873 = vadd.f32 0.0, %v872
  %v874 = vpop.f32.mrf.mxu0
  %875 = vmatprep.mubr.f32.mxu0 0.0
  %876 = vmatmul.mubr.f32.gmra.mxu0 %v676
  %v877 = vpop.f32.mrf.mxu0
  %v878 = vadd.f32 0.0, %v877
  %v879 = vpop.f32.mrf.mxu0
  %880 = vmatprep.mubr.f32.mxu0 0.0
  %881 = vmatmul.mubr.f32.gmra.mxu0 %v679
  %v882 = vpop.f32.mrf.mxu0
  %v883 = vadd.f32 0.0, %v882
  %v884 = vpop.f32.mrf.mxu0
  %885 = vmatprep.mubr.f32.mxu0 0.0
  %886 = vmatmul.mubr.f32.gmra.mxu0 %v682
  %v887 = vpop.f32.mrf.mxu0
  %v888 = vadd.f32 0.0, %v887
  %v889 = vpop.f32.mrf.mxu0
  %890 = vmatprep.mubr.f32.mxu0 0.0
  %891 = vmatmul.mubr.f32.gmra.mxu0 %v685
  %v892 = vpop.f32.mrf.mxu0
  %v893 = vadd.f32 0.0, %v892
  %v894 = vpop.f32.mrf.mxu0
  %895 = vmatprep.mubr.f32.mxu0 0.0
  %896 = vmatmul.mubr.f32.gmra.mxu0 %v688
  %v897 = vpop.f32.mrf.mxu0
  %v898 = vadd.f32 0.0, %v897
  %v899 = vpop.f32.mrf.mxu0
  %900 = vmatprep.mubr.f32.mxu0 0.0
  %901 = vmatmul.mubr.f32.gmra.mxu0 %v691
  %v902 = vpop.f32.mrf.mxu0
  %v903 = vadd.f32 0.0, %v902
  %v904 = vpop.f32.mrf.mxu0
  %905 = vmatprep.mubr.f32.mxu0 0.0
  %906 = vmatmul.mubr.f32.gmra.mxu0 %v694
  %v907 = vpop.f32.mrf.mxu0
  %v908 = vadd.f32 0.0, %v907
  %v909 = vpop.f32.mrf.mxu0
  %910 = vmatprep.mubr.f32.mxu0 0.0
  %911 = vmatmul.mubr.f32.gmra.mxu0 %v697
  %v912 = vpop.f32.mrf.mxu0
  %v913 = vadd.f32 0.0, %v912
  %v914 = vpop.f32.mrf.mxu0
  %915 = vmatprep.mubr.f32.mxu0 0.0
  %916 = vmatmul.mubr.f32.gmra.mxu0 %v700
  %v917 = vpop.f32.mrf.mxu0
  %v918 = vadd.f32 0.0, %v917
  %v919 = vpop.f32.mrf.mxu0
  %920 = vmatprep.mubr.f32.mxu0 0.0
  %921 = vmatmul.mubr.f32.gmra.mxu0 %v703
  %v922 = vpop.f32.mrf.mxu0
  %v923 = vadd.f32 0.0, %v922
  %v924 = vpop.f32.mrf.mxu0
  %925 = vmatprep.mubr.f32.mxu0 0.0
  %926 = vmatmul.mubr.f32.gmra.mxu0 %v706
  %v927 = vpop.f32.mrf.mxu0
  %v928 = vadd.f32 0.0, %v927
  %v929 = vpop.f32.mrf.mxu0
  %930 = vmatprep.mubr.f32.mxu0 0.0
  %931 = vmatmul.mubr.f32.gmra.mxu0 %v709
  %v932 = vpop.f32.mrf.mxu0
  %v933 = vadd.f32 0.0, %v932
  %v934 = vpop.f32.mrf.mxu0
  %935 = vdwg.mxu0
  %v936 = vsel %vm614, %v778, -inf
  %v937 = vrot.slane %v936, 4
  %v938 = vmax.f32 %v936, %v937
  %v939 = vrot.slane %v938, 2
  %v940 = vmax.f32 %v938, %v939
  %v941 = vrot.slane %v940, 1
  %v942 = vmax.f32 %v940, %v941
  %v943 = vsel %vm614, %v783, -inf
  %v944 = vrot.slane %v943, 4
  %v945 = vmax.f32 %v943, %v944
  %v946 = vrot.slane %v945, 2
  %v947 = vmax.f32 %v945, %v946
  %v948 = vrot.slane %v947, 1
  %v949 = vmax.f32 %v947, %v948
  %v950 = vsel %vm614, %v788, -inf
  %v951 = vrot.slane %v950, 4
  %v952 = vmax.f32 %v950, %v951
  %v953 = vrot.slane %v952, 2
  %v954 = vmax.f32 %v952, %v953
  %v955 = vrot.slane %v954, 1
  %v956 = vmax.f32 %v954, %v955
  %v957 = vsel %vm614, %v793, -inf
  %v958 = vrot.slane %v957, 4
  %v959 = vmax.f32 %v957, %v958
  %v960 = vrot.slane %v959, 2
  %v961 = vmax.f32 %v959, %v960
  %v962 = vrot.slane %v961, 1
  %v963 = vmax.f32 %v961, %v962
  %v964 = vsel %vm614, %v798, -inf
  %v965 = vrot.slane %v964, 4
  %v966 = vmax.f32 %v964, %v965
  %v967 = vrot.slane %v966, 2
  %v968 = vmax.f32 %v966, %v967
  %v969 = vrot.slane %v968, 1
  %v970 = vmax.f32 %v968, %v969
  %v971 = vsel %vm614, %v803, -inf
  %v972 = vrot.slane %v971, 4
  %v973 = vmax.f32 %v971, %v972
  %v974 = vrot.slane %v973, 2
  %v975 = vmax.f32 %v973, %v974
  %v976 = vrot.slane %v975, 1
  %v977 = vmax.f32 %v975, %v976
  %v978 = vsel %vm614, %v808, -inf
  %v979 = vrot.slane %v978, 4
  %v980 = vmax.f32 %v978, %v979
  %v981 = vrot.slane %v980, 2
  %v982 = vmax.f32 %v980, %v981
  %v983 = vrot.slane %v982, 1
  %v984 = vmax.f32 %v982, %v983
  %v985 = vsel %vm614, %v813, -inf
  %v986 = vrot.slane %v985, 4
  %v987 = vmax.f32 %v985, %v986
  %v988 = vrot.slane %v987, 2
  %v989 = vmax.f32 %v987, %v988
  %v990 = vrot.slane %v989, 1
  %v991 = vmax.f32 %v989, %v990
  %v992 = vsel %vm614, %v818, -inf
  %v993 = vrot.slane %v992, 4
  %v994 = vmax.f32 %v992, %v993
  %v995 = vrot.slane %v994, 2
  %v996 = vmax.f32 %v994, %v995
  %v997 = vrot.slane %v996, 1
  %v998 = vmax.f32 %v996, %v997
  %v999 = vsel %vm614, %v823, -inf
  %v1000 = vrot.slane %v999, 4
  %v1001 = vmax.f32 %v999, %v1000
  %v1002 = vrot.slane %v1001, 2
  %v1003 = vmax.f32 %v1001, %v1002
  %v1004 = vrot.slane %v1003, 1
  %v1005 = vmax.f32 %v1003, %v1004
  %v1006 = vsel %vm614, %v828, -inf
  %v1007 = vrot.slane %v1006, 4
  %v1008 = vmax.f32 %v1006, %v1007
  %v1009 = vrot.slane %v1008, 2
  %v1010 = vmax.f32 %v1008, %v1009
  %v1011 = vrot.slane %v1010, 1
  %v1012 = vmax.f32 %v1010, %v1011
  %v1013 = vsel %vm614, %v833, -inf
  %v1014 = vrot.slane %v1013, 4
  %v1015 = vmax.f32 %v1013, %v1014
  %v1016 = vrot.slane %v1015, 2
  %v1017 = vmax.f32 %v1015, %v1016
  %v1018 = vrot.slane %v1017, 1
  %v1019 = vmax.f32 %v1017, %v1018
  %v1020 = vsel %vm614, %v838, -inf
  %v1021 = vrot.slane %v1020, 4
  %v1022 = vmax.f32 %v1020, %v1021
  %v1023 = vrot.slane %v1022, 2
  %v1024 = vmax.f32 %v1022, %v1023
  %v1025 = vrot.slane %v1024, 1
  %v1026 = vmax.f32 %v1024, %v1025
  %v1027 = vsel %vm614, %v843, -inf
  %v1028 = vrot.slane %v1027, 4
  %v1029 = vmax.f32 %v1027, %v1028
  %v1030 = vrot.slane %v1029, 2
  %v1031 = vmax.f32 %v1029, %v1030
  %v1032 = vrot.slane %v1031, 1
  %v1033 = vmax.f32 %v1031, %v1032
  %v1034 = vsel %vm614, %v848, -inf
  %v1035 = vrot.slane %v1034, 4
  %v1036 = vmax.f32 %v1034, %v1035
  %v1037 = vrot.slane %v1036, 2
  %v1038 = vmax.f32 %v1036, %v1037
  %v1039 = vrot.slane %v1038, 1
  %v1040 = vmax.f32 %v1038, %v1039
  %v1041 = vsel %vm614, %v853, -inf
  %v1042 = vrot.slane %v1041, 4
  %v1043 = vmax.f32 %v1041, %v1042
  %v1044 = vrot.slane %v1043, 2
  %v1045 = vmax.f32 %v1043, %v1044
  %v1046 = vrot.slane %v1045, 1
  %v1047 = vmax.f32 %v1045, %v1046
  %v1048 = vsel %vm614, %v858, -inf
  %v1049 = vrot.slane %v1048, 4
  %v1050 = vmax.f32 %v1048, %v1049
  %v1051 = vrot.slane %v1050, 2
  %v1052 = vmax.f32 %v1050, %v1051
  %v1053 = vrot.slane %v1052, 1
  %v1054 = vmax.f32 %v1052, %v1053
  %v1055 = vsel %vm614, %v863, -inf
  %v1056 = vrot.slane %v1055, 4
  %v1057 = vmax.f32 %v1055, %v1056
  %v1058 = vrot.slane %v1057, 2
  %v1059 = vmax.f32 %v1057, %v1058
  %v1060 = vrot.slane %v1059, 1
  %v1061 = vmax.f32 %v1059, %v1060
  %v1062 = vsel %vm614, %v868, -inf
  %v1063 = vrot.slane %v1062, 4
  %v1064 = vmax.f32 %v1062, %v1063
  %v1065 = vrot.slane %v1064, 2
  %v1066 = vmax.f32 %v1064, %v1065
  %v1067 = vrot.slane %v1066, 1
  %v1068 = vmax.f32 %v1066, %v1067
  %v1069 = vsel %vm614, %v873, -inf
  %v1070 = vrot.slane %v1069, 4
  %v1071 = vmax.f32 %v1069, %v1070
  %v1072 = vrot.slane %v1071, 2
  %v1073 = vmax.f32 %v1071, %v1072
  %v1074 = vrot.slane %v1073, 1
  %v1075 = vmax.f32 %v1073, %v1074
  %v1076 = vsel %vm614, %v878, -inf
  %v1077 = vrot.slane %v1076, 4
  %v1078 = vmax.f32 %v1076, %v1077
  %v1079 = vrot.slane %v1078, 2
  %v1080 = vmax.f32 %v1078, %v1079
  %v1081 = vrot.slane %v1080, 1
  %v1082 = vmax.f32 %v1080, %v1081
  %v1083 = vsel %vm614, %v883, -inf
  %v1084 = vrot.slane %v1083, 4
  %v1085 = vmax.f32 %v1083, %v1084
  %v1086 = vrot.slane %v1085, 2
  %v1087 = vmax.f32 %v1085, %v1086
  %v1088 = vrot.slane %v1087, 1
  %v1089 = vmax.f32 %v1087, %v1088
  %v1090 = vsel %vm614, %v888, -inf
  %v1091 = vrot.slane %v1090, 4
  %v1092 = vmax.f32 %v1090, %v1091
  %v1093 = vrot.slane %v1092, 2
  %v1094 = vmax.f32 %v1092, %v1093
  %v1095 = vrot.slane %v1094, 1
  %v1096 = vmax.f32 %v1094, %v1095
  %v1097 = vsel %vm614, %v893, -inf
  %v1098 = vrot.slane %v1097, 4
  %v1099 = vmax.f32 %v1097, %v1098
  %v1100 = vrot.slane %v1099, 2
  %v1101 = vmax.f32 %v1099, %v1100
  %v1102 = vrot.slane %v1101, 1
  %v1103 = vmax.f32 %v1101, %v1102
  %v1104 = vsel %vm614, %v898, -inf
  %v1105 = vrot.slane %v1104, 4
  %v1106 = vmax.f32 %v1104, %v1105
  %v1107 = vrot.slane %v1106, 2
  %v1108 = vmax.f32 %v1106, %v1107
  %v1109 = vrot.slane %v1108, 1
  %v1110 = vmax.f32 %v1108, %v1109
  %v1111 = vsel %vm614, %v903, -inf
  %v1112 = vrot.slane %v1111, 4
  %v1113 = vmax.f32 %v1111, %v1112
  %v1114 = vrot.slane %v1113, 2
  %v1115 = vmax.f32 %v1113, %v1114
  %v1116 = vrot.slane %v1115, 1
  %v1117 = vmax.f32 %v1115, %v1116
  %v1118 = vsel %vm614, %v908, -inf
  %v1119 = vrot.slane %v1118, 4
  %v1120 = vmax.f32 %v1118, %v1119
  %v1121 = vrot.slane %v1120, 2
  %v1122 = vmax.f32 %v1120, %v1121
  %v1123 = vrot.slane %v1122, 1
  %v1124 = vmax.f32 %v1122, %v1123
  %v1125 = vsel %vm614, %v913, -inf
  %v1126 = vrot.slane %v1125, 4
  %v1127 = vmax.f32 %v1125, %v1126
  %v1128 = vrot.slane %v1127, 2
  %v1129 = vmax.f32 %v1127, %v1128
  %v1130 = vrot.slane %v1129, 1
  %v1131 = vmax.f32 %v1129, %v1130
  %v1132 = vsel %vm614, %v918, -inf
  %v1133 = vrot.slane %v1132, 4
  %v1134 = vmax.f32 %v1132, %v1133
  %v1135 = vrot.slane %v1134, 2
  %v1136 = vmax.f32 %v1134, %v1135
  %v1137 = vrot.slane %v1136, 1
  %v1138 = vmax.f32 %v1136, %v1137
  %v1139 = vsel %vm614, %v923, -inf
  %v1140 = vrot.slane %v1139, 4
  %v1141 = vmax.f32 %v1139, %v1140
  %v1142 = vrot.slane %v1141, 2
  %v1143 = vmax.f32 %v1141, %v1142
  %v1144 = vrot.slane %v1143, 1
  %v1145 = vmax.f32 %v1143, %v1144
  %v1146 = vsel %vm614, %v928, -inf
  %v1147 = vrot.slane %v1146, 4
  %v1148 = vmax.f32 %v1146, %v1147
  %v1149 = vrot.slane %v1148, 2
  %v1150 = vmax.f32 %v1148, %v1149
  %v1151 = vrot.slane %v1150, 1
  %v1152 = vmax.f32 %v1150, %v1151
  %v1153 = vsel %vm614, %v933, -inf
  %v1154 = vrot.slane %v1153, 4
  %v1155 = vmax.f32 %v1153, %v1154
  %v1156 = vrot.slane %v1155, 2
  %v1157 = vmax.f32 %v1155, %v1156
  %v1158 = vrot.slane %v1157, 1
  %v1159 = vmax.f32 %v1157, %v1158
  %v1160 = vsub.f32 %v778, %v942
  %v1161 = vsub.f32 %v783, %v949
  %v1162 = vsub.f32 %v788, %v956
  %v1163 = vsub.f32 %v793, %v963
  %v1164 = vsub.f32 %v798, %v970
  %v1165 = vsub.f32 %v803, %v977
  %v1166 = vsub.f32 %v808, %v984
  %v1167 = vsub.f32 %v813, %v991
  %v1168 = vsub.f32 %v818, %v998
  %v1169 = vsub.f32 %v823, %v1005
  %v1170 = vsub.f32 %v828, %v1012
  %v1171 = vsub.f32 %v833, %v1019
  %v1172 = vsub.f32 %v838, %v1026
  %v1173 = vsub.f32 %v843, %v1033
  %v1174 = vsub.f32 %v848, %v1040
  %v1175 = vsub.f32 %v853, %v1047
  %v1176 = vsub.f32 %v858, %v1054
  %v1177 = vsub.f32 %v863, %v1061
  %v1178 = vsub.f32 %v868, %v1068
  %v1179 = vsub.f32 %v873, %v1075
  %v1180 = vsub.f32 %v878, %v1082
  %v1181 = vsub.f32 %v883, %v1089
  %v1182 = vsub.f32 %v888, %v1096
  %v1183 = vsub.f32 %v893, %v1103
  %v1184 = vsub.f32 %v898, %v1110
  %v1185 = vsub.f32 %v903, %v1117
  %v1186 = vsub.f32 %v908, %v1124
  %v1187 = vsub.f32 %v913, %v1131
  %v1188 = vsub.f32 %v918, %v1138
  %v1189 = vsub.f32 %v923, %v1145
  %v1190 = vsub.f32 %v928, %v1152
  %v1191 = vsub.f32 %v933, %v1159
  %v1192 = vmul.f32 %v1160, 1.442695
  %v1193 = vpow.pop %v1192
  %v1194 = vmul.f32 %v1161, 1.442695
  %v1195 = vpow.pop %v1194
  %v1196 = vmul.f32 %v1162, 1.442695
  %v1197 = vpow.pop %v1196
  %v1198 = vmul.f32 %v1163, 1.442695
  %v1199 = vpow.pop %v1198
  %v1200 = vmul.f32 %v1164, 1.442695
  %v1201 = vpow.pop %v1200
  %v1202 = vmul.f32 %v1165, 1.442695
  %v1203 = vpow.pop %v1202
  %v1204 = vmul.f32 %v1166, 1.442695
  %v1205 = vpow.pop %v1204
  %v1206 = vmul.f32 %v1167, 1.442695
  %v1207 = vpow.pop %v1206
  %v1208 = vmul.f32 %v1168, 1.442695
  %v1209 = vpow.pop %v1208
  %v1210 = vmul.f32 %v1169, 1.442695
  %v1211 = vpow.pop %v1210
  %v1212 = vmul.f32 %v1170, 1.442695
  %v1213 = vpow.pop %v1212
  %v1214 = vmul.f32 %v1171, 1.442695
  %v1215 = vpow.pop %v1214
  %v1216 = vmul.f32 %v1172, 1.442695
  %v1217 = vpow.pop %v1216
  %v1218 = vmul.f32 %v1173, 1.442695
  %v1219 = vpow.pop %v1218
  %v1220 = vmul.f32 %v1174, 1.442695
  %v1221 = vpow.pop %v1220
  %v1222 = vmul.f32 %v1175, 1.442695
  %v1223 = vpow.pop %v1222
  %v1224 = vmul.f32 %v1176, 1.442695
  %v1225 = vpow.pop %v1224
  %v1226 = vmul.f32 %v1177, 1.442695
  %v1227 = vpow.pop %v1226
  %v1228 = vmul.f32 %v1178, 1.442695
  %v1229 = vpow.pop %v1228
  %v1230 = vmul.f32 %v1179, 1.442695
  %v1231 = vpow.pop %v1230
  %v1232 = vmul.f32 %v1180, 1.442695
  %v1233 = vpow.pop %v1232
  %v1234 = vmul.f32 %v1181, 1.442695
  %v1235 = vpow.pop %v1234
  %v1236 = vmul.f32 %v1182, 1.442695
  %v1237 = vpow.pop %v1236
  %v1238 = vmul.f32 %v1183, 1.442695
  %v1239 = vpow.pop %v1238
  %v1240 = vmul.f32 %v1184, 1.442695
  %v1241 = vpow.pop %v1240
  %v1242 = vmul.f32 %v1185, 1.442695
  %v1243 = vpow.pop %v1242
  %v1244 = vmul.f32 %v1186, 1.442695
  %v1245 = vpow.pop %v1244
  %v1246 = vmul.f32 %v1187, 1.442695
  %v1247 = vpow.pop %v1246
  %v1248 = vmul.f32 %v1188, 1.442695
  %v1249 = vpow.pop %v1248
  %v1250 = vmul.f32 %v1189, 1.442695
  %v1251 = vpow.pop %v1250
  %v1252 = vmul.f32 %v1190, 1.442695
  %v1253 = vpow.pop %v1252
  %v1254 = vmul.f32 %v1191, 1.442695
  %v1255 = vpow.pop %v1254
  %v1256 = vsel %vm614, %v1193, 0.0
  %v1257 = vrot.slane %v1256, 4
  %v1258 = vadd.f32 %v1256, %v1257
  %v1259 = vrot.slane %v1258, 2
  %v1260 = vadd.f32 %v1258, %v1259
  %v1261 = vrot.slane %v1260, 1
  %v1262 = vadd.f32 %v1260, %v1261
  %v1263 = vsel %vm614, %v1195, 0.0
  %v1264 = vrot.slane %v1263, 4
  %v1265 = vadd.f32 %v1263, %v1264
  %v1266 = vrot.slane %v1265, 2
  %v1267 = vadd.f32 %v1265, %v1266
  %v1268 = vrot.slane %v1267, 1
  %v1269 = vadd.f32 %v1267, %v1268
  %v1270 = vsel %vm614, %v1197, 0.0
  %v1271 = vrot.slane %v1270, 4
  %v1272 = vadd.f32 %v1270, %v1271
  %v1273 = vrot.slane %v1272, 2
  %v1274 = vadd.f32 %v1272, %v1273
  %v1275 = vrot.slane %v1274, 1
  %v1276 = vadd.f32 %v1274, %v1275
  %v1277 = vsel %vm614, %v1199, 0.0
  %v1278 = vrot.slane %v1277, 4
  %v1279 = vadd.f32 %v1277, %v1278
  %v1280 = vrot.slane %v1279, 2
  %v1281 = vadd.f32 %v1279, %v1280
  %v1282 = vrot.slane %v1281, 1
  %v1283 = vadd.f32 %v1281, %v1282
  %v1284 = vsel %vm614, %v1201, 0.0
  %v1285 = vrot.slane %v1284, 4
  %v1286 = vadd.f32 %v1284, %v1285
  %v1287 = vrot.slane %v1286, 2
  %v1288 = vadd.f32 %v1286, %v1287
  %v1289 = vrot.slane %v1288, 1
  %v1290 = vadd.f32 %v1288, %v1289
  %v1291 = vsel %vm614, %v1203, 0.0
  %v1292 = vrot.slane %v1291, 4
  %v1293 = vadd.f32 %v1291, %v1292
  %v1294 = vrot.slane %v1293, 2
  %v1295 = vadd.f32 %v1293, %v1294
  %v1296 = vrot.slane %v1295, 1
  %v1297 = vadd.f32 %v1295, %v1296
  %v1298 = vsel %vm614, %v1205, 0.0
  %v1299 = vrot.slane %v1298, 4
  %v1300 = vadd.f32 %v1298, %v1299
  %v1301 = vrot.slane %v1300, 2
  %v1302 = vadd.f32 %v1300, %v1301
  %v1303 = vrot.slane %v1302, 1
  %v1304 = vadd.f32 %v1302, %v1303
  %v1305 = vsel %vm614, %v1207, 0.0
  %v1306 = vrot.slane %v1305, 4
  %v1307 = vadd.f32 %v1305, %v1306
  %v1308 = vrot.slane %v1307, 2
  %v1309 = vadd.f32 %v1307, %v1308
  %v1310 = vrot.slane %v1309, 1
  %v1311 = vadd.f32 %v1309, %v1310
  %v1312 = vsel %vm614, %v1209, 0.0
  %v1313 = vrot.slane %v1312, 4
  %v1314 = vadd.f32 %v1312, %v1313
  %v1315 = vrot.slane %v1314, 2
  %v1316 = vadd.f32 %v1314, %v1315
  %v1317 = vrot.slane %v1316, 1
  %v1318 = vadd.f32 %v1316, %v1317
  %v1319 = vsel %vm614, %v1211, 0.0
  %v1320 = vrot.slane %v1319, 4
  %v1321 = vadd.f32 %v1319, %v1320
  %v1322 = vrot.slane %v1321, 2
  %v1323 = vadd.f32 %v1321, %v1322
  %v1324 = vrot.slane %v1323, 1
  %v1325 = vadd.f32 %v1323, %v1324
  %v1326 = vsel %vm614, %v1213, 0.0
  %v1327 = vrot.slane %v1326, 4
  %v1328 = vadd.f32 %v1326, %v1327
  %v1329 = vrot.slane %v1328, 2
  %v1330 = vadd.f32 %v1328, %v1329
  %v1331 = vrot.slane %v1330, 1
  %v1332 = vadd.f32 %v1330, %v1331
  %v1333 = vsel %vm614, %v1215, 0.0
  %v1334 = vrot.slane %v1333, 4
  %v1335 = vadd.f32 %v1333, %v1334
  %v1336 = vrot.slane %v1335, 2
  %v1337 = vadd.f32 %v1335, %v1336
  %v1338 = vrot.slane %v1337, 1
  %v1339 = vadd.f32 %v1337, %v1338
  %v1340 = vsel %vm614, %v1217, 0.0
  %v1341 = vrot.slane %v1340, 4
  %v1342 = vadd.f32 %v1340, %v1341
  %v1343 = vrot.slane %v1342, 2
  %v1344 = vadd.f32 %v1342, %v1343
  %v1345 = vrot.slane %v1344, 1
  %v1346 = vadd.f32 %v1344, %v1345
  %v1347 = vsel %vm614, %v1219, 0.0
  %v1348 = vrot.slane %v1347, 4
  %v1349 = vadd.f32 %v1347, %v1348
  %v1350 = vrot.slane %v1349, 2
  %v1351 = vadd.f32 %v1349, %v1350
  %v1352 = vrot.slane %v1351, 1
  %v1353 = vadd.f32 %v1351, %v1352
  %v1354 = vsel %vm614, %v1221, 0.0
  %v1355 = vrot.slane %v1354, 4
  %v1356 = vadd.f32 %v1354, %v1355
  %v1357 = vrot.slane %v1356, 2
  %v1358 = vadd.f32 %v1356, %v1357
  %v1359 = vrot.slane %v1358, 1
  %v1360 = vadd.f32 %v1358, %v1359
  %v1361 = vsel %vm614, %v1223, 0.0
  %v1362 = vrot.slane %v1361, 4
  %v1363 = vadd.f32 %v1361, %v1362
  %v1364 = vrot.slane %v1363, 2
  %v1365 = vadd.f32 %v1363, %v1364
  %v1366 = vrot.slane %v1365, 1
  %v1367 = vadd.f32 %v1365, %v1366
  %v1368 = vsel %vm614, %v1225, 0.0
  %v1369 = vrot.slane %v1368, 4
  %v1370 = vadd.f32 %v1368, %v1369
  %v1371 = vrot.slane %v1370, 2
  %v1372 = vadd.f32 %v1370, %v1371
  %v1373 = vrot.slane %v1372, 1
  %v1374 = vadd.f32 %v1372, %v1373
  %v1375 = vsel %vm614, %v1227, 0.0
  %v1376 = vrot.slane %v1375, 4
  %v1377 = vadd.f32 %v1375, %v1376
  %v1378 = vrot.slane %v1377, 2
  %v1379 = vadd.f32 %v1377, %v1378
  %v1380 = vrot.slane %v1379, 1
  %v1381 = vadd.f32 %v1379, %v1380
  %v1382 = vsel %vm614, %v1229, 0.0
  %v1383 = vrot.slane %v1382, 4
  %v1384 = vadd.f32 %v1382, %v1383
  %v1385 = vrot.slane %v1384, 2
  %v1386 = vadd.f32 %v1384, %v1385
  %v1387 = vrot.slane %v1386, 1
  %v1388 = vadd.f32 %v1386, %v1387
  %v1389 = vsel %vm614, %v1231, 0.0
  %v1390 = vrot.slane %v1389, 4
  %v1391 = vadd.f32 %v1389, %v1390
  %v1392 = vrot.slane %v1391, 2
  %v1393 = vadd.f32 %v1391, %v1392
  %v1394 = vrot.slane %v1393, 1
  %v1395 = vadd.f32 %v1393, %v1394
  %v1396 = vsel %vm614, %v1233, 0.0
  %v1397 = vrot.slane %v1396, 4
  %v1398 = vadd.f32 %v1396, %v1397
  %v1399 = vrot.slane %v1398, 2
  %v1400 = vadd.f32 %v1398, %v1399
  %v1401 = vrot.slane %v1400, 1
  %v1402 = vadd.f32 %v1400, %v1401
  %v1403 = vsel %vm614, %v1235, 0.0
  %v1404 = vrot.slane %v1403, 4
  %v1405 = vadd.f32 %v1403, %v1404
  %v1406 = vrot.slane %v1405, 2
  %v1407 = vadd.f32 %v1405, %v1406
  %v1408 = vrot.slane %v1407, 1
  %v1409 = vadd.f32 %v1407, %v1408
  %v1410 = vsel %vm614, %v1237, 0.0
  %v1411 = vrot.slane %v1410, 4
  %v1412 = vadd.f32 %v1410, %v1411
  %v1413 = vrot.slane %v1412, 2
  %v1414 = vadd.f32 %v1412, %v1413
  %v1415 = vrot.slane %v1414, 1
  %v1416 = vadd.f32 %v1414, %v1415
  %v1417 = vsel %vm614, %v1239, 0.0
  %v1418 = vrot.slane %v1417, 4
  %v1419 = vadd.f32 %v1417, %v1418
  %v1420 = vrot.slane %v1419, 2
  %v1421 = vadd.f32 %v1419, %v1420
  %v1422 = vrot.slane %v1421, 1
  %v1423 = vadd.f32 %v1421, %v1422
  %v1424 = vsel %vm614, %v1241, 0.0
  %v1425 = vrot.slane %v1424, 4
  %v1426 = vadd.f32 %v1424, %v1425
  %v1427 = vrot.slane %v1426, 2
  %v1428 = vadd.f32 %v1426, %v1427
  %v1429 = vrot.slane %v1428, 1
  %v1430 = vadd.f32 %v1428, %v1429
  %v1431 = vsel %vm614, %v1243, 0.0
  %v1432 = vrot.slane %v1431, 4
  %v1433 = vadd.f32 %v1431, %v1432
  %v1434 = vrot.slane %v1433, 2
  %v1435 = vadd.f32 %v1433, %v1434
  %v1436 = vrot.slane %v1435, 1
  %v1437 = vadd.f32 %v1435, %v1436
  %v1438 = vsel %vm614, %v1245, 0.0
  %v1439 = vrot.slane %v1438, 4
  %v1440 = vadd.f32 %v1438, %v1439
  %v1441 = vrot.slane %v1440, 2
  %v1442 = vadd.f32 %v1440, %v1441
  %v1443 = vrot.slane %v1442, 1
  %v1444 = vadd.f32 %v1442, %v1443
  %v1445 = vsel %vm614, %v1247, 0.0
  %v1446 = vrot.slane %v1445, 4
  %v1447 = vadd.f32 %v1445, %v1446
  %v1448 = vrot.slane %v1447, 2
  %v1449 = vadd.f32 %v1447, %v1448
  %v1450 = vrot.slane %v1449, 1
  %v1451 = vadd.f32 %v1449, %v1450
  %v1452 = vsel %vm614, %v1249, 0.0
  %v1453 = vrot.slane %v1452, 4
  %v1454 = vadd.f32 %v1452, %v1453
  %v1455 = vrot.slane %v1454, 2
  %v1456 = vadd.f32 %v1454, %v1455
  %v1457 = vrot.slane %v1456, 1
  %v1458 = vadd.f32 %v1456, %v1457
  %v1459 = vsel %vm614, %v1251, 0.0
  %v1460 = vrot.slane %v1459, 4
  %v1461 = vadd.f32 %v1459, %v1460
  %v1462 = vrot.slane %v1461, 2
  %v1463 = vadd.f32 %v1461, %v1462
  %v1464 = vrot.slane %v1463, 1
  %v1465 = vadd.f32 %v1463, %v1464
  %v1466 = vsel %vm614, %v1253, 0.0
  %v1467 = vrot.slane %v1466, 4
  %v1468 = vadd.f32 %v1466, %v1467
  %v1469 = vrot.slane %v1468, 2
  %v1470 = vadd.f32 %v1468, %v1469
  %v1471 = vrot.slane %v1470, 1
  %v1472 = vadd.f32 %v1470, %v1471
  %v1473 = vsel %vm614, %v1255, 0.0
  %v1474 = vrot.slane %v1473, 4
  %v1475 = vadd.f32 %v1473, %v1474
  %v1476 = vrot.slane %v1475, 2
  %v1477 = vadd.f32 %v1475, %v1476
  %v1478 = vrot.slane %v1477, 1
  %v1479 = vadd.f32 %v1477, %v1478
  %v1480 = vrcp.pop %v1262
  %v1481 = vrcp.pop %v1269
  %v1482 = vrcp.pop %v1276
  %v1483 = vrcp.pop %v1283
  %v1484 = vrcp.pop %v1290
  %v1485 = vrcp.pop %v1297
  %v1486 = vrcp.pop %v1304
  %v1487 = vrcp.pop %v1311
  %v1488 = vrcp.pop %v1318
  %v1489 = vrcp.pop %v1325
  %v1490 = vrcp.pop %v1332
  %v1491 = vrcp.pop %v1339
  %v1492 = vrcp.pop %v1346
  %v1493 = vrcp.pop %v1353
  %v1494 = vrcp.pop %v1360
  %v1495 = vrcp.pop %v1367
  %v1496 = vrcp.pop %v1374
  %v1497 = vrcp.pop %v1381
  %v1498 = vrcp.pop %v1388
  %v1499 = vrcp.pop %v1395
  %v1500 = vrcp.pop %v1402
  %v1501 = vrcp.pop %v1409
  %v1502 = vrcp.pop %v1416
  %v1503 = vrcp.pop %v1423
  %v1504 = vrcp.pop %v1430
  %v1505 = vrcp.pop %v1437
  %v1506 = vrcp.pop %v1444
  %v1507 = vrcp.pop %v1451
  %v1508 = vrcp.pop %v1458
  %v1509 = vrcp.pop %v1465
  %v1510 = vrcp.pop %v1472
  %v1511 = vrcp.pop %v1479
  %v1512 = vmul.f32 %v1193, %v1480
  %v1513 = vmul.f32 %v1195, %v1481
  %v1514 = vmul.f32 %v1197, %v1482
  %v1515 = vmul.f32 %v1199, %v1483
  %v1516 = vmul.f32 %v1201, %v1484
  %v1517 = vmul.f32 %v1203, %v1485
  %v1518 = vmul.f32 %v1205, %v1486
  %v1519 = vmul.f32 %v1207, %v1487
  %v1520 = vmul.f32 %v1209, %v1488
  %v1521 = vmul.f32 %v1211, %v1489
  %v1522 = vmul.f32 %v1213, %v1490
  %v1523 = vmul.f32 %v1215, %v1491
  %v1524 = vmul.f32 %v1217, %v1492
  %v1525 = vmul.f32 %v1219, %v1493
  %v1526 = vmul.f32 %v1221, %v1494
  %v1527 = vmul.f32 %v1223, %v1495
  %v1528 = vmul.f32 %v1225, %v1496
  %v1529 = vmul.f32 %v1227, %v1497
  %v1530 = vmul.f32 %v1229, %v1498
  %v1531 = vmul.f32 %v1231, %v1499
  %v1532 = vmul.f32 %v1233, %v1500
  %v1533 = vmul.f32 %v1235, %v1501
  %v1534 = vmul.f32 %v1237, %v1502
  %v1535 = vmul.f32 %v1239, %v1503
  %v1536 = vmul.f32 %v1241, %v1504
  %v1537 = vmul.f32 %v1243, %v1505
  %v1538 = vmul.f32 %v1245, %v1506
  %v1539 = vmul.f32 %v1247, %v1507
  %v1540 = vmul.f32 %v1249, %v1508
  %v1541 = vmul.f32 %v1251, %v1509
  %v1542 = vmul.f32 %v1253, %v1510
  %v1543 = vmul.f32 %v1255, %v1511
  %v1544 = vmul.f32 %v580, %v1512
  %v1545 = vmul.f32 %v581, %v1513
  %v1546 = vmul.f32 %v582, %v1514
  %v1547 = vmul.f32 %v583, %v1515
  %v1548 = vmul.f32 %v584, %v1516
  %v1549 = vmul.f32 %v585, %v1517
  %v1550 = vmul.f32 %v586, %v1518
  %v1551 = vmul.f32 %v587, %v1519
  %v1552 = vmul.f32 %v588, %v1520
  %v1553 = vmul.f32 %v589, %v1521
  %v1554 = vmul.f32 %v590, %v1522
  %v1555 = vmul.f32 %v591, %v1523
  %v1556 = vmul.f32 %v592, %v1524
  %v1557 = vmul.f32 %v593, %v1525
  %v1558 = vmul.f32 %v594, %v1526
  %v1559 = vmul.f32 %v595, %v1527
  %v1560 = vmul.f32 %v596, %v1528
  %v1561 = vmul.f32 %v597, %v1529
  %v1562 = vmul.f32 %v598, %v1530
  %v1563 = vmul.f32 %v599, %v1531
  %v1564 = vmul.f32 %v600, %v1532
  %v1565 = vmul.f32 %v601, %v1533
  %v1566 = vmul.f32 %v602, %v1534
  %v1567 = vmul.f32 %v603, %v1535
  %v1568 = vmul.f32 %v604, %v1536
  %v1569 = vmul.f32 %v605, %v1537
  %v1570 = vmul.f32 %v606, %v1538
  %v1571 = vmul.f32 %v607, %v1539
  %v1572 = vmul.f32 %v608, %v1540
  %v1573 = vmul.f32 %v609, %v1541
  %v1574 = vmul.f32 %v610, %v1542
  %v1575 = vmul.f32 %v611, %v1543
  %v1576 = vsel %vm614, %v1544, 0.0
  %v1577 = vrot.slane %v1576, 4
  %v1578 = vadd.f32 %v1576, %v1577
  %v1579 = vrot.slane %v1578, 2
  %v1580 = vadd.f32 %v1578, %v1579
  %v1581 = vrot.slane %v1580, 1
  %v1582 = vadd.f32 %v1580, %v1581
  %v1583 = vsel %vm614, %v1545, 0.0
  %v1584 = vrot.slane %v1583, 4
  %v1585 = vadd.f32 %v1583, %v1584
  %v1586 = vrot.slane %v1585, 2
  %v1587 = vadd.f32 %v1585, %v1586
  %v1588 = vrot.slane %v1587, 1
  %v1589 = vadd.f32 %v1587, %v1588
  %v1590 = vsel %vm614, %v1546, 0.0
  %v1591 = vrot.slane %v1590, 4
  %v1592 = vadd.f32 %v1590, %v1591
  %v1593 = vrot.slane %v1592, 2
  %v1594 = vadd.f32 %v1592, %v1593
  %v1595 = vrot.slane %v1594, 1
  %v1596 = vadd.f32 %v1594, %v1595
  %v1597 = vsel %vm614, %v1547, 0.0
  %v1598 = vrot.slane %v1597, 4
  %v1599 = vadd.f32 %v1597, %v1598
  %v1600 = vrot.slane %v1599, 2
  %v1601 = vadd.f32 %v1599, %v1600
  %v1602 = vrot.slane %v1601, 1
  %v1603 = vadd.f32 %v1601, %v1602
  %v1604 = vsel %vm614, %v1548, 0.0
  %v1605 = vrot.slane %v1604, 4
  %v1606 = vadd.f32 %v1604, %v1605
  %v1607 = vrot.slane %v1606, 2
  %v1608 = vadd.f32 %v1606, %v1607
  %v1609 = vrot.slane %v1608, 1
  %v1610 = vadd.f32 %v1608, %v1609
  %v1611 = vsel %vm614, %v1549, 0.0
  %v1612 = vrot.slane %v1611, 4
  %v1613 = vadd.f32 %v1611, %v1612
  %v1614 = vrot.slane %v1613, 2
  %v1615 = vadd.f32 %v1613, %v1614
  %v1616 = vrot.slane %v1615, 1
  %v1617 = vadd.f32 %v1615, %v1616
  %v1618 = vsel %vm614, %v1550, 0.0
  %v1619 = vrot.slane %v1618, 4
  %v1620 = vadd.f32 %v1618, %v1619
  %v1621 = vrot.slane %v1620, 2
  %v1622 = vadd.f32 %v1620, %v1621
  %v1623 = vrot.slane %v1622, 1
  %v1624 = vadd.f32 %v1622, %v1623
  %v1625 = vsel %vm614, %v1551, 0.0
  %v1626 = vrot.slane %v1625, 4
  %v1627 = vadd.f32 %v1625, %v1626
  %v1628 = vrot.slane %v1627, 2
  %v1629 = vadd.f32 %v1627, %v1628
  %v1630 = vrot.slane %v1629, 1
  %v1631 = vadd.f32 %v1629, %v1630
  %v1632 = vsel %vm614, %v1552, 0.0
  %v1633 = vrot.slane %v1632, 4
  %v1634 = vadd.f32 %v1632, %v1633
  %v1635 = vrot.slane %v1634, 2
  %v1636 = vadd.f32 %v1634, %v1635
  %v1637 = vrot.slane %v1636, 1
  %v1638 = vadd.f32 %v1636, %v1637
  %v1639 = vsel %vm614, %v1553, 0.0
  %v1640 = vrot.slane %v1639, 4
  %v1641 = vadd.f32 %v1639, %v1640
  %v1642 = vrot.slane %v1641, 2
  %v1643 = vadd.f32 %v1641, %v1642
  %v1644 = vrot.slane %v1643, 1
  %v1645 = vadd.f32 %v1643, %v1644
  %v1646 = vsel %vm614, %v1554, 0.0
  %v1647 = vrot.slane %v1646, 4
  %v1648 = vadd.f32 %v1646, %v1647
  %v1649 = vrot.slane %v1648, 2
  %v1650 = vadd.f32 %v1648, %v1649
  %v1651 = vrot.slane %v1650, 1
  %v1652 = vadd.f32 %v1650, %v1651
  %v1653 = vsel %vm614, %v1555, 0.0
  %v1654 = vrot.slane %v1653, 4
  %v1655 = vadd.f32 %v1653, %v1654
  %v1656 = vrot.slane %v1655, 2
  %v1657 = vadd.f32 %v1655, %v1656
  %v1658 = vrot.slane %v1657, 1
  %v1659 = vadd.f32 %v1657, %v1658
  %v1660 = vsel %vm614, %v1556, 0.0
  %v1661 = vrot.slane %v1660, 4
  %v1662 = vadd.f32 %v1660, %v1661
  %v1663 = vrot.slane %v1662, 2
  %v1664 = vadd.f32 %v1662, %v1663
  %v1665 = vrot.slane %v1664, 1
  %v1666 = vadd.f32 %v1664, %v1665
  %v1667 = vsel %vm614, %v1557, 0.0
  %v1668 = vrot.slane %v1667, 4
  %v1669 = vadd.f32 %v1667, %v1668
  %v1670 = vrot.slane %v1669, 2
  %v1671 = vadd.f32 %v1669, %v1670
  %v1672 = vrot.slane %v1671, 1
  %v1673 = vadd.f32 %v1671, %v1672
  %v1674 = vsel %vm614, %v1558, 0.0
  %v1675 = vrot.slane %v1674, 4
  %v1676 = vadd.f32 %v1674, %v1675
  %v1677 = vrot.slane %v1676, 2
  %v1678 = vadd.f32 %v1676, %v1677
  %v1679 = vrot.slane %v1678, 1
  %v1680 = vadd.f32 %v1678, %v1679
  %v1681 = vsel %vm614, %v1559, 0.0
  %v1682 = vrot.slane %v1681, 4
  %v1683 = vadd.f32 %v1681, %v1682
  %v1684 = vrot.slane %v1683, 2
  %v1685 = vadd.f32 %v1683, %v1684
  %v1686 = vrot.slane %v1685, 1
  %v1687 = vadd.f32 %v1685, %v1686
  %v1688 = vsel %vm614, %v1560, 0.0
  %v1689 = vrot.slane %v1688, 4
  %v1690 = vadd.f32 %v1688, %v1689
  %v1691 = vrot.slane %v1690, 2
  %v1692 = vadd.f32 %v1690, %v1691
  %v1693 = vrot.slane %v1692, 1
  %v1694 = vadd.f32 %v1692, %v1693
  %v1695 = vsel %vm614, %v1561, 0.0
  %v1696 = vrot.slane %v1695, 4
  %v1697 = vadd.f32 %v1695, %v1696
  %v1698 = vrot.slane %v1697, 2
  %v1699 = vadd.f32 %v1697, %v1698
  %v1700 = vrot.slane %v1699, 1
  %v1701 = vadd.f32 %v1699, %v1700
  %v1702 = vsel %vm614, %v1562, 0.0
  %v1703 = vrot.slane %v1702, 4
  %v1704 = vadd.f32 %v1702, %v1703
  %v1705 = vrot.slane %v1704, 2
  %v1706 = vadd.f32 %v1704, %v1705
  %v1707 = vrot.slane %v1706, 1
  %v1708 = vadd.f32 %v1706, %v1707
  %v1709 = vsel %vm614, %v1563, 0.0
  %v1710 = vrot.slane %v1709, 4
  %v1711 = vadd.f32 %v1709, %v1710
  %v1712 = vrot.slane %v1711, 2
  %v1713 = vadd.f32 %v1711, %v1712
  %v1714 = vrot.slane %v1713, 1
  %v1715 = vadd.f32 %v1713, %v1714
  %v1716 = vsel %vm614, %v1564, 0.0
  %v1717 = vrot.slane %v1716, 4
  %v1718 = vadd.f32 %v1716, %v1717
  %v1719 = vrot.slane %v1718, 2
  %v1720 = vadd.f32 %v1718, %v1719
  %v1721 = vrot.slane %v1720, 1
  %v1722 = vadd.f32 %v1720, %v1721
  %v1723 = vsel %vm614, %v1565, 0.0
  %v1724 = vrot.slane %v1723, 4
  %v1725 = vadd.f32 %v1723, %v1724
  %v1726 = vrot.slane %v1725, 2
  %v1727 = vadd.f32 %v1725, %v1726
  %v1728 = vrot.slane %v1727, 1
  %v1729 = vadd.f32 %v1727, %v1728
  %v1730 = vsel %vm614, %v1566, 0.0
  %v1731 = vrot.slane %v1730, 4
  %v1732 = vadd.f32 %v1730, %v1731
  %v1733 = vrot.slane %v1732, 2
  %v1734 = vadd.f32 %v1732, %v1733
  %v1735 = vrot.slane %v1734, 1
  %v1736 = vadd.f32 %v1734, %v1735
  %v1737 = vsel %vm614, %v1567, 0.0
  %v1738 = vrot.slane %v1737, 4
  %v1739 = vadd.f32 %v1737, %v1738
  %v1740 = vrot.slane %v1739, 2
  %v1741 = vadd.f32 %v1739, %v1740
  %v1742 = vrot.slane %v1741, 1
  %v1743 = vadd.f32 %v1741, %v1742
  %v1744 = vsel %vm614, %v1568, 0.0
  %v1745 = vrot.slane %v1744, 4
  %v1746 = vadd.f32 %v1744, %v1745
  %v1747 = vrot.slane %v1746, 2
  %v1748 = vadd.f32 %v1746, %v1747
  %v1749 = vrot.slane %v1748, 1
  %v1750 = vadd.f32 %v1748, %v1749
  %v1751 = vsel %vm614, %v1569, 0.0
  %v1752 = vrot.slane %v1751, 4
  %v1753 = vadd.f32 %v1751, %v1752
  %v1754 = vrot.slane %v1753, 2
  %v1755 = vadd.f32 %v1753, %v1754
  %v1756 = vrot.slane %v1755, 1
  %v1757 = vadd.f32 %v1755, %v1756
  %v1758 = vsel %vm614, %v1570, 0.0
  %v1759 = vrot.slane %v1758, 4
  %v1760 = vadd.f32 %v1758, %v1759
  %v1761 = vrot.slane %v1760, 2
  %v1762 = vadd.f32 %v1760, %v1761
  %v1763 = vrot.slane %v1762, 1
  %v1764 = vadd.f32 %v1762, %v1763
  %v1765 = vsel %vm614, %v1571, 0.0
  %v1766 = vrot.slane %v1765, 4
  %v1767 = vadd.f32 %v1765, %v1766
  %v1768 = vrot.slane %v1767, 2
  %v1769 = vadd.f32 %v1767, %v1768
  %v1770 = vrot.slane %v1769, 1
  %v1771 = vadd.f32 %v1769, %v1770
  %v1772 = vsel %vm614, %v1572, 0.0
  %v1773 = vrot.slane %v1772, 4
  %v1774 = vadd.f32 %v1772, %v1773
  %v1775 = vrot.slane %v1774, 2
  %v1776 = vadd.f32 %v1774, %v1775
  %v1777 = vrot.slane %v1776, 1
  %v1778 = vadd.f32 %v1776, %v1777
  %v1779 = vsel %vm614, %v1573, 0.0
  %v1780 = vrot.slane %v1779, 4
  %v1781 = vadd.f32 %v1779, %v1780
  %v1782 = vrot.slane %v1781, 2
  %v1783 = vadd.f32 %v1781, %v1782
  %v1784 = vrot.slane %v1783, 1
  %v1785 = vadd.f32 %v1783, %v1784
  %v1786 = vsel %vm614, %v1574, 0.0
  %v1787 = vrot.slane %v1786, 4
  %v1788 = vadd.f32 %v1786, %v1787
  %v1789 = vrot.slane %v1788, 2
  %v1790 = vadd.f32 %v1788, %v1789
  %v1791 = vrot.slane %v1790, 1
  %v1792 = vadd.f32 %v1790, %v1791
  %v1793 = vsel %vm614, %v1575, 0.0
  %v1794 = vrot.slane %v1793, 4
  %v1795 = vadd.f32 %v1793, %v1794
  %v1796 = vrot.slane %v1795, 2
  %v1797 = vadd.f32 %v1795, %v1796
  %v1798 = vrot.slane %v1797, 1
  %v1799 = vadd.f32 %v1797, %v1798
  %v1800 = vld [vmem:[%s5] sm:$0xff]
  %v1801 = vld [vmem:[%s5 + $0x8] sm:$0xff]
  %v1802 = vld [vmem:[%s6] sm:$0x1]
  %v1804 = vlaneseq
  %v1805 = vshrl.u32 %v1804, 7
  %v1806 = vsub.s32 0, %v1805
  %v1807 = vrot.slane %v1802, %v1806
  %vm1841 = vcmask 1041409
  %v1842 = vsel %vm1841, %v1589, %v1582
  %vm1843 = vcmask 1042434
  %v1844 = vsel %vm1843, %v1596, %v1842
  %vm1845 = vcmask 1043459
  %v1846 = vsel %vm1845, %v1603, %v1844
  %vm1847 = vcmask 1044484
  %v1848 = vsel %vm1847, %v1610, %v1846
  %vm1849 = vcmask 1045509
  %v1850 = vsel %vm1849, %v1617, %v1848
  %vm1851 = vcmask 1046534
  %v1852 = vsel %vm1851, %v1624, %v1850
  %vm1853 = vcmask 1047559
  %v1854 = vsel %vm1853, %v1631, %v1852
  %v1855 = vsel %vm1841, %v1645, %v1638
  %v1856 = vsel %vm1843, %v1652, %v1855
  %v1857 = vsel %vm1845, %v1659, %v1856
  %v1858 = vsel %vm1847, %v1666, %v1857
  %v1859 = vsel %vm1849, %v1673, %v1858
  %v1860 = vsel %vm1851, %v1680, %v1859
  %v1861 = vsel %vm1853, %v1687, %v1860
  %v1862 = vsel %vm1841, %v1701, %v1694
  %v1863 = vsel %vm1843, %v1708, %v1862
  %v1864 = vsel %vm1845, %v1715, %v1863
  %v1865 = vsel %vm1847, %v1722, %v1864
  %v1866 = vsel %vm1849, %v1729, %v1865
  %v1867 = vsel %vm1851, %v1736, %v1866
  %v1868 = vsel %vm1853, %v1743, %v1867
  %v1869 = vsel %vm1841, %v1757, %v1750
  %v1870 = vsel %vm1843, %v1764, %v1869
  %v1871 = vsel %vm1845, %v1771, %v1870
  %v1872 = vsel %vm1847, %v1778, %v1871
  %v1873 = vsel %vm1849, %v1785, %v1872
  %v1874 = vsel %vm1851, %v1792, %v1873
  %v1875 = vsel %vm1853, %v1799, %v1874
  %v1876 = vsel %vm614, %v1854, 0
  %v1878 = vsel %vm614, %v1861, 0
  %v1880 = vsel %vm614, %v1868, 0
  %v1882 = vsel %vm614, %v1875, 0
  %1884 = vmatprep.subr.mxu0 0.0
  %1885 = vmatpush1.msra.mxu0 0.0
  %1886 = vmatprep.subr.mxu0 0.0
  %1887 = vmatpush1.msra.mxu0 0.0
  %1888 = vmatprep.subr.mxu0 0.0
  %1889 = vmatpush1.msra.mxu0 0.0
  %1890 = vmatprep.subr.mxu0 0.0
  %1891 = vmatpush1.msra.mxu0 0.0
  %1892 = vmatprep.subr.mxu0 0.0
  %1893 = vmatpush1.msra.mxu0 0.0
  %1894 = vmatprep.subr.mxu0 0.0
  %1895 = vmatpush1.msra.mxu0 0.0
  %1896 = vmatprep.subr.mxu0 0.0
  %1897 = vmatpush1.msra.mxu0 0.0
  %1898 = vmatprep.subr.mxu0 0.0
  %1899 = vmatpush1.msra.mxu0 0.0
  %1900 = vmatprep.subr.mxu0 0.0
  %1901 = vmatpush1.msra.mxu0 0.0
  %1902 = vmatprep.subr.mxu0 0.0
  %1903 = vmatpush1.msra.mxu0 0.0
  %1904 = vmatprep.subr.mxu0 0.0
  %1905 = vmatpush1.msra.mxu0 0.0
  %1906 = vmatprep.subr.mxu0 0.0
  %1907 = vmatpush1.msra.mxu0 0.0
  %1908 = vmatprep.subr.mxu0 0.0
  %1909 = vmatpush1.msra.mxu0 0.0
  %1910 = vmatprep.subr.mxu0 0.0
  %1911 = vmatpush1.msra.mxu0 0.0
  %1912 = vmatprep.subr.mxu0 0.0
  %1913 = vmatpush1.msra.mxu0 %v1801
  %1914 = vmatprep.subr.mxu0 0.0
  %1915 = vmatpush1.msra.mxu0 %v1800
  %1916 = vmatprep.subr.mxu0 0.0
  %1917 = vmatpush2.msra.mxu0 0.0
  %1918 = vmatprep.subr.mxu0 0.0
  %1919 = vmatpush2.msra.mxu0 0.0
  %1920 = vmatprep.subr.mxu0 0.0
  %1921 = vmatpush2.msra.mxu0 0.0
  %1922 = vmatprep.subr.mxu0 0.0
  %1923 = vmatpush2.msra.mxu0 0.0
  %1924 = vmatprep.subr.mxu0 0.0
  %1925 = vmatpush2.msra.mxu0 0.0
  %1926 = vmatprep.subr.mxu0 0.0
  %1927 = vmatpush2.msra.mxu0 0.0
  %1928 = vmatprep.subr.mxu0 0.0
  %1929 = vmatpush2.msra.mxu0 0.0
  %1930 = vmatprep.subr.mxu0 0.0
  %1931 = vmatpush2.msra.mxu0 0.0
  %1932 = vmatprep.subr.mxu0 0.0
  %1933 = vmatpush2.msra.mxu0 0.0
  %1934 = vmatprep.subr.mxu0 0.0
  %1935 = vmatpush2.msra.mxu0 0.0
  %1936 = vmatprep.subr.mxu0 0.0
  %1937 = vmatpush2.msra.mxu0 0.0
  %1938 = vmatprep.subr.mxu0 0.0
  %1939 = vmatpush2.msra.mxu0 0.0
  %1940 = vmatprep.subr.mxu0 0.0
  %1941 = vmatpush2.msra.mxu0 0.0
  %1942 = vmatprep.subr.mxu0 0.0
  %1943 = vmatpush2.msra.mxu0 0.0
  %1944 = vmatprep.subr.mxu0 0.0
  %1945 = vmatpush2.msra.mxu0 0.0
  %1946 = vmatprep.subr.mxu0 0.0
  %1947 = vmatpush2.msra.mxu0 0.0
  %1948 = vmatprep.mubr.f32.mxu0 0.0
  %1949 = vmatmul.mubr.f32.gmra.mxu0 %v1876
  %v1950 = vpop.f32.mrf.mxu0
  %v1951 = vadd.f32 %v1807, %v1950
  %v1952 = vpop.f32.mrf.mxu0
  %1953 = vmatprep.mubr.f32.mxu0 0.0
  %1954 = vmatmul.mubr.f32.gmra.mxu0 %v1878
  %v1955 = vpop.f32.mrf.mxu0
  %v1956 = vadd.f32 %v1807, %v1955
  %v1957 = vpop.f32.mrf.mxu0
  %1958 = vmatprep.mubr.f32.mxu0 0.0
  %1959 = vmatmul.mubr.f32.gmra.mxu0 %v1880
  %v1960 = vpop.f32.mrf.mxu0
  %v1961 = vadd.f32 %v1807, %v1960
  %v1962 = vpop.f32.mrf.mxu0
  %1963 = vmatprep.mubr.f32.mxu0 0.0
  %1964 = vmatmul.mubr.f32.gmra.mxu0 %v1882
  %v1965 = vpop.f32.mrf.mxu0
  %v1966 = vadd.f32 %v1807, %v1965
  %v1967 = vpop.f32.mrf.mxu0
  %1968 = vdwg.mxu0
  %v1969 = vmax.f32 %v1951, 0.0
  %v1970 = vmax.f32 %v1956, 0.0
  %v1971 = vmax.f32 %v1961, 0.0
  %v1972 = vmax.f32 %v1966, 0.0
  %1973 = vst.msk [vmem:[%s7] sm:$0xff] %vm614, %v1969
  %1974 = vst.msk [vmem:[%s7 + $0x8] sm:$0xff] %vm614, %v1970
  %1975 = vst.msk [vmem:[%s7 + $0x10] sm:$0xff] %vm614, %v1971
  %1976 = vst.msk [vmem:[%s7 + $0x18] sm:$0xff] %vm614, %v1972
  // Predicated region
  $region30: #{lfa_forward.8} parent=0 // pred_check
    _
  $region31: #{lfa_forward.8} parent=0 // pred_check_branch
    %1978 = sbr.rel (0) target = $region33
  $region32: #{lfa_forward.8} parent=0 // pred_region
    _
  $region33: #{lfa_forward.8} parent=0 // pred_fallthru
    _
  // Predicated region
  $region34: #{lfa_forward.8} parent=0 // pred_check
    _
  $region35: #{lfa_forward.8} parent=0 // pred_check_branch
    %1980 = sbr.rel (0) target = $region37
  $region36: #{lfa_forward.8} parent=0 // pred_region
    _
  $region37: #{lfa_forward.8} parent=0 // pred_fallthru
    _

// kernel: lfa_forward.9
$region0: #{lfa_forward.9}
  #allocation0 [shape = 'u32[]', space=smem, size = 0x4, offset = 0x4, fixed_abs, tag = 'smem constant byte address 0x4 - core index']
  #allocation1 [shape = 'u32[144,128]{1,0:T(1,128)}', space=vmem, size = 0x12000, scoped, tag = 'internal scratch']
  %s0 = inlined_call_operand.vmem [shape: f32[32,16], index: 0, kind: input, shape index: {}]
  %s1 = inlined_call_operand.vmem [shape: f32[16,32], index: 1, kind: input, shape index: {}]
  %s2 = inlined_call_operand.vmem [shape: f32[1,32], index: 2, kind: input, shape index: {}]
  %s3 = inlined_call_operand.vmem [shape: f32[32,8], index: 3, kind: input, shape index: {}]
  %s4 = inlined_call_operand.vmem [shape: f32[8,32], index: 4, kind: input, shape index: {}]
  %s5 = inlined_call_operand.vmem [shape: f32[1,32], index: 5, kind: input, shape index: {}]
  %s6 = inlined_call_operand.hbm [shape: f32[32,32], index: 6, kind: output, shape index: {}]
  %s7 = sld [smem:[#allocation0]]
  $region34: #{lfa_forward.9} parent=0
    _
  %s9 = ssub.s32 1, %s7
  %s10 = scalar_select 0, %s9, %s7
  $region1: #{lfa_forward.9} parent=0
    #allocation2 [shape = 'u8[16384]{0}', space=vmem, size = 0x4000, scoped, tag = 'output window, operand 0, single buffered']
    #allocation3 [shape = 's32[1]{0}', space=sflag, size = 0x4, scoped, tag = 'scoped memory for lfa_forward.9']
    %11 = vsyncpa [#allocation3], 0
    // Predicated region
    $region2: #{lfa_forward.9} parent=1 // pred_check
      _
    $region3: #{lfa_forward.9} parent=1 // pred_check_branch
      %13 = sbr.rel (0) target = $region5
    $region4: #{lfa_forward.9} parent=1 // pred_region
      _
    $region5: #{lfa_forward.9} parent=1 // pred_fallthru
      _
    // Predicated region
    $region6: #{lfa_forward.9} parent=1 // pred_check
      _
    $region7: #{lfa_forward.9} parent=1 // pred_check_branch
      %15 = sbr.rel (0) target = $region9
    $region8: #{lfa_forward.9} parent=1 // pred_region
      _
    $region9: #{lfa_forward.9} parent=1 // pred_fallthru
      _
    // Predicated region
    $region10: #{lfa_forward.9} parent=1 // pred_check
      _
    $region11: #{lfa_forward.9} parent=1 // pred_check_branch
      %17 = sbr.rel (0) target = $region13
    $region12: #{lfa_forward.9} parent=1 // pred_region
      _
    $region13: #{lfa_forward.9} parent=1 // pred_fallthru
      _
    // Predicated region
    $region14: #{lfa_forward.9} parent=1 // pred_check
      _
    $region15: #{lfa_forward.9} parent=1 // pred_check_branch
      %19 = sbr.rel (0) target = $region17
    $region16: #{lfa_forward.9} parent=1 // pred_region
      _
    $region17: #{lfa_forward.9} parent=1 // pred_fallthru
      _
    // Predicated region
    $region18: #{lfa_forward.9} parent=1 // pred_check
      _
    $region19: #{lfa_forward.9} parent=1 // pred_check_branch
      %21 = sbr.rel (0) target = $region21
    $region20: #{lfa_forward.9} parent=1 // pred_region
      _
    $region21: #{lfa_forward.9} parent=1 // pred_fallthru
      _
    // Predicated region
    $region22: #{lfa_forward.9} parent=1 // pred_check
      _
    $region23: #{lfa_forward.9} parent=1 // pred_check_branch
      %23 = sbr.rel (0) target = $region25
    $region24: #{lfa_forward.9} parent=1 // pred_region
      _
    $region25: #{lfa_forward.9} parent=1 // pred_fallthru
      _
    %v24 = vld [vmem:[%s0] sm:$0xff]
    %v25 = vld [vmem:[%s0 + $0x8] sm:$0xff]
    %v26 = vld [vmem:[%s0 + $0x10] sm:$0xff]
    %v27 = vld [vmem:[%s0 + $0x18] sm:$0xff]
    %v28 = vld [vmem:[%s1] sm:$0xff]
    %v29 = vld [vmem:[%s1 + $0x8] sm:$0xff]
    %v30 = vld [vmem:[%s2] sm:$0x1]
    %v32 = vlaneseq
    %v33 = vshrl.u32 %v32, 7
    %v34 = vsub.s32 0, %v33
    %v35 = vrot.slane %v30, %v34
    %vm37 = vcmask 130048
    %v39 = vsel %vm37, %v24, 0
    %v42 = vsel %vm37, %v25, 0
    %v45 = vsel %vm37, %v26, 0
    %v48 = vsel %vm37, %v27, 0
    %50 = vmatprep.subr.mxu0 0.0
    %51 = vmatpush1.msra.mxu0 0.0
    %52 = vmatprep.subr.mxu0 0.0
    %53 = vmatpush1.msra.mxu0 0.0
    %54 = vmatprep.subr.mxu0 0.0
    %55 = vmatpush1.msra.mxu0 0.0
    %56 = vmatprep.subr.mxu0 0.0
    %57 = vmatpush1.msra.mxu0 0.0
    %58 = vmatprep.subr.mxu0 0.0
    %59 = vmatpush1.msra.mxu0 0.0
    %60 = vmatprep.subr.mxu0 0.0
    %61 = vmatpush1.msra.mxu0 0.0
    %62 = vmatprep.subr.mxu0 0.0
    %63 = vmatpush1.msra.mxu0 0.0
    %64 = vmatprep.subr.mxu0 0.0
    %65 = vmatpush1.msra.mxu0 0.0
    %66 = vmatprep.subr.mxu0 0.0
    %67 = vmatpush1.msra.mxu0 0.0
    %68 = vmatprep.subr.mxu0 0.0
    %69 = vmatpush1.msra.mxu0 0.0
    %70 = vmatprep.subr.mxu0 0.0
    %71 = vmatpush1.msra.mxu0 0.0
    %72 = vmatprep.subr.mxu0 0.0
    %73 = vmatpush1.msra.mxu0 0.0
    %74 = vmatprep.subr.mxu0 0.0
    %75 = vmatpush1.msra.mxu0 0.0
    %76 = vmatprep.subr.mxu0 0.0
    %77 = vmatpush1.msra.mxu0 0.0
    %78 = vmatprep.subr.mxu0 0.0
    %79 = vmatpush1.msra.mxu0 %v29
    %80 = vmatprep.subr.mxu0 0.0
    %81 = vmatpush1.msra.mxu0 %v28
    %82 = vmatprep.subr.mxu0 0.0
    %83 = vmatpush2.msra.mxu0 0.0
    %84 = vmatprep.subr.mxu0 0.0
    %85 = vmatpush2.msra.mxu0 0.0
    %86 = vmatprep.subr.mxu0 0.0
    %87 = vmatpush2.msra.mxu0 0.0
    %88 = vmatprep.subr.mxu0 0.0
    %89 = vmatpush2.msra.mxu0 0.0
    %90 = vmatprep.subr.mxu0 0.0
    %91 = vmatpush2.msra.mxu0 0.0
    %92 = vmatprep.subr.mxu0 0.0
    %93 = vmatpush2.msra.mxu0 0.0
    %94 = vmatprep.subr.mxu0 0.0
    %95 = vmatpush2.msra.mxu0 0.0
    %96 = vmatprep.subr.mxu0 0.0
    %97 = vmatpush2.msra.mxu0 0.0
    %98 = vmatprep.subr.mxu0 0.0
    %99 = vmatpush2.msra.mxu0 0.0
    %100 = vmatprep.subr.mxu0 0.0
    %101 = vmatpush2.msra.mxu0 0.0
    %102 = vmatprep.subr.mxu0 0.0
    %103 = vmatpush2.msra.mxu0 0.0
    %104 = vmatprep.subr.mxu0 0.0
    %105 = vmatpush2.msra.mxu0 0.0
    %106 = vmatprep.subr.mxu0 0.0
    %107 = vmatpush2.msra.mxu0 0.0
    %108 = vmatprep.subr.mxu0 0.0
    %109 = vmatpush2.msra.mxu0 0.0
    %110 = vmatprep.subr.mxu0 0.0
    %111 = vmatpush2.msra.mxu0 0.0
    %112 = vmatprep.subr.mxu0 0.0
    %113 = vmatpush2.msra.mxu0 0.0
    %114 = vmatprep.mubr.f32.mxu0 0.0
    %115 = vmatmul.mubr.f32.gmra.mxu0 %v39
    %v116 = vpop.f32.mrf.mxu0
    %v117 = vadd.f32 %v35, %v116
    %v118 = vpop.f32.mrf.mxu0
    %119 = vmatprep.mubr.f32.mxu0 0.0
    %120 = vmatmul.mubr.f32.gmra.mxu0 %v42
    %v121 = vpop.f32.mrf.mxu0
    %v122 = vadd.f32 %v35, %v121
    %v123 = vpop.f32.mrf.mxu0
    %124 = vmatprep.mubr.f32.mxu0 0.0
    %125 = vmatmul.mubr.f32.gmra.mxu0 %v45
    %v126 = vpop.f32.mrf.mxu0
    %v127 = vadd.f32 %v35, %v126
    %v128 = vpop.f32.mrf.mxu0
    %129 = vmatprep.mubr.f32.mxu0 0.0
    %130 = vmatmul.mubr.f32.gmra.mxu0 %v48
    %v131 = vpop.f32.mrf.mxu0
    %v132 = vadd.f32 %v35, %v131
    %v133 = vpop.f32.mrf.mxu0
    %134 = vdwg.mxu0
    %v135 = vld [vmem:[%s3] sm:$0xff]
    %v136 = vld [vmem:[%s3 + $0x8] sm:$0xff]
    %v137 = vld [vmem:[%s3 + $0x10] sm:$0xff]
    %v138 = vld [vmem:[%s3 + $0x18] sm:$0xff]
    %v139 = vld [vmem:[%s4] sm:$0xff]
    %vm140 = vcmask 64512
    %v142 = vsel %vm140, %v135, 0
    %v145 = vsel %vm140, %v136, 0
    %v148 = vsel %vm140, %v137, 0
    %v151 = vsel %vm140, %v138, 0
    %153 = vmatprep.subr.mxu0 0.0
    %154 = vmatpush1.msra.mxu0 0.0
    %155 = vmatprep.subr.mxu0 0.0
    %156 = vmatpush1.msra.mxu0 0.0
    %157 = vmatprep.subr.mxu0 0.0
    %158 = vmatpush1.msra.mxu0 0.0
    %159 = vmatprep.subr.mxu0 0.0
    %160 = vmatpush1.msra.mxu0 0.0
    %161 = vmatprep.subr.mxu0 0.0
    %162 = vmatpush1.msra.mxu0 0.0
    %163 = vmatprep.subr.mxu0 0.0
    %164 = vmatpush1.msra.mxu0 0.0
    %165 = vmatprep.subr.mxu0 0.0
    %166 = vmatpush1.msra.mxu0 0.0
    %167 = vmatprep.subr.mxu0 0.0
    %168 = vmatpush1.msra.mxu0 0.0
    %169 = vmatprep.subr.mxu0 0.0
    %170 = vmatpush1.msra.mxu0 0.0
    %171 = vmatprep.subr.mxu0 0.0
    %172 = vmatpush1.msra.mxu0 0.0
    %173 = vmatprep.subr.mxu0 0.0
    %174 = vmatpush1.msra.mxu0 0.0
    %175 = vmatprep.subr.mxu0 0.0
    %176 = vmatpush1.msra.mxu0 0.0
    %177 = vmatprep.subr.mxu0 0.0
    %178 = vmatpush1.msra.mxu0 0.0
    %179 = vmatprep.subr.mxu0 0.0
    %180 = vmatpush1.msra.mxu0 0.0
    %181 = vmatprep.subr.mxu0 0.0
    %182 = vmatpush1.msra.mxu0 0.0
    %183 = vmatprep.subr.mxu0 0.0
    %184 = vmatpush1.msra.mxu0 %v139
    %185 = vmatprep.subr.mxu0 0.0
    %186 = vmatpush2.msra.mxu0 0.0
    %187 = vmatprep.subr.mxu0 0.0
    %188 = vmatpush2.msra.mxu0 0.0
    %189 = vmatprep.subr.mxu0 0.0
    %190 = vmatpush2.msra.mxu0 0.0
    %191 = vmatprep.subr.mxu0 0.0
    %192 = vmatpush2.msra.mxu0 0.0
    %193 = vmatprep.subr.mxu0 0.0
    %194 = vmatpush2.msra.mxu0 0.0
    %195 = vmatprep.subr.mxu0 0.0
    %196 = vmatpush2.msra.mxu0 0.0
    %197 = vmatprep.subr.mxu0 0.0
    %198 = vmatpush2.msra.mxu0 0.0
    %199 = vmatprep.subr.mxu0 0.0
    %200 = vmatpush2.msra.mxu0 0.0
    %201 = vmatprep.subr.mxu0 0.0
    %202 = vmatpush2.msra.mxu0 0.0
    %203 = vmatprep.subr.mxu0 0.0
    %204 = vmatpush2.msra.mxu0 0.0
    %205 = vmatprep.subr.mxu0 0.0
    %206 = vmatpush2.msra.mxu0 0.0
    %207 = vmatprep.subr.mxu0 0.0
    %208 = vmatpush2.msra.mxu0 0.0
    %209 = vmatprep.subr.mxu0 0.0
    %210 = vmatpush2.msra.mxu0 0.0
    %211 = vmatprep.subr.mxu0 0.0
    %212 = vmatpush2.msra.mxu0 0.0
    %213 = vmatprep.subr.mxu0 0.0
    %214 = vmatpush2.msra.mxu0 0.0
    %215 = vmatprep.subr.mxu0 0.0
    %216 = vmatpush2.msra.mxu0 0.0
    %217 = vmatprep.mubr.f32.mxu0 0.0
    %218 = vmatmul.mubr.f32.gmra.mxu0 %v142
    %v219 = vpop.f32.mrf.mxu0
    %v220 = vadd.f32 0.0, %v219
    %v221 = vpop.f32.mrf.mxu0
    %222 = vmatprep.mubr.f32.mxu0 0.0
    %223 = vmatmul.mubr.f32.gmra.mxu0 %v145
    %v224 = vpop.f32.mrf.mxu0
    %v225 = vadd.f32 0.0, %v224
    %v226 = vpop.f32.mrf.mxu0
    %227 = vmatprep.mubr.f32.mxu0 0.0
    %228 = vmatmul.mubr.f32.gmra.mxu0 %v148
    %v229 = vpop.f32.mrf.mxu0
    %v230 = vadd.f32 0.0, %v229
    %v231 = vpop.f32.mrf.mxu0
    %232 = vmatprep.mubr.f32.mxu0 0.0
    %233 = vmatmul.mubr.f32.gmra.mxu0 %v151
    %v234 = vpop.f32.mrf.mxu0
    %v235 = vadd.f32 0.0, %v234
    %v236 = vpop.f32.mrf.mxu0
    %237 = vdwg.mxu0
    %v238 = vadd.f32 %v117, %v220
    %v239 = vadd.f32 %v122, %v225
    %v240 = vadd.f32 %v127, %v230
    %v241 = vadd.f32 %v132, %v235
    %v242 = vld [vmem:[%s5] sm:$0x1]
    %v244 = vlaneseq
    %v245 = vshrl.u32 %v244, 7
    %v246 = vsub.s32 0, %v245
    %v247 = vrot.slane %v242, %v246
    %v249 = vadd.f32 %v238, %v247
    %v250 = vadd.f32 %v239, %v247
    %v251 = vadd.f32 %v240, %v247
    %v252 = vadd.f32 %v241, %v247
    %vm253 = vcmp.gt.f32.partialorder %v249, 0.0
    %vm254 = vcmp.gt.f32.partialorder %v250, 0.0
    %vm255 = vcmp.gt.f32.partialorder %v251, 0.0
    %vm256 = vcmp.gt.f32.partialorder %v252, 0.0
    %v257 = vmul.f32 %v249, 0.2
    %v258 = vmul.f32 %v250, 0.2
    %v259 = vmul.f32 %v251, 0.2
    %v260 = vmul.f32 %v252, 0.2
    %v261 = vsel %vm253, %v249, %v257
    %v262 = vsel %vm254, %v250, %v258
    %v263 = vsel %vm255, %v251, %v259
    %v264 = vsel %vm256, %v252, %v260
    %vm265 = vcmask 261120
    %266 = vst.msk [vmem:[#allocation2] sm:$0xff] %vm265, %v261
    %267 = vst.msk [vmem:[#allocation2 + $0x8] sm:$0xff] %vm265, %v262
    %268 = vst.msk [vmem:[#allocation2 + $0x10] sm:$0xff] %vm265, %v263
    %269 = vst.msk [vmem:[#allocation2 + $0x18] sm:$0xff] %vm265, %v264
    // Predicated region
    $region26: #{lfa_forward.9} parent=1 // pred_check
      _
    $region27: #{lfa_forward.9} parent=1 // pred_check_branch
      %271 = sbr.rel (0) target = $region29
    $region28: #{lfa_forward.9} parent=1 // pred_region
      %s273 = ssub.s32 512, 512
      %274 = vsyncadd [#allocation3], %s273
      %s275 = sshll.u32 [#allocation2], 4
      %s276 = int_to_ptr.vmem [resolvable:$true] %s275
      %281 = dma.vmem_to_hbm [thread:$0]  %s276, 512, %s6, [#allocation3], 128, 128, 8
    $region29: #{lfa_forward.9} parent=1 // pred_fallthru
      _
    // Predicated region
    $region30: #{lfa_forward.9} parent=1 // pred_check
      _
    $region31: #{lfa_forward.9} parent=1 // pred_check_branch
      %283 = sbr.rel (0) target = $region33
    $region32: #{lfa_forward.9} parent=1 // pred_region
      %284 = dma.done [#allocation3], 512
    $region33: #{lfa_forward.9} parent=1 // pred_fallthru
      _
    %285 = vsyncpa [#allocation3], 1

</llo_original>
